<compile_context>
chip_gen: v7x
topology: tpu7x:2x2x1
jax: 0.10.0
libtpu: 0.0.40
codegen_flags: <defaults>
</compile_context>

<pallas_src>
import numpy as np
import jax
import jax.numpy as jnp
from jax.experimental import pallas as pl
from jax.experimental.pallas import tpu as pltpu


# ------------------------- bilinear x2 (align_corners=True) ------------------

def _interp_taps(n_in, n_out):
    """Per-output (i0, i1, frac) taps for PyTorch bilinear align_corners=True."""
    if n_out == 1 or n_in == 1:
        return [(0, 0, 0.0)] * n_out
    scale = (n_in - 1) / (n_out - 1)
    taps = []
    for i in range(n_out):
        src = i * scale
        i0 = min(int(np.floor(src)), n_in - 1)
        i1 = min(i0 + 1, n_in - 1)
        taps.append((i0, i1, float(src - i0)))
    return taps


def _interp_matrix(n_in, n_out):
    """Row-stochastic (rows sum to 1) interpolation matrix, shape (n_out, n_in)."""
    A = np.zeros((n_out, n_in), dtype=np.float32)
    for i, (i0, i1, f) in enumerate(_interp_taps(n_in, n_out)):
        A[i, i0] += 1.0 - f
        A[i, i1] += f
    return A


def _nbytes(shape, dtype):
    return int(np.prod(shape)) * jnp.dtype(dtype).itemsize


# ------------------------------- fused forward -------------------------------

def feature_fusion_block(params, x0_nchw, x1_nchw):
    """FeatureFusionBlock_custom.forward(x0, x1); inputs are NCHW float32."""
    N, C, H, W = x0_nchw.shape
    Ho, Wo = 2 * H, 2 * W

    x0 = jnp.transpose(x0_nchw, (0, 2, 3, 1))   # NCHW -> NHWC
    x1 = jnp.transpose(x1_nchw, (0, 2, 3, 1))

    h_taps = _interp_taps(H, Ho)                        # static python taps
    a_w = jnp.asarray(_interp_matrix(W, Wo))            # (Wo, W) f32

    def kernel(x0_ref, x1_ref,
               w1a_ref, b1a_ref, w1b_ref, b1b_ref,      # RCU1 conv1 / conv2
               w2a_ref, b2a_ref, w2b_ref, b2b_ref,      # RCU2 conv1 / conv2
               ow_ref, ob_ref,                          # out_conv (1x1)
               aw_ref,                                  # (Wo, W) interp along W
               o_ref,                                   # (1, Ho, Wo, C)
               pad_ref):                                # zero-halo staging buffer
        # Zero ONLY the halo ring; the interior is fully overwritten before
        # every conv, the ring stays the zero padding for all four convs.
        pad_ref[0:1, :, :] = jnp.zeros((1, W + 2, C), jnp.float32)
        pad_ref[H + 1:H + 2, :, :] = jnp.zeros((1, W + 2, C), jnp.float32)
        pad_ref[:, 0:1, :] = jnp.zeros((H + 2, 1, C), jnp.float32)
        pad_ref[:, W + 1:W + 2, :] = jnp.zeros((H + 2, 1, C), jnp.float32)

        def conv3x3(act, w9_ref, b_ref):
            # act: (H, W, C) f32 (already activated by caller)
            # w9_ref: (9C, C) bf16, row index = (ky*3+kx)*C + cin
            # 9 accumulated K=C matmuls straight from shifted pad views; same
            # MXU cycles as one K=9C dot, no im2col buffer / extra vst traffic.
            pad_ref[1:H + 1, 1:W + 1, :] = act
            acc = jnp.zeros((H * W, C), jnp.float32)
            for k in range(9):
                ky, kx = divmod(k, 3)
                lhs = pad_ref[ky:ky + H, kx:kx + W, :].reshape(H * W, C)
                acc = acc + jnp.dot(lhs.astype(jnp.bfloat16),
                                    w9_ref[k * C:(k + 1) * C, :],
                                    preferred_element_type=jnp.float32)
            return (acc + b_ref[...]).reshape(H, W, C)

        def rcu(x, w_a, b_a, w_b, b_b):
            y1 = conv3x3(jnp.maximum(x, 0.0), w_a, b_a)
            y2 = conv3x3(jnp.maximum(y1, 0.0), w_b, b_b)
            return y2 + x

        x0v = x0_ref[0]                                  # (H, W, C)
        x1v = x1_ref[0]

        out = x0v + rcu(x1v, w1a_ref, b1a_ref, w1b_ref, b1b_ref)
        out = rcu(out, w2a_ref, b2a_ref, w2b_ref, b2b_ref)

        # 1x1 out_conv BEFORE the x2 upsample (per-pixel channel mixing commutes
        # with per-channel interpolation; align_corners=True rows sum to 1 so
        # the bias commutes too) -> 4x less out_conv work.
        v = jnp.dot(out.reshape(H * W, C).astype(jnp.bfloat16), ow_ref[...],
                    preferred_element_type=jnp.float32)
        v = (v + ob_ref[...]).reshape(H, W, C)

        # Separable bilinear x2 (align_corners=True):
        #   W direction: batched MXU matmul (batch = H), bf16 operands, f32 acc.
        aw_b = aw_ref[...].astype(jnp.bfloat16)
        awb = jnp.broadcast_to(aw_b, (H, Wo, W))          # small bf16 broadcast
        y = jnp.einsum('how,hwc->hoc', awb, v.astype(jnp.bfloat16),
                       preferred_element_type=jnp.float32)   # (H, Wo, C)
        #   H direction: static 2-tap VPU blend written straight to output rows.
        for o, (h0, h1, f) in enumerate(h_taps):
            if f == 0.0:
                row = y[h0]
            else:
                row = (1.0 - f) * y[h0] + f * y[h1]           # (Wo, C)
            o_ref[0, o, :, :] = row.astype(o_ref.dtype)

    # Constants (weights/biases/interp matrix): whole-array, single VMEM copy,
    # no block pipeline (their index would be constant anyway).
    const_spec = pl.BlockSpec(memory_space=pltpu.MemorySpace.VMEM)

    # Explicit VMEM budget: double-buffered I/O blocks + single-buffered
    # constants + pad scratch + headroom for live f32 temporaries.
    est = (
        2 * 2 * _nbytes((1, H, W, C), jnp.float32)         # x0, x1 (double buf)
        + 2 * _nbytes((1, Ho, Wo, C), jnp.float32)         # output (double buf)
        + 4 * _nbytes((9 * C, C), jnp.bfloat16)            # conv weights
        + _nbytes((C, C), jnp.bfloat16)                    # out_conv weight
        + 5 * _nbytes((1, C), jnp.float32)                 # biases
        + _nbytes((Wo, W), jnp.float32)                    # interp matrix
        + _nbytes((H + 2, W + 2, C), jnp.float32)          # pad scratch
        + 8 * _nbytes((H, W, C), jnp.float32)              # live temporaries
        + 2 * _nbytes((H, Wo, C), jnp.float32)
    )
    vmem_limit = int(min(max(2 * est, 32 * 1024 * 1024), 64 * 1024 * 1024))

    out = pl.pallas_call(
        kernel,
        out_shape=jax.ShapeDtypeStruct((N, Ho, Wo, C), jnp.float32),
        grid=(N,),
        in_specs=[
            pl.BlockSpec((1, H, W, C), lambda n: (n, 0, 0, 0)),   # x0
            pl.BlockSpec((1, H, W, C), lambda n: (n, 0, 0, 0)),   # x1
            const_spec, const_spec, const_spec, const_spec,       # RCU1 w/b
            const_spec, const_spec, const_spec, const_spec,       # RCU2 w/b
            const_spec, const_spec,                                # out_conv w/b
            const_spec,                                            # A_w
        ],
        out_specs=pl.BlockSpec((1, Ho, Wo, C), lambda n: (n, 0, 0, 0)),
        scratch_shapes=[
            pltpu.VMEM((H + 2, W + 2, C), jnp.float32),            # zero-halo pad
        ],
        compiler_params=pltpu.CompilerParams(
            dimension_semantics=("parallel",),
            vmem_limit_bytes=vmem_limit),
    )(x0, x1,
      params["rcu1_w1"], params["rcu1_b1"], params["rcu1_w2"], params["rcu1_b2"],
      params["rcu2_w1"], params["rcu2_b1"], params["rcu2_w2"], params["rcu2_b2"],
      params["out_w"], params["out_b"], a_w)

    return jnp.transpose(out, (0, 3, 1, 2))   # NHWC -> NCHW


# ------------------------------ pure-JAX reference ---------------------------

def _reference(params, x0_nchw, x1_nchw):
    """f32 reference in the exact PyTorch op order (upsample THEN out_conv)."""
    N, C, H, W = x0_nchw.shape

    def conv3x3(x, w9, b):
        w = w9.astype(jnp.float32).reshape(3, 3, C, C)     # (ky, kx, cin, cout)
        w = jnp.transpose(w, (3, 2, 0, 1))                 # (cout, cin, ky, kx)
        y = jax.lax.conv_general_dilated(
            x, w, window_strides=(1, 1), padding=((1, 1), (1, 1)),
            dimension_numbers=('NCHW', 'OIHW', 'NCHW'))
        return y + b.reshape(1, C, 1, 1)

    def rcu(x, wa, ba, wb, bb):
        y = conv3x3(jax.nn.relu(x), wa, ba)
        y = conv3x3(jax.nn.relu(y), wb, bb)
        return y + x

    out = x0_nchw + rcu(x1_nchw, params["rcu1_w1"], params["rcu1_b1"],
                        params["rcu1_w2"], params["rcu1_b2"])
    out = rcu(out, params["rcu2_w1"], params["rcu2_b1"],
              params["rcu2_w2"], params["rcu2_b2"])
    a_h = jnp.asarray(_interp_matrix(H, 2 * H))
    a_w = jnp.asarray(_interp_matrix(W, 2 * W))
    out = jnp.einsum('oh,nchw->ncow', a_h, out)
    out = jnp.einsum('pw,ncow->ncop', a_w, out)
    out = jnp.einsum('nchw,cd->ndhw', out, params["out_w"].astype(jnp.float32))
    return out + params["out_b"].reshape(1, C, 1, 1)


# --------------------------------- params ------------------------------------

def init_params(key, C):
    """Deterministic synthetic parameters.

    3x3 conv weights are stored as (9*C, C) bf16, row index = (ky*3+kx)*C + cin
    (i.e. torch (Cout, Cin, 3, 3).transpose(2, 3, 1, 0).reshape(9C, C));
    the 1x1 out_conv weight is (Cin, Cout) bf16; biases are (1, C) f32.
    """
    ks = jax.random.split(key, 10)
    s = 0.1

    def conv9(k):
        w = jax.random.normal(k, (3, 3, C, C), jnp.float32) * s   # (ky, kx, cin, cout)
        return w.reshape(9 * C, C).astype(jnp.bfloat16)

    def bias(k):
        return jax.random.normal(k, (1, C), jnp.float32) * s

    return {
        "rcu1_w1": conv9(ks[0]), "rcu1_b1": bias(ks[1]),
        "rcu1_w2": conv9(ks[2]), "rcu1_b2": bias(ks[3]),
        "rcu2_w1": conv9(ks[4]), "rcu2_b1": bias(ks[5]),
        "rcu2_w2": conv9(ks[6]), "rcu2_b2": bias(ks[7]),
        "out_w": (jax.random.normal(ks[8], (C, C), jnp.float32) * s).astype(jnp.bfloat16),
        "out_b": bias(ks[9]),
    }


if __name__ == "__main__":
    N, C, H, W = 2, 8, 8, 8
    key = jax.random.PRNGKey(0)
    k0, k1, kp = jax.random.split(key, 3)
    x0 = jax.random.normal(k0, (N, C, H, W), jnp.float32)
    x1 = jax.random.normal(k1, (N, C, H, W), jnp.float32)
    params = init_params(kp, C)

    out = jax.block_until_ready(feature_fusion_block(params, x0, x1))
    ref = jax.block_until_ready(_reference(params, x0, x1))

    assert out.shape == (N, C, 2 * H, 2 * W), out.shape
    assert bool(jnp.all(jnp.isfinite(out)))
    # bf16-matmul kernel vs f32 reference: explicit tolerance (values are O(0.5)).
    max_err = float(jnp.max(jnp.abs(out - ref)))
    assert max_err < 7e-2, f"max |kernel - f32 reference| = {max_err}"
    print("KERNEL_OK")
</pallas_src>

<mosaic_0001>
module attributes {stable_mosaic.version = 11 : i64} {
  func.func @kernel(%arg0: i32, %arg1: memref<1x8x8x8xf32, #tpu.memory_space<vmem>>, %arg2: memref<1x8x8x8xf32, #tpu.memory_space<vmem>>, %arg3: memref<72x8xbf16, #tpu.memory_space<vmem>>, %arg4: memref<1x8xf32, #tpu.memory_space<vmem>>, %arg5: memref<72x8xbf16, #tpu.memory_space<vmem>>, %arg6: memref<1x8xf32, #tpu.memory_space<vmem>>, %arg7: memref<72x8xbf16, #tpu.memory_space<vmem>>, %arg8: memref<1x8xf32, #tpu.memory_space<vmem>>, %arg9: memref<72x8xbf16, #tpu.memory_space<vmem>>, %arg10: memref<1x8xf32, #tpu.memory_space<vmem>>, %arg11: memref<8x8xbf16, #tpu.memory_space<vmem>>, %arg12: memref<1x8xf32, #tpu.memory_space<vmem>>, %arg13: memref<16x8xf32, #tpu.memory_space<vmem>>, %arg14: memref<1x16x16x8xf32, #tpu.memory_space<vmem>>, %arg15: memref<10x10x8xf32, #tpu.memory_space<vmem>>) attributes {dimension_semantics = [#tpu.dimension_semantics<parallel>], iteration_bounds = array<i64: 2>, scalar_prefetch = 0 : i64, scratch_operands = 1 : i64, tpu.core_type = #tpu.core_type<tc>, window_params = [{transform_indices = @transform_0, window_bounds = array<i64: 1, 8, 8, 8>}, {transform_indices = @transform_1, window_bounds = array<i64: 1, 8, 8, 8>}, {pipeline_mode = #tpu.pipeline_mode<synchronous>, transform_indices = @transform_2, window_bounds = array<i64: 72, 8>}, {pipeline_mode = #tpu.pipeline_mode<synchronous>, transform_indices = @transform_3, window_bounds = array<i64: 1, 8>}, {pipeline_mode = #tpu.pipeline_mode<synchronous>, transform_indices = @transform_4, window_bounds = array<i64: 72, 8>}, {pipeline_mode = #tpu.pipeline_mode<synchronous>, transform_indices = @transform_5, window_bounds = array<i64: 1, 8>}, {pipeline_mode = #tpu.pipeline_mode<synchronous>, transform_indices = @transform_6, window_bounds = array<i64: 72, 8>}, {pipeline_mode = #tpu.pipeline_mode<synchronous>, transform_indices = @transform_7, window_bounds = array<i64: 1, 8>}, {pipeline_mode = #tpu.pipeline_mode<synchronous>, transform_indices = @transform_8, window_bounds = array<i64: 72, 8>}, {pipeline_mode = #tpu.pipeline_mode<synchronous>, transform_indices = @transform_9, window_bounds = array<i64: 1, 8>}, {pipeline_mode = #tpu.pipeline_mode<synchronous>, transform_indices = @transform_10, window_bounds = array<i64: 8, 8>}, {pipeline_mode = #tpu.pipeline_mode<synchronous>, transform_indices = @transform_11, window_bounds = array<i64: 1, 8>}, {pipeline_mode = #tpu.pipeline_mode<synchronous>, transform_indices = @transform_12, window_bounds = array<i64: 16, 8>}, {transform_indices = @transform_13, window_bounds = array<i64: 1, 16, 16, 8>}]} {
    %cst = arith.constant 0.000000e+00 : f32
    %0 = vector.broadcast %cst : f32 to vector<1x10x8xf32>
    %c0 = arith.constant 0 : index
    %c0_0 = arith.constant 0 : index
    %c0_1 = arith.constant 0 : index
    %1 = vector.load %arg15[%c0, %c0_0, %c0_1] : memref<10x10x8xf32, #tpu.memory_space<vmem>>, vector<1x10x8xf32>
    tpu.vector_store %arg15[%c0, %c0_0, %c0_1], %0 {strides = array<i32>} : memref<10x10x8xf32, #tpu.memory_space<vmem>>, vector<1x10x8xf32>,
    %cst_2 = arith.constant 0.000000e+00 : f32
    %2 = vector.broadcast %cst_2 : f32 to vector<1x10x8xf32>
    %c9 = arith.constant 9 : index
    %c0_3 = arith.constant 0 : index
    %c0_4 = arith.constant 0 : index
    %3 = vector.load %arg15[%c9, %c0_3, %c0_4] : memref<10x10x8xf32, #tpu.memory_space<vmem>>, vector<1x10x8xf32>
    tpu.vector_store %arg15[%c9, %c0_3, %c0_4], %2 {strides = array<i32>} : memref<10x10x8xf32, #tpu.memory_space<vmem>>, vector<1x10x8xf32>,
    %cst_5 = arith.constant 0.000000e+00 : f32
    %4 = vector.broadcast %cst_5 : f32 to vector<10x1x8xf32>
    %c0_6 = arith.constant 0 : index
    %c0_7 = arith.constant 0 : index
    %c0_8 = arith.constant 0 : index
    %5 = vector.load %arg15[%c0_6, %c0_7, %c0_8] : memref<10x10x8xf32, #tpu.memory_space<vmem>>, vector<10x1x8xf32>
    tpu.vector_store %arg15[%c0_6, %c0_7, %c0_8], %4 {strides = array<i32>} : memref<10x10x8xf32, #tpu.memory_space<vmem>>, vector<10x1x8xf32>,
    %cst_9 = arith.constant 0.000000e+00 : f32
    %6 = vector.broadcast %cst_9 : f32 to vector<10x1x8xf32>
    %c0_10 = arith.constant 0 : index
    %c9_11 = arith.constant 9 : index
    %c0_12 = arith.constant 0 : index
    %7 = vector.load %arg15[%c0_10, %c9_11, %c0_12] : memref<10x10x8xf32, #tpu.memory_space<vmem>>, vector<10x1x8xf32>
    tpu.vector_store %arg15[%c0_10, %c9_11, %c0_12], %6 {strides = array<i32>} : memref<10x10x8xf32, #tpu.memory_space<vmem>>, vector<10x1x8xf32>,
    %c0_13 = arith.constant 0 : index
    %c0_14 = arith.constant 0 : index
    %c0_15 = arith.constant 0 : index
    %c0_16 = arith.constant 0 : index
    %8 = vector.load %arg1[%c0_13, %c0_14, %c0_15, %c0_16] : memref<1x8x8x8xf32, #tpu.memory_space<vmem>>, vector<1x8x8x8xf32>
    %9 = vector.shape_cast %8 : vector<1x8x8x8xf32> to vector<8x8x8xf32>
    %c0_17 = arith.constant 0 : index
    %c0_18 = arith.constant 0 : index
    %c0_19 = arith.constant 0 : index
    %c0_20 = arith.constant 0 : index
    %10 = vector.load %arg2[%c0_17, %c0_18, %c0_19, %c0_20] : memref<1x8x8x8xf32, #tpu.memory_space<vmem>>, vector<1x8x8x8xf32>
    %11 = vector.shape_cast %10 : vector<1x8x8x8xf32> to vector<8x8x8xf32>
    %cst_21 = arith.constant 0.000000e+00 : f32
    %12 = vector.broadcast %cst_21 : f32 to vector<8x8x8xf32>
    %13 = arith.maximumf %11, %12 : vector<8x8x8xf32>
    %c1 = arith.constant 1 : index
    %c1_22 = arith.constant 1 : index
    %c0_23 = arith.constant 0 : index
    %14 = vector.load %arg15[%c1, %c1_22, %c0_23] : memref<10x10x8xf32, #tpu.memory_space<vmem>>, vector<8x8x8xf32>
    tpu.vector_store %arg15[%c1, %c1_22, %c0_23], %13 {strides = array<i32>} : memref<10x10x8xf32, #tpu.memory_space<vmem>>, vector<8x8x8xf32>,
    %cst_24 = arith.constant 0.000000e+00 : f32
    %15 = vector.broadcast %cst_24 : f32 to vector<64x8xf32>
    %c0_25 = arith.constant 0 : index
    %c0_26 = arith.constant 0 : index
    %c0_27 = arith.constant 0 : index
    %16 = vector.load %arg15[%c0_25, %c0_26, %c0_27] : memref<10x10x8xf32, #tpu.memory_space<vmem>>, vector<8x8x8xf32>
    %17 = vector.shape_cast %16 : vector<8x8x8xf32> to vector<64x8xf32>
    %18 = arith.truncf %17 : vector<64x8xf32> to vector<64x8xbf16>
    %c0_28 = arith.constant 0 : index
    %c0_29 = arith.constant 0 : index
    %19 = vector.load %arg3[%c0_28, %c0_29] : memref<72x8xbf16, #tpu.memory_space<vmem>>, vector<8x8xbf16>
    %cst_30 = arith.constant dense<0.000000e+00> : vector<64x8xf32>
    %20 = tpu.matmul %18, %19, %cst_30 {dimension_numbers = #tpu.dot_dimension_numbers<[1], [0], [0], [1], [0, 0, 1, 1], [], []>} : vector<64x8xbf16>, vector<8x8xbf16>, vector<64x8xf32> -> vector<64x8xf32>
    %21 = arith.addf %15, %20 : vector<64x8xf32>
    %c0_31 = arith.constant 0 : index
    %c1_32 = arith.constant 1 : index
    %c0_33 = arith.constant 0 : index
    %22 = vector.load %arg15[%c0_31, %c1_32, %c0_33] : memref<10x10x8xf32, #tpu.memory_space<vmem>>, vector<8x8x8xf32>
    %23 = vector.shape_cast %22 : vector<8x8x8xf32> to vector<64x8xf32>
    %24 = arith.truncf %23 : vector<64x8xf32> to vector<64x8xbf16>
    %c8 = arith.constant 8 : index
    %c0_34 = arith.constant 0 : index
    %25 = vector.load %arg3[%c8, %c0_34] : memref<72x8xbf16, #tpu.memory_space<vmem>>, vector<8x8xbf16>
    %cst_35 = arith.constant dense<0.000000e+00> : vector<64x8xf32>
    %26 = tpu.matmul %24, %25, %cst_35 {dimension_numbers = #tpu.dot_dimension_numbers<[1], [0], [0], [1], [0, 0, 1, 1], [], []>} : vector<64x8xbf16>, vector<8x8xbf16>, vector<64x8xf32> -> vector<64x8xf32>
    %27 = arith.addf %21, %26 : vector<64x8xf32>
    %c0_36 = arith.constant 0 : index
    %c2 = arith.constant 2 : index
    %c0_37 = arith.constant 0 : index
    %28 = vector.load %arg15[%c0_36, %c2, %c0_37] : memref<10x10x8xf32, #tpu.memory_space<vmem>>, vector<8x8x8xf32>
    %29 = vector.shape_cast %28 : vector<8x8x8xf32> to vector<64x8xf32>
    %30 = arith.truncf %29 : vector<64x8xf32> to vector<64x8xbf16>
    %c16 = arith.constant 16 : index
    %c0_38 = arith.constant 0 : index
    %31 = vector.load %arg3[%c16, %c0_38] : memref<72x8xbf16, #tpu.memory_space<vmem>>, vector<8x8xbf16>
    %cst_39 = arith.constant dense<0.000000e+00> : vector<64x8xf32>
    %32 = tpu.matmul %30, %31, %cst_39 {dimension_numbers = #tpu.dot_dimension_numbers<[1], [0], [0], [1], [0, 0, 1, 1], [], []>} : vector<64x8xbf16>, vector<8x8xbf16>, vector<64x8xf32> -> vector<64x8xf32>
    %33 = arith.addf %27, %32 : vector<64x8xf32>
    %c1_40 = arith.constant 1 : index
    %c0_41 = arith.constant 0 : index
    %c0_42 = arith.constant 0 : index
    %34 = vector.load %arg15[%c1_40, %c0_41, %c0_42] : memref<10x10x8xf32, #tpu.memory_space<vmem>>, vector<8x8x8xf32>
    %35 = vector.shape_cast %34 : vector<8x8x8xf32> to vector<64x8xf32>
    %36 = arith.truncf %35 : vector<64x8xf32> to vector<64x8xbf16>
    %c24 = arith.constant 24 : index
    %c0_43 = arith.constant 0 : index
    %37 = vector.load %arg3[%c24, %c0_43] : memref<72x8xbf16, #tpu.memory_space<vmem>>, vector<8x8xbf16>
    %cst_44 = arith.constant dense<0.000000e+00> : vector<64x8xf32>
    %38 = tpu.matmul %36, %37, %cst_44 {dimension_numbers = #tpu.dot_dimension_numbers<[1], [0], [0], [1], [0, 0, 1, 1], [], []>} : vector<64x8xbf16>, vector<8x8xbf16>, vector<64x8xf32> -> vector<64x8xf32>
    %39 = arith.addf %33, %38 : vector<64x8xf32>
    %c1_45 = arith.constant 1 : index
    %c1_46 = arith.constant 1 : index
    %c0_47 = arith.constant 0 : index
    %40 = vector.load %arg15[%c1_45, %c1_46, %c0_47] : memref<10x10x8xf32, #tpu.memory_space<vmem>>, vector<8x8x8xf32>
    %41 = vector.shape_cast %40 : vector<8x8x8xf32> to vector<64x8xf32>
    %42 = arith.truncf %41 : vector<64x8xf32> to vector<64x8xbf16>
    %c32 = arith.constant 32 : index
    %c0_48 = arith.constant 0 : index
    %43 = vector.load %arg3[%c32, %c0_48] : memref<72x8xbf16, #tpu.memory_space<vmem>>, vector<8x8xbf16>
    %cst_49 = arith.constant dense<0.000000e+00> : vector<64x8xf32>
    %44 = tpu.matmul %42, %43, %cst_49 {dimension_numbers = #tpu.dot_dimension_numbers<[1], [0], [0], [1], [0, 0, 1, 1], [], []>} : vector<64x8xbf16>, vector<8x8xbf16>, vector<64x8xf32> -> vector<64x8xf32>
    %45 = arith.addf %39, %44 : vector<64x8xf32>
    %c1_50 = arith.constant 1 : index
    %c2_51 = arith.constant 2 : index
    %c0_52 = arith.constant 0 : index
    %46 = vector.load %arg15[%c1_50, %c2_51, %c0_52] : memref<10x10x8xf32, #tpu.memory_space<vmem>>, vector<8x8x8xf32>
    %47 = vector.shape_cast %46 : vector<8x8x8xf32> to vector<64x8xf32>
    %48 = arith.truncf %47 : vector<64x8xf32> to vector<64x8xbf16>
    %c40 = arith.constant 40 : index
    %c0_53 = arith.constant 0 : index
    %49 = vector.load %arg3[%c40, %c0_53] : memref<72x8xbf16, #tpu.memory_space<vmem>>, vector<8x8xbf16>
    %cst_54 = arith.constant dense<0.000000e+00> : vector<64x8xf32>
    %50 = tpu.matmul %48, %49, %cst_54 {dimension_numbers = #tpu.dot_dimension_numbers<[1], [0], [0], [1], [0, 0, 1, 1], [], []>} : vector<64x8xbf16>, vector<8x8xbf16>, vector<64x8xf32> -> vector<64x8xf32>
    %51 = arith.addf %45, %50 : vector<64x8xf32>
    %c2_55 = arith.constant 2 : index
    %c0_56 = arith.constant 0 : index
    %c0_57 = arith.constant 0 : index
    %52 = vector.load %arg15[%c2_55, %c0_56, %c0_57] : memref<10x10x8xf32, #tpu.memory_space<vmem>>, vector<8x8x8xf32>
    %53 = vector.shape_cast %52 : vector<8x8x8xf32> to vector<64x8xf32>
    %54 = arith.truncf %53 : vector<64x8xf32> to vector<64x8xbf16>
    %c48 = arith.constant 48 : index
    %c0_58 = arith.constant 0 : index
    %55 = vector.load %arg3[%c48, %c0_58] : memref<72x8xbf16, #tpu.memory_space<vmem>>, vector<8x8xbf16>
    %cst_59 = arith.constant dense<0.000000e+00> : vector<64x8xf32>
    %56 = tpu.matmul %54, %55, %cst_59 {dimension_numbers = #tpu.dot_dimension_numbers<[1], [0], [0], [1], [0, 0, 1, 1], [], []>} : vector<64x8xbf16>, vector<8x8xbf16>, vector<64x8xf32> -> vector<64x8xf32>
    %57 = arith.addf %51, %56 : vector<64x8xf32>
    %c2_60 = arith.constant 2 : index
    %c1_61 = arith.constant 1 : index
    %c0_62 = arith.constant 0 : index
    %58 = vector.load %arg15[%c2_60, %c1_61, %c0_62] : memref<10x10x8xf32, #tpu.memory_space<vmem>>, vector<8x8x8xf32>
    %59 = vector.shape_cast %58 : vector<8x8x8xf32> to vector<64x8xf32>
    %60 = arith.truncf %59 : vector<64x8xf32> to vector<64x8xbf16>
    %c56 = arith.constant 56 : index
    %c0_63 = arith.constant 0 : index
    %61 = vector.load %arg3[%c56, %c0_63] : memref<72x8xbf16, #tpu.memory_space<vmem>>, vector<8x8xbf16>
    %cst_64 = arith.constant dense<0.000000e+00> : vector<64x8xf32>
    %62 = tpu.matmul %60, %61, %cst_64 {dimension_numbers = #tpu.dot_dimension_numbers<[1], [0], [0], [1], [0, 0, 1, 1], [], []>} : vector<64x8xbf16>, vector<8x8xbf16>, vector<64x8xf32> -> vector<64x8xf32>
    %63 = arith.addf %57, %62 : vector<64x8xf32>
    %c2_65 = arith.constant 2 : index
    %c2_66 = arith.constant 2 : index
    %c0_67 = arith.constant 0 : index
    %64 = vector.load %arg15[%c2_65, %c2_66, %c0_67] : memref<10x10x8xf32, #tpu.memory_space<vmem>>, vector<8x8x8xf32>
    %65 = vector.shape_cast %64 : vector<8x8x8xf32> to vector<64x8xf32>
    %66 = arith.truncf %65 : vector<64x8xf32> to vector<64x8xbf16>
    %c64 = arith.constant 64 : index
    %c0_68 = arith.constant 0 : index
    %67 = vector.load %arg3[%c64, %c0_68] : memref<72x8xbf16, #tpu.memory_space<vmem>>, vector<8x8xbf16>
    %cst_69 = arith.constant dense<0.000000e+00> : vector<64x8xf32>
    %68 = tpu.matmul %66, %67, %cst_69 {dimension_numbers = #tpu.dot_dimension_numbers<[1], [0], [0], [1], [0, 0, 1, 1], [], []>} : vector<64x8xbf16>, vector<8x8xbf16>, vector<64x8xf32> -> vector<64x8xf32>
    %69 = arith.addf %63, %68 : vector<64x8xf32>
    %c0_70 = arith.constant 0 : index
    %c0_71 = arith.constant 0 : index
    %70 = vector.load %arg4[%c0_70, %c0_71] : memref<1x8xf32, #tpu.memory_space<vmem>>, vector<1x8xf32>
    %71 = vector.broadcast %70 : vector<1x8xf32> to vector<64x8xf32>
    %72 = arith.addf %69, %71 : vector<64x8xf32>
    %73 = vector.shape_cast %72 : vector<64x8xf32> to vector<8x8x8xf32>
    %cst_72 = arith.constant 0.000000e+00 : f32
    %74 = vector.broadcast %cst_72 : f32 to vector<8x8x8xf32>
    %75 = arith.maximumf %73, %74 : vector<8x8x8xf32>
    %c1_73 = arith.constant 1 : index
    %c1_74 = arith.constant 1 : index
    %c0_75 = arith.constant 0 : index
    %76 = vector.load %arg15[%c1_73, %c1_74, %c0_75] : memref<10x10x8xf32, #tpu.memory_space<vmem>>, vector<8x8x8xf32>
    tpu.vector_store %arg15[%c1_73, %c1_74, %c0_75], %75 {strides = array<i32>} : memref<10x10x8xf32, #tpu.memory_space<vmem>>, vector<8x8x8xf32>,
    %cst_76 = arith.constant 0.000000e+00 : f32
    %77 = vector.broadcast %cst_76 : f32 to vector<64x8xf32>
    %c0_77 = arith.constant 0 : index
    %c0_78 = arith.constant 0 : index
    %c0_79 = arith.constant 0 : index
    %78 = vector.load %arg15[%c0_77, %c0_78, %c0_79] : memref<10x10x8xf32, #tpu.memory_space<vmem>>, vector<8x8x8xf32>
    %79 = vector.shape_cast %78 : vector<8x8x8xf32> to vector<64x8xf32>
    %80 = arith.truncf %79 : vector<64x8xf32> to vector<64x8xbf16>
    %c0_80 = arith.constant 0 : index
    %c0_81 = arith.constant 0 : index
    %81 = vector.load %arg5[%c0_80, %c0_81] : memref<72x8xbf16, #tpu.memory_space<vmem>>, vector<8x8xbf16>
    %cst_82 = arith.constant dense<0.000000e+00> : vector<64x8xf32>
    %82 = tpu.matmul %80, %81, %cst_82 {dimension_numbers = #tpu.dot_dimension_numbers<[1], [0], [0], [1], [0, 0, 1, 1], [], []>} : vector<64x8xbf16>, vector<8x8xbf16>, vector<64x8xf32> -> vector<64x8xf32>
    %83 = arith.addf %77, %82 : vector<64x8xf32>
    %c0_83 = arith.constant 0 : index
    %c1_84 = arith.constant 1 : index
    %c0_85 = arith.constant 0 : index
    %84 = vector.load %arg15[%c0_83, %c1_84, %c0_85] : memref<10x10x8xf32, #tpu.memory_space<vmem>>, vector<8x8x8xf32>
    %85 = vector.shape_cast %84 : vector<8x8x8xf32> to vector<64x8xf32>
    %86 = arith.truncf %85 : vector<64x8xf32> to vector<64x8xbf16>
    %c8_86 = arith.constant 8 : index
    %c0_87 = arith.constant 0 : index
    %87 = vector.load %arg5[%c8_86, %c0_87] : memref<72x8xbf16, #tpu.memory_space<vmem>>, vector<8x8xbf16>
    %cst_88 = arith.constant dense<0.000000e+00> : vector<64x8xf32>
    %88 = tpu.matmul %86, %87, %cst_88 {dimension_numbers = #tpu.dot_dimension_numbers<[1], [0], [0], [1], [0, 0, 1, 1], [], []>} : vector<64x8xbf16>, vector<8x8xbf16>, vector<64x8xf32> -> vector<64x8xf32>
    %89 = arith.addf %83, %88 : vector<64x8xf32>
    %c0_89 = arith.constant 0 : index
    %c2_90 = arith.constant 2 : index
    %c0_91 = arith.constant 0 : index
    %90 = vector.load %arg15[%c0_89, %c2_90, %c0_91] : memref<10x10x8xf32, #tpu.memory_space<vmem>>, vector<8x8x8xf32>
    %91 = vector.shape_cast %90 : vector<8x8x8xf32> to vector<64x8xf32>
    %92 = arith.truncf %91 : vector<64x8xf32> to vector<64x8xbf16>
    %c16_92 = arith.constant 16 : index
    %c0_93 = arith.constant 0 : index
    %93 = vector.load %arg5[%c16_92, %c0_93] : memref<72x8xbf16, #tpu.memory_space<vmem>>, vector<8x8xbf16>
    %cst_94 = arith.constant dense<0.000000e+00> : vector<64x8xf32>
    %94 = tpu.matmul %92, %93, %cst_94 {dimension_numbers = #tpu.dot_dimension_numbers<[1], [0], [0], [1], [0, 0, 1, 1], [], []>} : vector<64x8xbf16>, vector<8x8xbf16>, vector<64x8xf32> -> vector<64x8xf32>
    %95 = arith.addf %89, %94 : vector<64x8xf32>
    %c1_95 = arith.constant 1 : index
    %c0_96 = arith.constant 0 : index
    %c0_97 = arith.constant 0 : index
    %96 = vector.load %arg15[%c1_95, %c0_96, %c0_97] : memref<10x10x8xf32, #tpu.memory_space<vmem>>, vector<8x8x8xf32>
    %97 = vector.shape_cast %96 : vector<8x8x8xf32> to vector<64x8xf32>
    %98 = arith.truncf %97 : vector<64x8xf32> to vector<64x8xbf16>
    %c24_98 = arith.constant 24 : index
    %c0_99 = arith.constant 0 : index
    %99 = vector.load %arg5[%c24_98, %c0_99] : memref<72x8xbf16, #tpu.memory_space<vmem>>, vector<8x8xbf16>
    %cst_100 = arith.constant dense<0.000000e+00> : vector<64x8xf32>
    %100 = tpu.matmul %98, %99, %cst_100 {dimension_numbers = #tpu.dot_dimension_numbers<[1], [0], [0], [1], [0, 0, 1, 1], [], []>} : vector<64x8xbf16>, vector<8x8xbf16>, vector<64x8xf32> -> vector<64x8xf32>
    %101 = arith.addf %95, %100 : vector<64x8xf32>
    %c1_101 = arith.constant 1 : index
    %c1_102 = arith.constant 1 : index
    %c0_103 = arith.constant 0 : index
    %102 = vector.load %arg15[%c1_101, %c1_102, %c0_103] : memref<10x10x8xf32, #tpu.memory_space<vmem>>, vector<8x8x8xf32>
    %103 = vector.shape_cast %102 : vector<8x8x8xf32> to vector<64x8xf32>
    %104 = arith.truncf %103 : vector<64x8xf32> to vector<64x8xbf16>
    %c32_104 = arith.constant 32 : index
    %c0_105 = arith.constant 0 : index
    %105 = vector.load %arg5[%c32_104, %c0_105] : memref<72x8xbf16, #tpu.memory_space<vmem>>, vector<8x8xbf16>
    %cst_106 = arith.constant dense<0.000000e+00> : vector<64x8xf32>
    %106 = tpu.matmul %104, %105, %cst_106 {dimension_numbers = #tpu.dot_dimension_numbers<[1], [0], [0], [1], [0, 0, 1, 1], [], []>} : vector<64x8xbf16>, vector<8x8xbf16>, vector<64x8xf32> -> vector<64x8xf32>
    %107 = arith.addf %101, %106 : vector<64x8xf32>
    %c1_107 = arith.constant 1 : index
    %c2_108 = arith.constant 2 : index
    %c0_109 = arith.constant 0 : index
    %108 = vector.load %arg15[%c1_107, %c2_108, %c0_109] : memref<10x10x8xf32, #tpu.memory_space<vmem>>, vector<8x8x8xf32>
    %109 = vector.shape_cast %108 : vector<8x8x8xf32> to vector<64x8xf32>
    %110 = arith.truncf %109 : vector<64x8xf32> to vector<64x8xbf16>
    %c40_110 = arith.constant 40 : index
    %c0_111 = arith.constant 0 : index
    %111 = vector.load %arg5[%c40_110, %c0_111] : memref<72x8xbf16, #tpu.memory_space<vmem>>, vector<8x8xbf16>
    %cst_112 = arith.constant dense<0.000000e+00> : vector<64x8xf32>
    %112 = tpu.matmul %110, %111, %cst_112 {dimension_numbers = #tpu.dot_dimension_numbers<[1], [0], [0], [1], [0, 0, 1, 1], [], []>} : vector<64x8xbf16>, vector<8x8xbf16>, vector<64x8xf32> -> vector<64x8xf32>
    %113 = arith.addf %107, %112 : vector<64x8xf32>
    %c2_113 = arith.constant 2 : index
    %c0_114 = arith.constant 0 : index
    %c0_115 = arith.constant 0 : index
    %114 = vector.load %arg15[%c2_113, %c0_114, %c0_115] : memref<10x10x8xf32, #tpu.memory_space<vmem>>, vector<8x8x8xf32>
    %115 = vector.shape_cast %114 : vector<8x8x8xf32> to vector<64x8xf32>
    %116 = arith.truncf %115 : vector<64x8xf32> to vector<64x8xbf16>
    %c48_116 = arith.constant 48 : index
    %c0_117 = arith.constant 0 : index
    %117 = vector.load %arg5[%c48_116, %c0_117] : memref<72x8xbf16, #tpu.memory_space<vmem>>, vector<8x8xbf16>
    %cst_118 = arith.constant dense<0.000000e+00> : vector<64x8xf32>
    %118 = tpu.matmul %116, %117, %cst_118 {dimension_numbers = #tpu.dot_dimension_numbers<[1], [0], [0], [1], [0, 0, 1, 1], [], []>} : vector<64x8xbf16>, vector<8x8xbf16>, vector<64x8xf32> -> vector<64x8xf32>
    %119 = arith.addf %113, %118 : vector<64x8xf32>
    %c2_119 = arith.constant 2 : index
    %c1_120 = arith.constant 1 : index
    %c0_121 = arith.constant 0 : index
    %120 = vector.load %arg15[%c2_119, %c1_120, %c0_121] : memref<10x10x8xf32, #tpu.memory_space<vmem>>, vector<8x8x8xf32>
    %121 = vector.shape_cast %120 : vector<8x8x8xf32> to vector<64x8xf32>
    %122 = arith.truncf %121 : vector<64x8xf32> to vector<64x8xbf16>
    %c56_122 = arith.constant 56 : index
    %c0_123 = arith.constant 0 : index
    %123 = vector.load %arg5[%c56_122, %c0_123] : memref<72x8xbf16, #tpu.memory_space<vmem>>, vector<8x8xbf16>
    %cst_124 = arith.constant dense<0.000000e+00> : vector<64x8xf32>
    %124 = tpu.matmul %122, %123, %cst_124 {dimension_numbers = #tpu.dot_dimension_numbers<[1], [0], [0], [1], [0, 0, 1, 1], [], []>} : vector<64x8xbf16>, vector<8x8xbf16>, vector<64x8xf32> -> vector<64x8xf32>
    %125 = arith.addf %119, %124 : vector<64x8xf32>
    %c2_125 = arith.constant 2 : index
    %c2_126 = arith.constant 2 : index
    %c0_127 = arith.constant 0 : index
    %126 = vector.load %arg15[%c2_125, %c2_126, %c0_127] : memref<10x10x8xf32, #tpu.memory_space<vmem>>, vector<8x8x8xf32>
    %127 = vector.shape_cast %126 : vector<8x8x8xf32> to vector<64x8xf32>
    %128 = arith.truncf %127 : vector<64x8xf32> to vector<64x8xbf16>
    %c64_128 = arith.constant 64 : index
    %c0_129 = arith.constant 0 : index
    %129 = vector.load %arg5[%c64_128, %c0_129] : memref<72x8xbf16, #tpu.memory_space<vmem>>, vector<8x8xbf16>
    %cst_130 = arith.constant dense<0.000000e+00> : vector<64x8xf32>
    %130 = tpu.matmul %128, %129, %cst_130 {dimension_numbers = #tpu.dot_dimension_numbers<[1], [0], [0], [1], [0, 0, 1, 1], [], []>} : vector<64x8xbf16>, vector<8x8xbf16>, vector<64x8xf32> -> vector<64x8xf32>
    %131 = arith.addf %125, %130 : vector<64x8xf32>
    %c0_131 = arith.constant 0 : index
    %c0_132 = arith.constant 0 : index
    %132 = vector.load %arg6[%c0_131, %c0_132] : memref<1x8xf32, #tpu.memory_space<vmem>>, vector<1x8xf32>
    %133 = vector.broadcast %132 : vector<1x8xf32> to vector<64x8xf32>
    %134 = arith.addf %131, %133 : vector<64x8xf32>
    %135 = vector.shape_cast %134 : vector<64x8xf32> to vector<8x8x8xf32>
    %136 = arith.addf %135, %11 : vector<8x8x8xf32>
    %137 = arith.addf %9, %136 : vector<8x8x8xf32>
    %cst_133 = arith.constant 0.000000e+00 : f32
    %138 = vector.broadcast %cst_133 : f32 to vector<8x8x8xf32>
    %139 = arith.maximumf %137, %138 : vector<8x8x8xf32>
    %c1_134 = arith.constant 1 : index
    %c1_135 = arith.constant 1 : index
    %c0_136 = arith.constant 0 : index
    %140 = vector.load %arg15[%c1_134, %c1_135, %c0_136] : memref<10x10x8xf32, #tpu.memory_space<vmem>>, vector<8x8x8xf32>
    tpu.vector_store %arg15[%c1_134, %c1_135, %c0_136], %139 {strides = array<i32>} : memref<10x10x8xf32, #tpu.memory_space<vmem>>, vector<8x8x8xf32>,
    %cst_137 = arith.constant 0.000000e+00 : f32
    %141 = vector.broadcast %cst_137 : f32 to vector<64x8xf32>
    %c0_138 = arith.constant 0 : index
    %c0_139 = arith.constant 0 : index
    %c0_140 = arith.constant 0 : index
    %142 = vector.load %arg15[%c0_138, %c0_139, %c0_140] : memref<10x10x8xf32, #tpu.memory_space<vmem>>, vector<8x8x8xf32>
    %143 = vector.shape_cast %142 : vector<8x8x8xf32> to vector<64x8xf32>
    %144 = arith.truncf %143 : vector<64x8xf32> to vector<64x8xbf16>
    %c0_141 = arith.constant 0 : index
    %c0_142 = arith.constant 0 : index
    %145 = vector.load %arg7[%c0_141, %c0_142] : memref<72x8xbf16, #tpu.memory_space<vmem>>, vector<8x8xbf16>
    %cst_143 = arith.constant dense<0.000000e+00> : vector<64x8xf32>
    %146 = tpu.matmul %144, %145, %cst_143 {dimension_numbers = #tpu.dot_dimension_numbers<[1], [0], [0], [1], [0, 0, 1, 1], [], []>} : vector<64x8xbf16>, vector<8x8xbf16>, vector<64x8xf32> -> vector<64x8xf32>
    %147 = arith.addf %141, %146 : vector<64x8xf32>
    %c0_144 = arith.constant 0 : index
    %c1_145 = arith.constant 1 : index
    %c0_146 = arith.constant 0 : index
    %148 = vector.load %arg15[%c0_144, %c1_145, %c0_146] : memref<10x10x8xf32, #tpu.memory_space<vmem>>, vector<8x8x8xf32>
    %149 = vector.shape_cast %148 : vector<8x8x8xf32> to vector<64x8xf32>
    %150 = arith.truncf %149 : vector<64x8xf32> to vector<64x8xbf16>
    %c8_147 = arith.constant 8 : index
    %c0_148 = arith.constant 0 : index
    %151 = vector.load %arg7[%c8_147, %c0_148] : memref<72x8xbf16, #tpu.memory_space<vmem>>, vector<8x8xbf16>
    %cst_149 = arith.constant dense<0.000000e+00> : vector<64x8xf32>
    %152 = tpu.matmul %150, %151, %cst_149 {dimension_numbers = #tpu.dot_dimension_numbers<[1], [0], [0], [1], [0, 0, 1, 1], [], []>} : vector<64x8xbf16>, vector<8x8xbf16>, vector<64x8xf32> -> vector<64x8xf32>
    %153 = arith.addf %147, %152 : vector<64x8xf32>
    %c0_150 = arith.constant 0 : index
    %c2_151 = arith.constant 2 : index
    %c0_152 = arith.constant 0 : index
    %154 = vector.load %arg15[%c0_150, %c2_151, %c0_152] : memref<10x10x8xf32, #tpu.memory_space<vmem>>, vector<8x8x8xf32>
    %155 = vector.shape_cast %154 : vector<8x8x8xf32> to vector<64x8xf32>
    %156 = arith.truncf %155 : vector<64x8xf32> to vector<64x8xbf16>
    %c16_153 = arith.constant 16 : index
    %c0_154 = arith.constant 0 : index
    %157 = vector.load %arg7[%c16_153, %c0_154] : memref<72x8xbf16, #tpu.memory_space<vmem>>, vector<8x8xbf16>
    %cst_155 = arith.constant dense<0.000000e+00> : vector<64x8xf32>
    %158 = tpu.matmul %156, %157, %cst_155 {dimension_numbers = #tpu.dot_dimension_numbers<[1], [0], [0], [1], [0, 0, 1, 1], [], []>} : vector<64x8xbf16>, vector<8x8xbf16>, vector<64x8xf32> -> vector<64x8xf32>
    %159 = arith.addf %153, %158 : vector<64x8xf32>
    %c1_156 = arith.constant 1 : index
    %c0_157 = arith.constant 0 : index
    %c0_158 = arith.constant 0 : index
    %160 = vector.load %arg15[%c1_156, %c0_157, %c0_158] : memref<10x10x8xf32, #tpu.memory_space<vmem>>, vector<8x8x8xf32>
    %161 = vector.shape_cast %160 : vector<8x8x8xf32> to vector<64x8xf32>
    %162 = arith.truncf %161 : vector<64x8xf32> to vector<64x8xbf16>
    %c24_159 = arith.constant 24 : index
    %c0_160 = arith.constant 0 : index
    %163 = vector.load %arg7[%c24_159, %c0_160] : memref<72x8xbf16, #tpu.memory_space<vmem>>, vector<8x8xbf16>
    %cst_161 = arith.constant dense<0.000000e+00> : vector<64x8xf32>
    %164 = tpu.matmul %162, %163, %cst_161 {dimension_numbers = #tpu.dot_dimension_numbers<[1], [0], [0], [1], [0, 0, 1, 1], [], []>} : vector<64x8xbf16>, vector<8x8xbf16>, vector<64x8xf32> -> vector<64x8xf32>
    %165 = arith.addf %159, %164 : vector<64x8xf32>
    %c1_162 = arith.constant 1 : index
    %c1_163 = arith.constant 1 : index
    %c0_164 = arith.constant 0 : index
    %166 = vector.load %arg15[%c1_162, %c1_163, %c0_164] : memref<10x10x8xf32, #tpu.memory_space<vmem>>, vector<8x8x8xf32>
    %167 = vector.shape_cast %166 : vector<8x8x8xf32> to vector<64x8xf32>
    %168 = arith.truncf %167 : vector<64x8xf32> to vector<64x8xbf16>
    %c32_165 = arith.constant 32 : index
    %c0_166 = arith.constant 0 : index
    %169 = vector.load %arg7[%c32_165, %c0_166] : memref<72x8xbf16, #tpu.memory_space<vmem>>, vector<8x8xbf16>
    %cst_167 = arith.constant dense<0.000000e+00> : vector<64x8xf32>
    %170 = tpu.matmul %168, %169, %cst_167 {dimension_numbers = #tpu.dot_dimension_numbers<[1], [0], [0], [1], [0, 0, 1, 1], [], []>} : vector<64x8xbf16>, vector<8x8xbf16>, vector<64x8xf32> -> vector<64x8xf32>
    %171 = arith.addf %165, %170 : vector<64x8xf32>
    %c1_168 = arith.constant 1 : index
    %c2_169 = arith.constant 2 : index
    %c0_170 = arith.constant 0 : index
    %172 = vector.load %arg15[%c1_168, %c2_169, %c0_170] : memref<10x10x8xf32, #tpu.memory_space<vmem>>, vector<8x8x8xf32>
    %173 = vector.shape_cast %172 : vector<8x8x8xf32> to vector<64x8xf32>
    %174 = arith.truncf %173 : vector<64x8xf32> to vector<64x8xbf16>
    %c40_171 = arith.constant 40 : index
    %c0_172 = arith.constant 0 : index
    %175 = vector.load %arg7[%c40_171, %c0_172] : memref<72x8xbf16, #tpu.memory_space<vmem>>, vector<8x8xbf16>
    %cst_173 = arith.constant dense<0.000000e+00> : vector<64x8xf32>
    %176 = tpu.matmul %174, %175, %cst_173 {dimension_numbers = #tpu.dot_dimension_numbers<[1], [0], [0], [1], [0, 0, 1, 1], [], []>} : vector<64x8xbf16>, vector<8x8xbf16>, vector<64x8xf32> -> vector<64x8xf32>
    %177 = arith.addf %171, %176 : vector<64x8xf32>
    %c2_174 = arith.constant 2 : index
    %c0_175 = arith.constant 0 : index
    %c0_176 = arith.constant 0 : index
    %178 = vector.load %arg15[%c2_174, %c0_175, %c0_176] : memref<10x10x8xf32, #tpu.memory_space<vmem>>, vector<8x8x8xf32>
    %179 = vector.shape_cast %178 : vector<8x8x8xf32> to vector<64x8xf32>
    %180 = arith.truncf %179 : vector<64x8xf32> to vector<64x8xbf16>
    %c48_177 = arith.constant 48 : index
    %c0_178 = arith.constant 0 : index
    %181 = vector.load %arg7[%c48_177, %c0_178] : memref<72x8xbf16, #tpu.memory_space<vmem>>, vector<8x8xbf16>
    %cst_179 = arith.constant dense<0.000000e+00> : vector<64x8xf32>
    %182 = tpu.matmul %180, %181, %cst_179 {dimension_numbers = #tpu.dot_dimension_numbers<[1], [0], [0], [1], [0, 0, 1, 1], [], []>} : vector<64x8xbf16>, vector<8x8xbf16>, vector<64x8xf32> -> vector<64x8xf32>
    %183 = arith.addf %177, %182 : vector<64x8xf32>
    %c2_180 = arith.constant 2 : index
    %c1_181 = arith.constant 1 : index
    %c0_182 = arith.constant 0 : index
    %184 = vector.load %arg15[%c2_180, %c1_181, %c0_182] : memref<10x10x8xf32, #tpu.memory_space<vmem>>, vector<8x8x8xf32>
    %185 = vector.shape_cast %184 : vector<8x8x8xf32> to vector<64x8xf32>
    %186 = arith.truncf %185 : vector<64x8xf32> to vector<64x8xbf16>
    %c56_183 = arith.constant 56 : index
    %c0_184 = arith.constant 0 : index
    %187 = vector.load %arg7[%c56_183, %c0_184] : memref<72x8xbf16, #tpu.memory_space<vmem>>, vector<8x8xbf16>
    %cst_185 = arith.constant dense<0.000000e+00> : vector<64x8xf32>
    %188 = tpu.matmul %186, %187, %cst_185 {dimension_numbers = #tpu.dot_dimension_numbers<[1], [0], [0], [1], [0, 0, 1, 1], [], []>} : vector<64x8xbf16>, vector<8x8xbf16>, vector<64x8xf32> -> vector<64x8xf32>
    %189 = arith.addf %183, %188 : vector<64x8xf32>
    %c2_186 = arith.constant 2 : index
    %c2_187 = arith.constant 2 : index
    %c0_188 = arith.constant 0 : index
    %190 = vector.load %arg15[%c2_186, %c2_187, %c0_188] : memref<10x10x8xf32, #tpu.memory_space<vmem>>, vector<8x8x8xf32>
    %191 = vector.shape_cast %190 : vector<8x8x8xf32> to vector<64x8xf32>
    %192 = arith.truncf %191 : vector<64x8xf32> to vector<64x8xbf16>
    %c64_189 = arith.constant 64 : index
    %c0_190 = arith.constant 0 : index
    %193 = vector.load %arg7[%c64_189, %c0_190] : memref<72x8xbf16, #tpu.memory_space<vmem>>, vector<8x8xbf16>
    %cst_191 = arith.constant dense<0.000000e+00> : vector<64x8xf32>
    %194 = tpu.matmul %192, %193, %cst_191 {dimension_numbers = #tpu.dot_dimension_numbers<[1], [0], [0], [1], [0, 0, 1, 1], [], []>} : vector<64x8xbf16>, vector<8x8xbf16>, vector<64x8xf32> -> vector<64x8xf32>
    %195 = arith.addf %189, %194 : vector<64x8xf32>
    %c0_192 = arith.constant 0 : index
    %c0_193 = arith.constant 0 : index
    %196 = vector.load %arg8[%c0_192, %c0_193] : memref<1x8xf32, #tpu.memory_space<vmem>>, vector<1x8xf32>
    %197 = vector.broadcast %196 : vector<1x8xf32> to vector<64x8xf32>
    %198 = arith.addf %195, %197 : vector<64x8xf32>
    %199 = vector.shape_cast %198 : vector<64x8xf32> to vector<8x8x8xf32>
    %cst_194 = arith.constant 0.000000e+00 : f32
    %200 = vector.broadcast %cst_194 : f32 to vector<8x8x8xf32>
    %201 = arith.maximumf %199, %200 : vector<8x8x8xf32>
    %c1_195 = arith.constant 1 : index
    %c1_196 = arith.constant 1 : index
    %c0_197 = arith.constant 0 : index
    %202 = vector.load %arg15[%c1_195, %c1_196, %c0_197] : memref<10x10x8xf32, #tpu.memory_space<vmem>>, vector<8x8x8xf32>
    tpu.vector_store %arg15[%c1_195, %c1_196, %c0_197], %201 {strides = array<i32>} : memref<10x10x8xf32, #tpu.memory_space<vmem>>, vector<8x8x8xf32>,
    %cst_198 = arith.constant 0.000000e+00 : f32
    %203 = vector.broadcast %cst_198 : f32 to vector<64x8xf32>
    %c0_199 = arith.constant 0 : index
    %c0_200 = arith.constant 0 : index
    %c0_201 = arith.constant 0 : index
    %204 = vector.load %arg15[%c0_199, %c0_200, %c0_201] : memref<10x10x8xf32, #tpu.memory_space<vmem>>, vector<8x8x8xf32>
    %205 = vector.shape_cast %204 : vector<8x8x8xf32> to vector<64x8xf32>
    %206 = arith.truncf %205 : vector<64x8xf32> to vector<64x8xbf16>
    %c0_202 = arith.constant 0 : index
    %c0_203 = arith.constant 0 : index
    %207 = vector.load %arg9[%c0_202, %c0_203] : memref<72x8xbf16, #tpu.memory_space<vmem>>, vector<8x8xbf16>
    %cst_204 = arith.constant dense<0.000000e+00> : vector<64x8xf32>
    %208 = tpu.matmul %206, %207, %cst_204 {dimension_numbers = #tpu.dot_dimension_numbers<[1], [0], [0], [1], [0, 0, 1, 1], [], []>} : vector<64x8xbf16>, vector<8x8xbf16>, vector<64x8xf32> -> vector<64x8xf32>
    %209 = arith.addf %203, %208 : vector<64x8xf32>
    %c0_205 = arith.constant 0 : index
    %c1_206 = arith.constant 1 : index
    %c0_207 = arith.constant 0 : index
    %210 = vector.load %arg15[%c0_205, %c1_206, %c0_207] : memref<10x10x8xf32, #tpu.memory_space<vmem>>, vector<8x8x8xf32>
    %211 = vector.shape_cast %210 : vector<8x8x8xf32> to vector<64x8xf32>
    %212 = arith.truncf %211 : vector<64x8xf32> to vector<64x8xbf16>
    %c8_208 = arith.constant 8 : index
    %c0_209 = arith.constant 0 : index
    %213 = vector.load %arg9[%c8_208, %c0_209] : memref<72x8xbf16, #tpu.memory_space<vmem>>, vector<8x8xbf16>
    %cst_210 = arith.constant dense<0.000000e+00> : vector<64x8xf32>
    %214 = tpu.matmul %212, %213, %cst_210 {dimension_numbers = #tpu.dot_dimension_numbers<[1], [0], [0], [1], [0, 0, 1, 1], [], []>} : vector<64x8xbf16>, vector<8x8xbf16>, vector<64x8xf32> -> vector<64x8xf32>
    %215 = arith.addf %209, %214 : vector<64x8xf32>
    %c0_211 = arith.constant 0 : index
    %c2_212 = arith.constant 2 : index
    %c0_213 = arith.constant 0 : index
    %216 = vector.load %arg15[%c0_211, %c2_212, %c0_213] : memref<10x10x8xf32, #tpu.memory_space<vmem>>, vector<8x8x8xf32>
    %217 = vector.shape_cast %216 : vector<8x8x8xf32> to vector<64x8xf32>
    %218 = arith.truncf %217 : vector<64x8xf32> to vector<64x8xbf16>
    %c16_214 = arith.constant 16 : index
    %c0_215 = arith.constant 0 : index
    %219 = vector.load %arg9[%c16_214, %c0_215] : memref<72x8xbf16, #tpu.memory_space<vmem>>, vector<8x8xbf16>
    %cst_216 = arith.constant dense<0.000000e+00> : vector<64x8xf32>
    %220 = tpu.matmul %218, %219, %cst_216 {dimension_numbers = #tpu.dot_dimension_numbers<[1], [0], [0], [1], [0, 0, 1, 1], [], []>} : vector<64x8xbf16>, vector<8x8xbf16>, vector<64x8xf32> -> vector<64x8xf32>
    %221 = arith.addf %215, %220 : vector<64x8xf32>
    %c1_217 = arith.constant 1 : index
    %c0_218 = arith.constant 0 : index
    %c0_219 = arith.constant 0 : index
    %222 = vector.load %arg15[%c1_217, %c0_218, %c0_219] : memref<10x10x8xf32, #tpu.memory_space<vmem>>, vector<8x8x8xf32>
    %223 = vector.shape_cast %222 : vector<8x8x8xf32> to vector<64x8xf32>
    %224 = arith.truncf %223 : vector<64x8xf32> to vector<64x8xbf16>
    %c24_220 = arith.constant 24 : index
    %c0_221 = arith.constant 0 : index
    %225 = vector.load %arg9[%c24_220, %c0_221] : memref<72x8xbf16, #tpu.memory_space<vmem>>, vector<8x8xbf16>
    %cst_222 = arith.constant dense<0.000000e+00> : vector<64x8xf32>
    %226 = tpu.matmul %224, %225, %cst_222 {dimension_numbers = #tpu.dot_dimension_numbers<[1], [0], [0], [1], [0, 0, 1, 1], [], []>} : vector<64x8xbf16>, vector<8x8xbf16>, vector<64x8xf32> -> vector<64x8xf32>
    %227 = arith.addf %221, %226 : vector<64x8xf32>
    %c1_223 = arith.constant 1 : index
    %c1_224 = arith.constant 1 : index
    %c0_225 = arith.constant 0 : index
    %228 = vector.load %arg15[%c1_223, %c1_224, %c0_225] : memref<10x10x8xf32, #tpu.memory_space<vmem>>, vector<8x8x8xf32>
    %229 = vector.shape_cast %228 : vector<8x8x8xf32> to vector<64x8xf32>
    %230 = arith.truncf %229 : vector<64x8xf32> to vector<64x8xbf16>
    %c32_226 = arith.constant 32 : index
    %c0_227 = arith.constant 0 : index
    %231 = vector.load %arg9[%c32_226, %c0_227] : memref<72x8xbf16, #tpu.memory_space<vmem>>, vector<8x8xbf16>
    %cst_228 = arith.constant dense<0.000000e+00> : vector<64x8xf32>
    %232 = tpu.matmul %230, %231, %cst_228 {dimension_numbers = #tpu.dot_dimension_numbers<[1], [0], [0], [1], [0, 0, 1, 1], [], []>} : vector<64x8xbf16>, vector<8x8xbf16>, vector<64x8xf32> -> vector<64x8xf32>
    %233 = arith.addf %227, %232 : vector<64x8xf32>
    %c1_229 = arith.constant 1 : index
    %c2_230 = arith.constant 2 : index
    %c0_231 = arith.constant 0 : index
    %234 = vector.load %arg15[%c1_229, %c2_230, %c0_231] : memref<10x10x8xf32, #tpu.memory_space<vmem>>, vector<8x8x8xf32>
    %235 = vector.shape_cast %234 : vector<8x8x8xf32> to vector<64x8xf32>
    %236 = arith.truncf %235 : vector<64x8xf32> to vector<64x8xbf16>
    %c40_232 = arith.constant 40 : index
    %c0_233 = arith.constant 0 : index
    %237 = vector.load %arg9[%c40_232, %c0_233] : memref<72x8xbf16, #tpu.memory_space<vmem>>, vector<8x8xbf16>
    %cst_234 = arith.constant dense<0.000000e+00> : vector<64x8xf32>
    %238 = tpu.matmul %236, %237, %cst_234 {dimension_numbers = #tpu.dot_dimension_numbers<[1], [0], [0], [1], [0, 0, 1, 1], [], []>} : vector<64x8xbf16>, vector<8x8xbf16>, vector<64x8xf32> -> vector<64x8xf32>
    %239 = arith.addf %233, %238 : vector<64x8xf32>
    %c2_235 = arith.constant 2 : index
    %c0_236 = arith.constant 0 : index
    %c0_237 = arith.constant 0 : index
    %240 = vector.load %arg15[%c2_235, %c0_236, %c0_237] : memref<10x10x8xf32, #tpu.memory_space<vmem>>, vector<8x8x8xf32>
    %241 = vector.shape_cast %240 : vector<8x8x8xf32> to vector<64x8xf32>
    %242 = arith.truncf %241 : vector<64x8xf32> to vector<64x8xbf16>
    %c48_238 = arith.constant 48 : index
    %c0_239 = arith.constant 0 : index
    %243 = vector.load %arg9[%c48_238, %c0_239] : memref<72x8xbf16, #tpu.memory_space<vmem>>, vector<8x8xbf16>
    %cst_240 = arith.constant dense<0.000000e+00> : vector<64x8xf32>
    %244 = tpu.matmul %242, %243, %cst_240 {dimension_numbers = #tpu.dot_dimension_numbers<[1], [0], [0], [1], [0, 0, 1, 1], [], []>} : vector<64x8xbf16>, vector<8x8xbf16>, vector<64x8xf32> -> vector<64x8xf32>
    %245 = arith.addf %239, %244 : vector<64x8xf32>
    %c2_241 = arith.constant 2 : index
    %c1_242 = arith.constant 1 : index
    %c0_243 = arith.constant 0 : index
    %246 = vector.load %arg15[%c2_241, %c1_242, %c0_243] : memref<10x10x8xf32, #tpu.memory_space<vmem>>, vector<8x8x8xf32>
    %247 = vector.shape_cast %246 : vector<8x8x8xf32> to vector<64x8xf32>
    %248 = arith.truncf %247 : vector<64x8xf32> to vector<64x8xbf16>
    %c56_244 = arith.constant 56 : index
    %c0_245 = arith.constant 0 : index
    %249 = vector.load %arg9[%c56_244, %c0_245] : memref<72x8xbf16, #tpu.memory_space<vmem>>, vector<8x8xbf16>
    %cst_246 = arith.constant dense<0.000000e+00> : vector<64x8xf32>
    %250 = tpu.matmul %248, %249, %cst_246 {dimension_numbers = #tpu.dot_dimension_numbers<[1], [0], [0], [1], [0, 0, 1, 1], [], []>} : vector<64x8xbf16>, vector<8x8xbf16>, vector<64x8xf32> -> vector<64x8xf32>
    %251 = arith.addf %245, %250 : vector<64x8xf32>
    %c2_247 = arith.constant 2 : index
    %c2_248 = arith.constant 2 : index
    %c0_249 = arith.constant 0 : index
    %252 = vector.load %arg15[%c2_247, %c2_248, %c0_249] : memref<10x10x8xf32, #tpu.memory_space<vmem>>, vector<8x8x8xf32>
    %253 = vector.shape_cast %252 : vector<8x8x8xf32> to vector<64x8xf32>
    %254 = arith.truncf %253 : vector<64x8xf32> to vector<64x8xbf16>
    %c64_250 = arith.constant 64 : index
    %c0_251 = arith.constant 0 : index
    %255 = vector.load %arg9[%c64_250, %c0_251] : memref<72x8xbf16, #tpu.memory_space<vmem>>, vector<8x8xbf16>
    %cst_252 = arith.constant dense<0.000000e+00> : vector<64x8xf32>
    %256 = tpu.matmul %254, %255, %cst_252 {dimension_numbers = #tpu.dot_dimension_numbers<[1], [0], [0], [1], [0, 0, 1, 1], [], []>} : vector<64x8xbf16>, vector<8x8xbf16>, vector<64x8xf32> -> vector<64x8xf32>
    %257 = arith.addf %251, %256 : vector<64x8xf32>
    %c0_253 = arith.constant 0 : index
    %c0_254 = arith.constant 0 : index
    %258 = vector.load %arg10[%c0_253, %c0_254] : memref<1x8xf32, #tpu.memory_space<vmem>>, vector<1x8xf32>
    %259 = vector.broadcast %258 : vector<1x8xf32> to vector<64x8xf32>
    %260 = arith.addf %257, %259 : vector<64x8xf32>
    %261 = vector.shape_cast %260 : vector<64x8xf32> to vector<8x8x8xf32>
    %262 = arith.addf %261, %137 : vector<8x8x8xf32>
    %263 = vector.shape_cast %262 : vector<8x8x8xf32> to vector<64x8xf32>
    %264 = arith.truncf %263 : vector<64x8xf32> to vector<64x8xbf16>
    %c0_255 = arith.constant 0 : index
    %c0_256 = arith.constant 0 : index
    %265 = vector.load %arg11[%c0_255, %c0_256] : memref<8x8xbf16, #tpu.memory_space<vmem>>, vector<8x8xbf16>
    %cst_257 = arith.constant dense<0.000000e+00> : vector<64x8xf32>
    %266 = tpu.matmul %264, %265, %cst_257 {dimension_numbers = #tpu.dot_dimension_numbers<[1], [0], [0], [1], [0, 0, 1, 1], [], []>} : vector<64x8xbf16>, vector<8x8xbf16>, vector<64x8xf32> -> vector<64x8xf32>
    %c0_258 = arith.constant 0 : index
    %c0_259 = arith.constant 0 : index
    %267 = vector.load %arg12[%c0_258, %c0_259] : memref<1x8xf32, #tpu.memory_space<vmem>>, vector<1x8xf32>
    %268 = vector.broadcast %267 : vector<1x8xf32> to vector<64x8xf32>
    %269 = arith.addf %266, %268 : vector<64x8xf32>
    %270 = vector.shape_cast %269 : vector<64x8xf32> to vector<8x8x8xf32>
    %c0_260 = arith.constant 0 : index
    %c0_261 = arith.constant 0 : index
    %271 = vector.load %arg13[%c0_260, %c0_261] : memref<16x8xf32, #tpu.memory_space<vmem>>, vector<16x8xf32>
    %272 = arith.truncf %271 : vector<16x8xf32> to vector<16x8xbf16>
    %273 = vector.shape_cast %272 : vector<16x8xbf16> to vector<1x16x8xbf16>
    %274 = vector.broadcast %273 : vector<1x16x8xbf16> to vector<8x16x8xbf16>
    %275 = arith.truncf %270 : vector<8x8x8xf32> to vector<8x8x8xbf16>
    "tpu.trace_start"() <{level = 10 : i32, message = "how,hwc->hoc"}> : () -> ()
    %cst_262 = arith.constant dense<0.000000e+00> : vector<8x16x8xf32>
    %276 = tpu.matmul %274, %275, %cst_262 {dimension_numbers = #tpu.dot_dimension_numbers<[2], [1], [1], [2], [0, 0, 0, 1, 1, 2], [0], [0]>} : vector<8x16x8xbf16>, vector<8x8x8xbf16>, vector<8x16x8xf32> -> vector<8x16x8xf32>
    "tpu.trace_stop"() : () -> ()
    %277 = vector.extract_strided_slice %276 {offsets = [0, 0, 0], sizes = [1, 16, 8], strides = [1, 1, 1]} : vector<8x16x8xf32> to vector<1x16x8xf32>
    %278 = vector.shape_cast %277 : vector<1x16x8xf32> to vector<16x8xf32>
    %c0_263 = arith.constant 0 : index
    %c0_264 = arith.constant 0 : index
    %c0_265 = arith.constant 0 : index
    %c0_266 = arith.constant 0 : index
    %279 = vector.load %arg14[%c0_263, %c0_264, %c0_265, %c0_266] : memref<1x16x16x8xf32, #tpu.memory_space<vmem>>, vector<1x1x16x8xf32>
    %280 = vector.shape_cast %279 : vector<1x1x16x8xf32> to vector<16x8xf32>
    %281 = vector.shape_cast %278 : vector<16x8xf32> to vector<1x1x16x8xf32>
    tpu.vector_store %arg14[%c0_263, %c0_264, %c0_265, %c0_266], %281 {strides = array<i32>} : memref<1x16x16x8xf32, #tpu.memory_space<vmem>>, vector<1x1x16x8xf32>,
    %282 = vector.extract_strided_slice %276 {offsets = [0, 0, 0], sizes = [1, 16, 8], strides = [1, 1, 1]} : vector<8x16x8xf32> to vector<1x16x8xf32>
    %283 = vector.shape_cast %282 : vector<1x16x8xf32> to vector<16x8xf32>
    %cst_267 = arith.constant 0.533333361 : f32
    %284 = vector.broadcast %cst_267 : f32 to vector<16x8xf32>
    %285 = arith.mulf %284, %283 : vector<16x8xf32>
    %286 = vector.extract_strided_slice %276 {offsets = [1, 0, 0], sizes = [1, 16, 8], strides = [1, 1, 1]} : vector<8x16x8xf32> to vector<1x16x8xf32>
    %287 = vector.shape_cast %286 : vector<1x16x8xf32> to vector<16x8xf32>
    %cst_268 = arith.constant 0.466666669 : f32
    %288 = vector.broadcast %cst_268 : f32 to vector<16x8xf32>
    %289 = arith.mulf %288, %287 : vector<16x8xf32>
    %290 = arith.addf %285, %289 : vector<16x8xf32>
    %c0_269 = arith.constant 0 : index
    %c1_270 = arith.constant 1 : index
    %c0_271 = arith.constant 0 : index
    %c0_272 = arith.constant 0 : index
    %291 = vector.load %arg14[%c0_269, %c1_270, %c0_271, %c0_272] : memref<1x16x16x8xf32, #tpu.memory_space<vmem>>, vector<1x1x16x8xf32>
    %292 = vector.shape_cast %291 : vector<1x1x16x8xf32> to vector<16x8xf32>
    %293 = vector.shape_cast %290 : vector<16x8xf32> to vector<1x1x16x8xf32>
    tpu.vector_store %arg14[%c0_269, %c1_270, %c0_271, %c0_272], %293 {strides = array<i32>} : memref<1x16x16x8xf32, #tpu.memory_space<vmem>>, vector<1x1x16x8xf32>,
    %294 = vector.extract_strided_slice %276 {offsets = [0, 0, 0], sizes = [1, 16, 8], strides = [1, 1, 1]} : vector<8x16x8xf32> to vector<1x16x8xf32>
    %295 = vector.shape_cast %294 : vector<1x16x8xf32> to vector<16x8xf32>
    %cst_273 = arith.constant 0.0666666701 : f32
    %296 = vector.broadcast %cst_273 : f32 to vector<16x8xf32>
    %297 = arith.mulf %296, %295 : vector<16x8xf32>
    %298 = vector.extract_strided_slice %276 {offsets = [1, 0, 0], sizes = [1, 16, 8], strides = [1, 1, 1]} : vector<8x16x8xf32> to vector<1x16x8xf32>
    %299 = vector.shape_cast %298 : vector<1x16x8xf32> to vector<16x8xf32>
    %cst_274 = arith.constant 0.933333337 : f32
    %300 = vector.broadcast %cst_274 : f32 to vector<16x8xf32>
    %301 = arith.mulf %300, %299 : vector<16x8xf32>
    %302 = arith.addf %297, %301 : vector<16x8xf32>
    %c0_275 = arith.constant 0 : index
    %c2_276 = arith.constant 2 : index
    %c0_277 = arith.constant 0 : index
    %c0_278 = arith.constant 0 : index
    %303 = vector.load %arg14[%c0_275, %c2_276, %c0_277, %c0_278] : memref<1x16x16x8xf32, #tpu.memory_space<vmem>>, vector<1x1x16x8xf32>
    %304 = vector.shape_cast %303 : vector<1x1x16x8xf32> to vector<16x8xf32>
    %305 = vector.shape_cast %302 : vector<16x8xf32> to vector<1x1x16x8xf32>
    tpu.vector_store %arg14[%c0_275, %c2_276, %c0_277, %c0_278], %305 {strides = array<i32>} : memref<1x16x16x8xf32, #tpu.memory_space<vmem>>, vector<1x1x16x8xf32>,
    %306 = vector.extract_strided_slice %276 {offsets = [1, 0, 0], sizes = [1, 16, 8], strides = [1, 1, 1]} : vector<8x16x8xf32> to vector<1x16x8xf32>
    %307 = vector.shape_cast %306 : vector<1x16x8xf32> to vector<16x8xf32>
    %cst_279 = arith.constant 6.000000e-01 : f32
    %308 = vector.broadcast %cst_279 : f32 to vector<16x8xf32>
    %309 = arith.mulf %308, %307 : vector<16x8xf32>
    %310 = vector.extract_strided_slice %276 {offsets = [2, 0, 0], sizes = [1, 16, 8], strides = [1, 1, 1]} : vector<8x16x8xf32> to vector<1x16x8xf32>
    %311 = vector.shape_cast %310 : vector<1x16x8xf32> to vector<16x8xf32>
    %cst_280 = arith.constant 4.000000e-01 : f32
    %312 = vector.broadcast %cst_280 : f32 to vector<16x8xf32>
    %313 = arith.mulf %312, %311 : vector<16x8xf32>
    %314 = arith.addf %309, %313 : vector<16x8xf32>
    %c0_281 = arith.constant 0 : index
    %c3 = arith.constant 3 : index
    %c0_282 = arith.constant 0 : index
    %c0_283 = arith.constant 0 : index
    %315 = vector.load %arg14[%c0_281, %c3, %c0_282, %c0_283] : memref<1x16x16x8xf32, #tpu.memory_space<vmem>>, vector<1x1x16x8xf32>
    %316 = vector.shape_cast %315 : vector<1x1x16x8xf32> to vector<16x8xf32>
    %317 = vector.shape_cast %314 : vector<16x8xf32> to vector<1x1x16x8xf32>
    tpu.vector_store %arg14[%c0_281, %c3, %c0_282, %c0_283], %317 {strides = array<i32>} : memref<1x16x16x8xf32, #tpu.memory_space<vmem>>, vector<1x1x16x8xf32>,
    %318 = vector.extract_strided_slice %276 {offsets = [1, 0, 0], sizes = [1, 16, 8], strides = [1, 1, 1]} : vector<8x16x8xf32> to vector<1x16x8xf32>
    %319 = vector.shape_cast %318 : vector<1x16x8xf32> to vector<16x8xf32>
    %cst_284 = arith.constant 0.13333334 : f32
    %320 = vector.broadcast %cst_284 : f32 to vector<16x8xf32>
    %321 = arith.mulf %320, %319 : vector<16x8xf32>
    %322 = vector.extract_strided_slice %276 {offsets = [2, 0, 0], sizes = [1, 16, 8], strides = [1, 1, 1]} : vector<8x16x8xf32> to vector<1x16x8xf32>
    %323 = vector.shape_cast %322 : vector<1x16x8xf32> to vector<16x8xf32>
    %cst_285 = arith.constant 0.866666674 : f32
    %324 = vector.broadcast %cst_285 : f32 to vector<16x8xf32>
    %325 = arith.mulf %324, %323 : vector<16x8xf32>
    %326 = arith.addf %321, %325 : vector<16x8xf32>
    %c0_286 = arith.constant 0 : index
    %c4 = arith.constant 4 : index
    %c0_287 = arith.constant 0 : index
    %c0_288 = arith.constant 0 : index
    %327 = vector.load %arg14[%c0_286, %c4, %c0_287, %c0_288] : memref<1x16x16x8xf32, #tpu.memory_space<vmem>>, vector<1x1x16x8xf32>
    %328 = vector.shape_cast %327 : vector<1x1x16x8xf32> to vector<16x8xf32>
    %329 = vector.shape_cast %326 : vector<16x8xf32> to vector<1x1x16x8xf32>
    tpu.vector_store %arg14[%c0_286, %c4, %c0_287, %c0_288], %329 {strides = array<i32>} : memref<1x16x16x8xf32, #tpu.memory_space<vmem>>, vector<1x1x16x8xf32>,
    %330 = vector.extract_strided_slice %276 {offsets = [2, 0, 0], sizes = [1, 16, 8], strides = [1, 1, 1]} : vector<8x16x8xf32> to vector<1x16x8xf32>
    %331 = vector.shape_cast %330 : vector<1x16x8xf32> to vector<16x8xf32>
    %cst_289 = arith.constant 0.666666686 : f32
    %332 = vector.broadcast %cst_289 : f32 to vector<16x8xf32>
    %333 = arith.mulf %332, %331 : vector<16x8xf32>
    %334 = vector.extract_strided_slice %276 {offsets = [3, 0, 0], sizes = [1, 16, 8], strides = [1, 1, 1]} : vector<8x16x8xf32> to vector<1x16x8xf32>
    %335 = vector.shape_cast %334 : vector<1x16x8xf32> to vector<16x8xf32>
    %cst_290 = arith.constant 0.333333343 : f32
    %336 = vector.broadcast %cst_290 : f32 to vector<16x8xf32>
    %337 = arith.mulf %336, %335 : vector<16x8xf32>
    %338 = arith.addf %333, %337 : vector<16x8xf32>
    %c0_291 = arith.constant 0 : index
    %c5 = arith.constant 5 : index
    %c0_292 = arith.constant 0 : index
    %c0_293 = arith.constant 0 : index
    %339 = vector.load %arg14[%c0_291, %c5, %c0_292, %c0_293] : memref<1x16x16x8xf32, #tpu.memory_space<vmem>>, vector<1x1x16x8xf32>
    %340 = vector.shape_cast %339 : vector<1x1x16x8xf32> to vector<16x8xf32>
    %341 = vector.shape_cast %338 : vector<16x8xf32> to vector<1x1x16x8xf32>
    tpu.vector_store %arg14[%c0_291, %c5, %c0_292, %c0_293], %341 {strides = array<i32>} : memref<1x16x16x8xf32, #tpu.memory_space<vmem>>, vector<1x1x16x8xf32>,
    %342 = vector.extract_strided_slice %276 {offsets = [2, 0, 0], sizes = [1, 16, 8], strides = [1, 1, 1]} : vector<8x16x8xf32> to vector<1x16x8xf32>
    %343 = vector.shape_cast %342 : vector<1x16x8xf32> to vector<16x8xf32>
    %cst_294 = arith.constant 2.000000e-01 : f32
    %344 = vector.broadcast %cst_294 : f32 to vector<16x8xf32>
    %345 = arith.mulf %344, %343 : vector<16x8xf32>
    %346 = vector.extract_strided_slice %276 {offsets = [3, 0, 0], sizes = [1, 16, 8], strides = [1, 1, 1]} : vector<8x16x8xf32> to vector<1x16x8xf32>
    %347 = vector.shape_cast %346 : vector<1x16x8xf32> to vector<16x8xf32>
    %cst_295 = arith.constant 8.000000e-01 : f32
    %348 = vector.broadcast %cst_295 : f32 to vector<16x8xf32>
    %349 = arith.mulf %348, %347 : vector<16x8xf32>
    %350 = arith.addf %345, %349 : vector<16x8xf32>
    %c0_296 = arith.constant 0 : index
    %c6 = arith.constant 6 : index
    %c0_297 = arith.constant 0 : index
    %c0_298 = arith.constant 0 : index
    %351 = vector.load %arg14[%c0_296, %c6, %c0_297, %c0_298] : memref<1x16x16x8xf32, #tpu.memory_space<vmem>>, vector<1x1x16x8xf32>
    %352 = vector.shape_cast %351 : vector<1x1x16x8xf32> to vector<16x8xf32>
    %353 = vector.shape_cast %350 : vector<16x8xf32> to vector<1x1x16x8xf32>
    tpu.vector_store %arg14[%c0_296, %c6, %c0_297, %c0_298], %353 {strides = array<i32>} : memref<1x16x16x8xf32, #tpu.memory_space<vmem>>, vector<1x1x16x8xf32>,
    %354 = vector.extract_strided_slice %276 {offsets = [3, 0, 0], sizes = [1, 16, 8], strides = [1, 1, 1]} : vector<8x16x8xf32> to vector<1x16x8xf32>
    %355 = vector.shape_cast %354 : vector<1x16x8xf32> to vector<16x8xf32>
    %cst_299 = arith.constant 0.733333349 : f32
    %356 = vector.broadcast %cst_299 : f32 to vector<16x8xf32>
    %357 = arith.mulf %356, %355 : vector<16x8xf32>
    %358 = vector.extract_strided_slice %276 {offsets = [4, 0, 0], sizes = [1, 16, 8], strides = [1, 1, 1]} : vector<8x16x8xf32> to vector<1x16x8xf32>
    %359 = vector.shape_cast %358 : vector<1x16x8xf32> to vector<16x8xf32>
    %cst_300 = arith.constant 0.266666681 : f32
    %360 = vector.broadcast %cst_300 : f32 to vector<16x8xf32>
    %361 = arith.mulf %360, %359 : vector<16x8xf32>
    %362 = arith.addf %357, %361 : vector<16x8xf32>
    %c0_301 = arith.constant 0 : index
    %c7 = arith.constant 7 : index
    %c0_302 = arith.constant 0 : index
    %c0_303 = arith.constant 0 : index
    %363 = vector.load %arg14[%c0_301, %c7, %c0_302, %c0_303] : memref<1x16x16x8xf32, #tpu.memory_space<vmem>>, vector<1x1x16x8xf32>
    %364 = vector.shape_cast %363 : vector<1x1x16x8xf32> to vector<16x8xf32>
    %365 = vector.shape_cast %362 : vector<16x8xf32> to vector<1x1x16x8xf32>
    tpu.vector_store %arg14[%c0_301, %c7, %c0_302, %c0_303], %365 {strides = array<i32>} : memref<1x16x16x8xf32, #tpu.memory_space<vmem>>, vector<1x1x16x8xf32>,
    %366 = vector.extract_strided_slice %276 {offsets = [3, 0, 0], sizes = [1, 16, 8], strides = [1, 1, 1]} : vector<8x16x8xf32> to vector<1x16x8xf32>
    %367 = vector.shape_cast %366 : vector<1x16x8xf32> to vector<16x8xf32>
    %cst_304 = arith.constant 0.266666681 : f32
    %368 = vector.broadcast %cst_304 : f32 to vector<16x8xf32>
    %369 = arith.mulf %368, %367 : vector<16x8xf32>
    %370 = vector.extract_strided_slice %276 {offsets = [4, 0, 0], sizes = [1, 16, 8], strides = [1, 1, 1]} : vector<8x16x8xf32> to vector<1x16x8xf32>
    %371 = vector.shape_cast %370 : vector<1x16x8xf32> to vector<16x8xf32>
    %cst_305 = arith.constant 0.733333349 : f32
    %372 = vector.broadcast %cst_305 : f32 to vector<16x8xf32>
    %373 = arith.mulf %372, %371 : vector<16x8xf32>
    %374 = arith.addf %369, %373 : vector<16x8xf32>
    %c0_306 = arith.constant 0 : index
    %c8_307 = arith.constant 8 : index
    %c0_308 = arith.constant 0 : index
    %c0_309 = arith.constant 0 : index
    %375 = vector.load %arg14[%c0_306, %c8_307, %c0_308, %c0_309] : memref<1x16x16x8xf32, #tpu.memory_space<vmem>>, vector<1x1x16x8xf32>
    %376 = vector.shape_cast %375 : vector<1x1x16x8xf32> to vector<16x8xf32>
    %377 = vector.shape_cast %374 : vector<16x8xf32> to vector<1x1x16x8xf32>
    tpu.vector_store %arg14[%c0_306, %c8_307, %c0_308, %c0_309], %377 {strides = array<i32>} : memref<1x16x16x8xf32, #tpu.memory_space<vmem>>, vector<1x1x16x8xf32>,
    %378 = vector.extract_strided_slice %276 {offsets = [4, 0, 0], sizes = [1, 16, 8], strides = [1, 1, 1]} : vector<8x16x8xf32> to vector<1x16x8xf32>
    %379 = vector.shape_cast %378 : vector<1x16x8xf32> to vector<16x8xf32>
    %cst_310 = arith.constant 8.000000e-01 : f32
    %380 = vector.broadcast %cst_310 : f32 to vector<16x8xf32>
    %381 = arith.mulf %380, %379 : vector<16x8xf32>
    %382 = vector.extract_strided_slice %276 {offsets = [5, 0, 0], sizes = [1, 16, 8], strides = [1, 1, 1]} : vector<8x16x8xf32> to vector<1x16x8xf32>
    %383 = vector.shape_cast %382 : vector<1x16x8xf32> to vector<16x8xf32>
    %cst_311 = arith.constant 2.000000e-01 : f32
    %384 = vector.broadcast %cst_311 : f32 to vector<16x8xf32>
    %385 = arith.mulf %384, %383 : vector<16x8xf32>
    %386 = arith.addf %381, %385 : vector<16x8xf32>
    %c0_312 = arith.constant 0 : index
    %c9_313 = arith.constant 9 : index
    %c0_314 = arith.constant 0 : index
    %c0_315 = arith.constant 0 : index
    %387 = vector.load %arg14[%c0_312, %c9_313, %c0_314, %c0_315] : memref<1x16x16x8xf32, #tpu.memory_space<vmem>>, vector<1x1x16x8xf32>
    %388 = vector.shape_cast %387 : vector<1x1x16x8xf32> to vector<16x8xf32>
    %389 = vector.shape_cast %386 : vector<16x8xf32> to vector<1x1x16x8xf32>
    tpu.vector_store %arg14[%c0_312, %c9_313, %c0_314, %c0_315], %389 {strides = array<i32>} : memref<1x16x16x8xf32, #tpu.memory_space<vmem>>, vector<1x1x16x8xf32>,
    %390 = vector.extract_strided_slice %276 {offsets = [4, 0, 0], sizes = [1, 16, 8], strides = [1, 1, 1]} : vector<8x16x8xf32> to vector<1x16x8xf32>
    %391 = vector.shape_cast %390 : vector<1x16x8xf32> to vector<16x8xf32>
    %cst_316 = arith.constant 0.333333343 : f32
    %392 = vector.broadcast %cst_316 : f32 to vector<16x8xf32>
    %393 = arith.mulf %392, %391 : vector<16x8xf32>
    %394 = vector.extract_strided_slice %276 {offsets = [5, 0, 0], sizes = [1, 16, 8], strides = [1, 1, 1]} : vector<8x16x8xf32> to vector<1x16x8xf32>
    %395 = vector.shape_cast %394 : vector<1x16x8xf32> to vector<16x8xf32>
    %cst_317 = arith.constant 0.666666686 : f32
    %396 = vector.broadcast %cst_317 : f32 to vector<16x8xf32>
    %397 = arith.mulf %396, %395 : vector<16x8xf32>
    %398 = arith.addf %393, %397 : vector<16x8xf32>
    %c0_318 = arith.constant 0 : index
    %c10 = arith.constant 10 : index
    %c0_319 = arith.constant 0 : index
    %c0_320 = arith.constant 0 : index
    %399 = vector.load %arg14[%c0_318, %c10, %c0_319, %c0_320] : memref<1x16x16x8xf32, #tpu.memory_space<vmem>>, vector<1x1x16x8xf32>
    %400 = vector.shape_cast %399 : vector<1x1x16x8xf32> to vector<16x8xf32>
    %401 = vector.shape_cast %398 : vector<16x8xf32> to vector<1x1x16x8xf32>
    tpu.vector_store %arg14[%c0_318, %c10, %c0_319, %c0_320], %401 {strides = array<i32>} : memref<1x16x16x8xf32, #tpu.memory_space<vmem>>, vector<1x1x16x8xf32>,
    %402 = vector.extract_strided_slice %276 {offsets = [5, 0, 0], sizes = [1, 16, 8], strides = [1, 1, 1]} : vector<8x16x8xf32> to vector<1x16x8xf32>
    %403 = vector.shape_cast %402 : vector<1x16x8xf32> to vector<16x8xf32>
    %cst_321 = arith.constant 0.866666674 : f32
    %404 = vector.broadcast %cst_321 : f32 to vector<16x8xf32>
    %405 = arith.mulf %404, %403 : vector<16x8xf32>
    %406 = vector.extract_strided_slice %276 {offsets = [6, 0, 0], sizes = [1, 16, 8], strides = [1, 1, 1]} : vector<8x16x8xf32> to vector<1x16x8xf32>
    %407 = vector.shape_cast %406 : vector<1x16x8xf32> to vector<16x8xf32>
    %cst_322 = arith.constant 0.13333334 : f32
    %408 = vector.broadcast %cst_322 : f32 to vector<16x8xf32>
    %409 = arith.mulf %408, %407 : vector<16x8xf32>
    %410 = arith.addf %405, %409 : vector<16x8xf32>
    %c0_323 = arith.constant 0 : index
    %c11 = arith.constant 11 : index
    %c0_324 = arith.constant 0 : index
    %c0_325 = arith.constant 0 : index
    %411 = vector.load %arg14[%c0_323, %c11, %c0_324, %c0_325] : memref<1x16x16x8xf32, #tpu.memory_space<vmem>>, vector<1x1x16x8xf32>
    %412 = vector.shape_cast %411 : vector<1x1x16x8xf32> to vector<16x8xf32>
    %413 = vector.shape_cast %410 : vector<16x8xf32> to vector<1x1x16x8xf32>
    tpu.vector_store %arg14[%c0_323, %c11, %c0_324, %c0_325], %413 {strides = array<i32>} : memref<1x16x16x8xf32, #tpu.memory_space<vmem>>, vector<1x1x16x8xf32>,
    %414 = vector.extract_strided_slice %276 {offsets = [5, 0, 0], sizes = [1, 16, 8], strides = [1, 1, 1]} : vector<8x16x8xf32> to vector<1x16x8xf32>
    %415 = vector.shape_cast %414 : vector<1x16x8xf32> to vector<16x8xf32>
    %cst_326 = arith.constant 4.000000e-01 : f32
    %416 = vector.broadcast %cst_326 : f32 to vector<16x8xf32>
    %417 = arith.mulf %416, %415 : vector<16x8xf32>
    %418 = vector.extract_strided_slice %276 {offsets = [6, 0, 0], sizes = [1, 16, 8], strides = [1, 1, 1]} : vector<8x16x8xf32> to vector<1x16x8xf32>
    %419 = vector.shape_cast %418 : vector<1x16x8xf32> to vector<16x8xf32>
    %cst_327 = arith.constant 6.000000e-01 : f32
    %420 = vector.broadcast %cst_327 : f32 to vector<16x8xf32>
    %421 = arith.mulf %420, %419 : vector<16x8xf32>
    %422 = arith.addf %417, %421 : vector<16x8xf32>
    %c0_328 = arith.constant 0 : index
    %c12 = arith.constant 12 : index
    %c0_329 = arith.constant 0 : index
    %c0_330 = arith.constant 0 : index
    %423 = vector.load %arg14[%c0_328, %c12, %c0_329, %c0_330] : memref<1x16x16x8xf32, #tpu.memory_space<vmem>>, vector<1x1x16x8xf32>
    %424 = vector.shape_cast %423 : vector<1x1x16x8xf32> to vector<16x8xf32>
    %425 = vector.shape_cast %422 : vector<16x8xf32> to vector<1x1x16x8xf32>
    tpu.vector_store %arg14[%c0_328, %c12, %c0_329, %c0_330], %425 {strides = array<i32>} : memref<1x16x16x8xf32, #tpu.memory_space<vmem>>, vector<1x1x16x8xf32>,
    %426 = vector.extract_strided_slice %276 {offsets = [6, 0, 0], sizes = [1, 16, 8], strides = [1, 1, 1]} : vector<8x16x8xf32> to vector<1x16x8xf32>
    %427 = vector.shape_cast %426 : vector<1x16x8xf32> to vector<16x8xf32>
    %cst_331 = arith.constant 0.933333337 : f32
    %428 = vector.broadcast %cst_331 : f32 to vector<16x8xf32>
    %429 = arith.mulf %428, %427 : vector<16x8xf32>
    %430 = vector.extract_strided_slice %276 {offsets = [7, 0, 0], sizes = [1, 16, 8], strides = [1, 1, 1]} : vector<8x16x8xf32> to vector<1x16x8xf32>
    %431 = vector.shape_cast %430 : vector<1x16x8xf32> to vector<16x8xf32>
    %cst_332 = arith.constant 0.0666666701 : f32
    %432 = vector.broadcast %cst_332 : f32 to vector<16x8xf32>
    %433 = arith.mulf %432, %431 : vector<16x8xf32>
    %434 = arith.addf %429, %433 : vector<16x8xf32>
    %c0_333 = arith.constant 0 : index
    %c13 = arith.constant 13 : index
    %c0_334 = arith.constant 0 : index
    %c0_335 = arith.constant 0 : index
    %435 = vector.load %arg14[%c0_333, %c13, %c0_334, %c0_335] : memref<1x16x16x8xf32, #tpu.memory_space<vmem>>, vector<1x1x16x8xf32>
    %436 = vector.shape_cast %435 : vector<1x1x16x8xf32> to vector<16x8xf32>
    %437 = vector.shape_cast %434 : vector<16x8xf32> to vector<1x1x16x8xf32>
    tpu.vector_store %arg14[%c0_333, %c13, %c0_334, %c0_335], %437 {strides = array<i32>} : memref<1x16x16x8xf32, #tpu.memory_space<vmem>>, vector<1x1x16x8xf32>,
    %438 = vector.extract_strided_slice %276 {offsets = [6, 0, 0], sizes = [1, 16, 8], strides = [1, 1, 1]} : vector<8x16x8xf32> to vector<1x16x8xf32>
    %439 = vector.shape_cast %438 : vector<1x16x8xf32> to vector<16x8xf32>
    %cst_336 = arith.constant 0.466666669 : f32
    %440 = vector.broadcast %cst_336 : f32 to vector<16x8xf32>
    %441 = arith.mulf %440, %439 : vector<16x8xf32>
    %442 = vector.extract_strided_slice %276 {offsets = [7, 0, 0], sizes = [1, 16, 8], strides = [1, 1, 1]} : vector<8x16x8xf32> to vector<1x16x8xf32>
    %443 = vector.shape_cast %442 : vector<1x16x8xf32> to vector<16x8xf32>
    %cst_337 = arith.constant 0.533333361 : f32
    %444 = vector.broadcast %cst_337 : f32 to vector<16x8xf32>
    %445 = arith.mulf %444, %443 : vector<16x8xf32>
    %446 = arith.addf %441, %445 : vector<16x8xf32>
    %c0_338 = arith.constant 0 : index
    %c14 = arith.constant 14 : index
    %c0_339 = arith.constant 0 : index
    %c0_340 = arith.constant 0 : index
    %447 = vector.load %arg14[%c0_338, %c14, %c0_339, %c0_340] : memref<1x16x16x8xf32, #tpu.memory_space<vmem>>, vector<1x1x16x8xf32>
    %448 = vector.shape_cast %447 : vector<1x1x16x8xf32> to vector<16x8xf32>
    %449 = vector.shape_cast %446 : vector<16x8xf32> to vector<1x1x16x8xf32>
    tpu.vector_store %arg14[%c0_338, %c14, %c0_339, %c0_340], %449 {strides = array<i32>} : memref<1x16x16x8xf32, #tpu.memory_space<vmem>>, vector<1x1x16x8xf32>,
    %450 = vector.extract_strided_slice %276 {offsets = [7, 0, 0], sizes = [1, 16, 8], strides = [1, 1, 1]} : vector<8x16x8xf32> to vector<1x16x8xf32>
    %451 = vector.shape_cast %450 : vector<1x16x8xf32> to vector<16x8xf32>
    %c0_341 = arith.constant 0 : index
    %c15 = arith.constant 15 : index
    %c0_342 = arith.constant 0 : index
    %c0_343 = arith.constant 0 : index
    %452 = vector.load %arg14[%c0_341, %c15, %c0_342, %c0_343] : memref<1x16x16x8xf32, #tpu.memory_space<vmem>>, vector<1x1x16x8xf32>
    %453 = vector.shape_cast %452 : vector<1x1x16x8xf32> to vector<16x8xf32>
    %454 = vector.shape_cast %451 : vector<16x8xf32> to vector<1x1x16x8xf32>
    tpu.vector_store %arg14[%c0_341, %c15, %c0_342, %c0_343], %454 {strides = array<i32>} : memref<1x16x16x8xf32, #tpu.memory_space<vmem>>, vector<1x1x16x8xf32>,
    return
  }
  func.func @transform_0(%arg0: i32) -> (i32, i32, i32, i32) {
    %c0_i32 = arith.constant 0 : i32
    %c0_i32_0 = arith.constant 0 : i32
    %c0_i32_1 = arith.constant 0 : i32
    %c0_i32_2 = arith.constant 0 : i32
    return %arg0, %c0_i32, %c0_i32_0, %c0_i32_1 : i32, i32, i32, i32
  }
  func.func @transform_1(%arg0: i32) -> (i32, i32, i32, i32) {
    %c0_i32 = arith.constant 0 : i32
    %c0_i32_0 = arith.constant 0 : i32
    %c0_i32_1 = arith.constant 0 : i32
    %c0_i32_2 = arith.constant 0 : i32
    return %arg0, %c0_i32, %c0_i32_0, %c0_i32_1 : i32, i32, i32, i32
  }
  func.func @transform_2(%arg0: i32) -> (i32, i32) {
    %c0_i32 = arith.constant 0 : i32
    %c0_i32_0 = arith.constant 0 : i32
    %c0_i32_1 = arith.constant 0 : i32
    return %c0_i32, %c0_i32_0 : i32, i32
  }
  func.func @transform_3(%arg0: i32) -> (i32, i32) {
    %c0_i32 = arith.constant 0 : i32
    %c0_i32_0 = arith.constant 0 : i32
    %c0_i32_1 = arith.constant 0 : i32
    return %c0_i32, %c0_i32_0 : i32, i32
  }
  func.func @transform_4(%arg0: i32) -> (i32, i32) {
    %c0_i32 = arith.constant 0 : i32
    %c0_i32_0 = arith.constant 0 : i32
    %c0_i32_1 = arith.constant 0 : i32
    return %c0_i32, %c0_i32_0 : i32, i32
  }
  func.func @transform_5(%arg0: i32) -> (i32, i32) {
    %c0_i32 = arith.constant 0 : i32
    %c0_i32_0 = arith.constant 0 : i32
    %c0_i32_1 = arith.constant 0 : i32
    return %c0_i32, %c0_i32_0 : i32, i32
  }
  func.func @transform_6(%arg0: i32) -> (i32, i32) {
    %c0_i32 = arith.constant 0 : i32
    %c0_i32_0 = arith.constant 0 : i32
    %c0_i32_1 = arith.constant 0 : i32
    return %c0_i32, %c0_i32_0 : i32, i32
  }
  func.func @transform_7(%arg0: i32) -> (i32, i32) {
    %c0_i32 = arith.constant 0 : i32
    %c0_i32_0 = arith.constant 0 : i32
    %c0_i32_1 = arith.constant 0 : i32
    return %c0_i32, %c0_i32_0 : i32, i32
  }
  func.func @transform_8(%arg0: i32) -> (i32, i32) {
    %c0_i32 = arith.constant 0 : i32
    %c0_i32_0 = arith.constant 0 : i32
    %c0_i32_1 = arith.constant 0 : i32
    return %c0_i32, %c0_i32_0 : i32, i32
  }
  func.func @transform_9(%arg0: i32) -> (i32, i32) {
    %c0_i32 = arith.constant 0 : i32
    %c0_i32_0 = arith.constant 0 : i32
    %c0_i32_1 = arith.constant 0 : i32
    return %c0_i32, %c0_i32_0 : i32, i32
  }
  func.func @transform_10(%arg0: i32) -> (i32, i32) {
    %c0_i32 = arith.constant 0 : i32
    %c0_i32_0 = arith.constant 0 : i32
    %c0_i32_1 = arith.constant 0 : i32
    return %c0_i32, %c0_i32_0 : i32, i32
  }
  func.func @transform_11(%arg0: i32) -> (i32, i32) {
    %c0_i32 = arith.constant 0 : i32
    %c0_i32_0 = arith.constant 0 : i32
    %c0_i32_1 = arith.constant 0 : i32
    return %c0_i32, %c0_i32_0 : i32, i32
  }
  func.func @transform_12(%arg0: i32) -> (i32, i32) {
    %c0_i32 = arith.constant 0 : i32
    %c0_i32_0 = arith.constant 0 : i32
    %c0_i32_1 = arith.constant 0 : i32
    return %c0_i32, %c0_i32_0 : i32, i32
  }
  func.func @transform_13(%arg0: i32) -> (i32, i32, i32, i32) {
    %c0_i32 = arith.constant 0 : i32
    %c0_i32_0 = arith.constant 0 : i32
    %c0_i32_1 = arith.constant 0 : i32
    %c0_i32_2 = arith.constant 0 : i32
    return %arg0, %c0_i32, %c0_i32_0, %c0_i32_1 : i32, i32, i32, i32
  }
}

</mosaic_0001>

<llo_original>
// kernel: tpu_custom_call.1
$region0: #{tpu_custom_call.1}
  #allocation0 [shape = 'u32[]', space=smem, size = 0x4, offset = 0x4, fixed_abs, tag = 'smem constant byte address 0x4 - core index']
  #allocation1 [shape = 'u32[144,128]{1,0:T(1,128)}', space=vmem, size = 0x12000, scoped, tag = 'internal scratch']
  #allocation2 [shape = 'f32[10,10,8]{2,1,0:T(8,128)}', space=vmem, size = 0x14000, scoped, tag = 'scratch operand']
  %s0 = inlined_call_operand.vmem [shape: f32[2,8,8,8], index: 0, kind: input, shape index: {}]
  %s1 = inlined_call_operand.hbm [shape: f32[2,8,8,8], index: 1, kind: input, shape index: {}]
  %s2 = inlined_call_operand.vmem [shape: bf16[72,8], index: 2, kind: input, shape index: {}]
  %s3 = inlined_call_operand.vmem [shape: f32[1,8], index: 3, kind: input, shape index: {}]
  %s4 = inlined_call_operand.vmem [shape: bf16[72,8], index: 4, kind: input, shape index: {}]
  %s5 = inlined_call_operand.vmem [shape: f32[1,8], index: 5, kind: input, shape index: {}]
  %s6 = inlined_call_operand.vmem [shape: bf16[72,8], index: 6, kind: input, shape index: {}]
  %s7 = inlined_call_operand.vmem [shape: f32[1,8], index: 7, kind: input, shape index: {}]
  %s8 = inlined_call_operand.vmem [shape: bf16[72,8], index: 8, kind: input, shape index: {}]
  %s9 = inlined_call_operand.vmem [shape: f32[1,8], index: 9, kind: input, shape index: {}]
  %s10 = inlined_call_operand.vmem [shape: bf16[8,8], index: 10, kind: input, shape index: {}]
  %s11 = inlined_call_operand.vmem [shape: f32[1,8], index: 11, kind: input, shape index: {}]
  %s12 = inlined_call_operand.vmem [shape: f32[16,8], index: 12, kind: input, shape index: {}]
  %s13 = inlined_call_operand.vmem [shape: f32[2,16,16,8], index: 13, kind: output, shape index: {}]
  %s14 = sld [smem:[#allocation0]]
  $region89: #{tpu_custom_call.1} parent=0
    _
  %s16 = ssub.s32 1, %s14
  %s17 = scalar_select 0, %s16, %s14
  $region1: #{tpu_custom_call.1} parent=0
    #allocation3 [shape = 'u8[65536]{0}', space=vmem, size = 0x10000, scoped, tag = 'input window, operand 1']
    #allocation4 [shape = 's32[2]{0}', space=sflag, size = 0x8, scoped, tag = 'scoped memory for tpu_custom_call.1']
    %18 = vsyncpa [#allocation4], 0
    %s19 = scalar_lea.sflag [#allocation4], 1
    %20 = vsyncpa %s19, 0
    loop: start=0, step=1, limit=4
    $region2: #{tpu_custom_call.1} parent=1 // loop_pre_header
      _
    $region3: #{tpu_custom_call.1} parent=1 // loop_header
      %s22 = sphi 0, %s26
      %p23 = scmp.ge.s32.totalorder %s22, 4
      %s32 = sphi 0, %s34
      %s35 = sphi 0, %s32
      %s36 = sphi 0, %s35
      %s52 = sphi 0, %s36
      %s58 = sphi 0, %s60
      %s61 = sphi 0, %s58
      %s62 = sphi 0, %s61
      %s78 = sphi 0, %s62
      %s82 = sphi 0, %s82
      %s84 = sphi 0, %s82
      %s85 = sphi 0, %s84
      %s99 = sphi 0, %s85
      %s103 = sphi 0, %s103
      %s105 = sphi 0, %s103
      %s106 = sphi 0, %s105
      %s120 = sphi 0, %s106
      %s124 = sphi 0, %s124
      %s126 = sphi 0, %s124
      %s127 = sphi 0, %s126
      %s141 = sphi 0, %s127
      %s145 = sphi 0, %s145
      %s147 = sphi 0, %s145
      %s148 = sphi 0, %s147
      %s162 = sphi 0, %s148
      %s166 = sphi 0, %s166
      %s168 = sphi 0, %s166
      %s169 = sphi 0, %s168
      %s183 = sphi 0, %s169
      %s187 = sphi 0, %s187
      %s189 = sphi 0, %s187
      %s190 = sphi 0, %s189
      %s204 = sphi 0, %s190
      %s208 = sphi 0, %s208
      %s210 = sphi 0, %s208
      %s211 = sphi 0, %s210
      %s225 = sphi 0, %s211
      %s229 = sphi 0, %s229
      %s231 = sphi 0, %s229
      %s232 = sphi 0, %s231
      %s246 = sphi 0, %s232
      %s250 = sphi 0, %s250
      %s252 = sphi 0, %s250
      %s253 = sphi 0, %s252
      %s267 = sphi 0, %s253
      %s271 = sphi 0, %s271
      %s273 = sphi 0, %s271
      %s274 = sphi 0, %s273
      %s288 = sphi 0, %s274
      %s292 = sphi 0, %s292
      %s294 = sphi 0, %s292
      %s295 = sphi 0, %s294
      %s309 = sphi 0, %s295
      %s315 = sphi 0, %s317
      %s318 = sphi 0, %s315
      %s319 = sphi 0, %s318
      %s335 = sphi 0, %s319
    $region4: #{tpu_custom_call.1} parent=1 // loop_header_branch
      %25 = sbr.rel (%p23) target = $region8
    $region5: #{tpu_custom_call.1} parent=1 // loop_body
      %s27 = ssub.s32 %s22, 1
      %s28 = ssub.s32 %s22, 2
      %s29 = sadd.s32 %s22, 1
      %s30 = ssub.s32 %s22, %s29
      %p31 = scmp.eq.s32.totalorder %s30, 0
      %s33 = sadd.s32 %s32, 1
      %s34 = scalar_select %p31, %s32, %s33
      %p37 = pneg %p31
      %p38 = scmp.eq.s32.totalorder %s22, 1
      %p39 = por %p37, %p38
      %p40 = scmp.ne.s32.totalorder %s32, %s35
      %p41 = scmp.eq.s32.totalorder %s22, 0
      %p42 = por %p40, %p41
      %p43 = scmp.ne.s32.totalorder %s32, %s35
      %p44 = scmp.eq.s32.totalorder %s27, 1
      %p45 = por %p43, %p44
      %p46 = scmp.ne.s32.totalorder %s35, %s36
      %p47 = scmp.eq.s32.totalorder %s27, 0
      %p48 = por %p46, %p47
      %p49 = scmp.ne.s32.totalorder %s35, %s36
      %p50 = scmp.eq.s32.totalorder %s28, 1
      %p51 = por %p49, %p50
      %p53 = scmp.ne.s32.totalorder %s36, %s52
      %p54 = scmp.eq.s32.totalorder %s28, 0
      %p55 = por %p53, %p54
      %s56 = ssub.s32 %s22, %s29
      %p57 = scmp.eq.s32.totalorder %s56, 0
      %s59 = sadd.s32 %s58, 1
      %s60 = scalar_select %p57, %s58, %s59
      %p63 = pneg %p57
      %p64 = scmp.eq.s32.totalorder %s22, 1
      %p65 = por %p63, %p64
      %p66 = scmp.ne.s32.totalorder %s58, %s61
      %p67 = scmp.eq.s32.totalorder %s22, 0
      %p68 = por %p66, %p67
      %p69 = scmp.ne.s32.totalorder %s58, %s61
      %p70 = scmp.eq.s32.totalorder %s27, 1
      %p71 = por %p69, %p70
      %p72 = scmp.ne.s32.totalorder %s61, %s62
      %p73 = scmp.eq.s32.totalorder %s27, 0
      %p74 = por %p72, %p73
      %p75 = scmp.ne.s32.totalorder %s61, %s62
      %p76 = scmp.eq.s32.totalorder %s28, 1
      %p77 = por %p75, %p76
      %p79 = scmp.ne.s32.totalorder %s62, %s78
      %p80 = scmp.eq.s32.totalorder %s28, 0
      %p81 = por %p79, %p80
      %s83 = sadd.s32 %s82, 1
      %p86 = scmp.eq.s32.totalorder %s22, 1
      %p87 = scmp.ne.s32.totalorder %s82, %s84
      %p88 = scmp.eq.s32.totalorder %s22, 0
      %p89 = por %p87, %p88
      %p90 = scmp.ne.s32.totalorder %s82, %s84
      %p91 = scmp.eq.s32.totalorder %s27, 1
      %p92 = por %p90, %p91
      %p93 = scmp.ne.s32.totalorder %s84, %s85
      %p94 = scmp.eq.s32.totalorder %s27, 0
      %p95 = por %p93, %p94
      %p96 = scmp.ne.s32.totalorder %s84, %s85
      %p97 = scmp.eq.s32.totalorder %s28, 1
      %p98 = por %p96, %p97
      %p100 = scmp.ne.s32.totalorder %s85, %s99
      %p101 = scmp.eq.s32.totalorder %s28, 0
      %p102 = por %p100, %p101
      %s104 = sadd.s32 %s103, 1
      %p107 = scmp.eq.s32.totalorder %s22, 1
      %p108 = scmp.ne.s32.totalorder %s103, %s105
      %p109 = scmp.eq.s32.totalorder %s22, 0
      %p110 = por %p108, %p109
      %p111 = scmp.ne.s32.totalorder %s103, %s105
      %p112 = scmp.eq.s32.totalorder %s27, 1
      %p113 = por %p111, %p112
      %p114 = scmp.ne.s32.totalorder %s105, %s106
      %p115 = scmp.eq.s32.totalorder %s27, 0
      %p116 = por %p114, %p115
      %p117 = scmp.ne.s32.totalorder %s105, %s106
      %p118 = scmp.eq.s32.totalorder %s28, 1
      %p119 = por %p117, %p118
      %p121 = scmp.ne.s32.totalorder %s106, %s120
      %p122 = scmp.eq.s32.totalorder %s28, 0
      %p123 = por %p121, %p122
      %s125 = sadd.s32 %s124, 1
      %p128 = scmp.eq.s32.totalorder %s22, 1
      %p129 = scmp.ne.s32.totalorder %s124, %s126
      %p130 = scmp.eq.s32.totalorder %s22, 0
      %p131 = por %p129, %p130
      %p132 = scmp.ne.s32.totalorder %s124, %s126
      %p133 = scmp.eq.s32.totalorder %s27, 1
      %p134 = por %p132, %p133
      %p135 = scmp.ne.s32.totalorder %s126, %s127
      %p136 = scmp.eq.s32.totalorder %s27, 0
      %p137 = por %p135, %p136
      %p138 = scmp.ne.s32.totalorder %s126, %s127
      %p139 = scmp.eq.s32.totalorder %s28, 1
      %p140 = por %p138, %p139
      %p142 = scmp.ne.s32.totalorder %s127, %s141
      %p143 = scmp.eq.s32.totalorder %s28, 0
      %p144 = por %p142, %p143
      %s146 = sadd.s32 %s145, 1
      %p149 = scmp.eq.s32.totalorder %s22, 1
      %p150 = scmp.ne.s32.totalorder %s145, %s147
      %p151 = scmp.eq.s32.totalorder %s22, 0
      %p152 = por %p150, %p151
      %p153 = scmp.ne.s32.totalorder %s145, %s147
      %p154 = scmp.eq.s32.totalorder %s27, 1
      %p155 = por %p153, %p154
      %p156 = scmp.ne.s32.totalorder %s147, %s148
      %p157 = scmp.eq.s32.totalorder %s27, 0
      %p158 = por %p156, %p157
      %p159 = scmp.ne.s32.totalorder %s147, %s148
      %p160 = scmp.eq.s32.totalorder %s28, 1
      %p161 = por %p159, %p160
      %p163 = scmp.ne.s32.totalorder %s148, %s162
      %p164 = scmp.eq.s32.totalorder %s28, 0
      %p165 = por %p163, %p164
      %s167 = sadd.s32 %s166, 1
      %p170 = scmp.eq.s32.totalorder %s22, 1
      %p171 = scmp.ne.s32.totalorder %s166, %s168
      %p172 = scmp.eq.s32.totalorder %s22, 0
      %p173 = por %p171, %p172
      %p174 = scmp.ne.s32.totalorder %s166, %s168
      %p175 = scmp.eq.s32.totalorder %s27, 1
      %p176 = por %p174, %p175
      %p177 = scmp.ne.s32.totalorder %s168, %s169
      %p178 = scmp.eq.s32.totalorder %s27, 0
      %p179 = por %p177, %p178
      %p180 = scmp.ne.s32.totalorder %s168, %s169
      %p181 = scmp.eq.s32.totalorder %s28, 1
      %p182 = por %p180, %p181
      %p184 = scmp.ne.s32.totalorder %s169, %s183
      %p185 = scmp.eq.s32.totalorder %s28, 0
      %p186 = por %p184, %p185
      %s188 = sadd.s32 %s187, 1
      %p191 = scmp.eq.s32.totalorder %s22, 1
      %p192 = scmp.ne.s32.totalorder %s187, %s189
      %p193 = scmp.eq.s32.totalorder %s22, 0
      %p194 = por %p192, %p193
      %p195 = scmp.ne.s32.totalorder %s187, %s189
      %p196 = scmp.eq.s32.totalorder %s27, 1
      %p197 = por %p195, %p196
      %p198 = scmp.ne.s32.totalorder %s189, %s190
      %p199 = scmp.eq.s32.totalorder %s27, 0
      %p200 = por %p198, %p199
      %p201 = scmp.ne.s32.totalorder %s189, %s190
      %p202 = scmp.eq.s32.totalorder %s28, 1
      %p203 = por %p201, %p202
      %p205 = scmp.ne.s32.totalorder %s190, %s204
      %p206 = scmp.eq.s32.totalorder %s28, 0
      %p207 = por %p205, %p206
      %s209 = sadd.s32 %s208, 1
      %p212 = scmp.eq.s32.totalorder %s22, 1
      %p213 = scmp.ne.s32.totalorder %s208, %s210
      %p214 = scmp.eq.s32.totalorder %s22, 0
      %p215 = por %p213, %p214
      %p216 = scmp.ne.s32.totalorder %s208, %s210
      %p217 = scmp.eq.s32.totalorder %s27, 1
      %p218 = por %p216, %p217
      %p219 = scmp.ne.s32.totalorder %s210, %s211
      %p220 = scmp.eq.s32.totalorder %s27, 0
      %p221 = por %p219, %p220
      %p222 = scmp.ne.s32.totalorder %s210, %s211
      %p223 = scmp.eq.s32.totalorder %s28, 1
      %p224 = por %p222, %p223
      %p226 = scmp.ne.s32.totalorder %s211, %s225
      %p227 = scmp.eq.s32.totalorder %s28, 0
      %p228 = por %p226, %p227
      %s230 = sadd.s32 %s229, 1
      %p233 = scmp.eq.s32.totalorder %s22, 1
      %p234 = scmp.ne.s32.totalorder %s229, %s231
      %p235 = scmp.eq.s32.totalorder %s22, 0
      %p236 = por %p234, %p235
      %p237 = scmp.ne.s32.totalorder %s229, %s231
      %p238 = scmp.eq.s32.totalorder %s27, 1
      %p239 = por %p237, %p238
      %p240 = scmp.ne.s32.totalorder %s231, %s232
      %p241 = scmp.eq.s32.totalorder %s27, 0
      %p242 = por %p240, %p241
      %p243 = scmp.ne.s32.totalorder %s231, %s232
      %p244 = scmp.eq.s32.totalorder %s28, 1
      %p245 = por %p243, %p244
      %p247 = scmp.ne.s32.totalorder %s232, %s246
      %p248 = scmp.eq.s32.totalorder %s28, 0
      %p249 = por %p247, %p248
      %s251 = sadd.s32 %s250, 1
      %p254 = scmp.eq.s32.totalorder %s22, 1
      %p255 = scmp.ne.s32.totalorder %s250, %s252
      %p256 = scmp.eq.s32.totalorder %s22, 0
      %p257 = por %p255, %p256
      %p258 = scmp.ne.s32.totalorder %s250, %s252
      %p259 = scmp.eq.s32.totalorder %s27, 1
      %p260 = por %p258, %p259
      %p261 = scmp.ne.s32.totalorder %s252, %s253
      %p262 = scmp.eq.s32.totalorder %s27, 0
      %p263 = por %p261, %p262
      %p264 = scmp.ne.s32.totalorder %s252, %s253
      %p265 = scmp.eq.s32.totalorder %s28, 1
      %p266 = por %p264, %p265
      %p268 = scmp.ne.s32.totalorder %s253, %s267
      %p269 = scmp.eq.s32.totalorder %s28, 0
      %p270 = por %p268, %p269
      %s272 = sadd.s32 %s271, 1
      %p275 = scmp.eq.s32.totalorder %s22, 1
      %p276 = scmp.ne.s32.totalorder %s271, %s273
      %p277 = scmp.eq.s32.totalorder %s22, 0
      %p278 = por %p276, %p277
      %p279 = scmp.ne.s32.totalorder %s271, %s273
      %p280 = scmp.eq.s32.totalorder %s27, 1
      %p281 = por %p279, %p280
      %p282 = scmp.ne.s32.totalorder %s273, %s274
      %p283 = scmp.eq.s32.totalorder %s27, 0
      %p284 = por %p282, %p283
      %p285 = scmp.ne.s32.totalorder %s273, %s274
      %p286 = scmp.eq.s32.totalorder %s28, 1
      %p287 = por %p285, %p286
      %p289 = scmp.ne.s32.totalorder %s274, %s288
      %p290 = scmp.eq.s32.totalorder %s28, 0
      %p291 = por %p289, %p290
      %s293 = sadd.s32 %s292, 1
      %p296 = scmp.eq.s32.totalorder %s22, 1
      %p297 = scmp.ne.s32.totalorder %s292, %s294
      %p298 = scmp.eq.s32.totalorder %s22, 0
      %p299 = por %p297, %p298
      %p300 = scmp.ne.s32.totalorder %s292, %s294
      %p301 = scmp.eq.s32.totalorder %s27, 1
      %p302 = por %p300, %p301
      %p303 = scmp.ne.s32.totalorder %s294, %s295
      %p304 = scmp.eq.s32.totalorder %s27, 0
      %p305 = por %p303, %p304
      %p306 = scmp.ne.s32.totalorder %s294, %s295
      %p307 = scmp.eq.s32.totalorder %s28, 1
      %p308 = por %p306, %p307
      %p310 = scmp.ne.s32.totalorder %s295, %s309
      %p311 = scmp.eq.s32.totalorder %s28, 0
      %p312 = por %p310, %p311
      %s313 = ssub.s32 %s22, %s29
      %p314 = scmp.eq.s32.totalorder %s313, 0
      %s316 = sadd.s32 %s315, 1
      %s317 = scalar_select %p314, %s315, %s316
      %p320 = pneg %p314
      %p321 = scmp.eq.s32.totalorder %s22, 1
      %p322 = por %p320, %p321
      %p323 = scmp.ne.s32.totalorder %s315, %s318
      %p324 = scmp.eq.s32.totalorder %s22, 0
      %p325 = por %p323, %p324
      %p326 = scmp.ne.s32.totalorder %s315, %s318
      %p327 = scmp.eq.s32.totalorder %s27, 1
      %p328 = por %p326, %p327
      %p329 = scmp.ne.s32.totalorder %s318, %s319
      %p330 = scmp.eq.s32.totalorder %s27, 0
      %p331 = por %p329, %p330
      %p332 = scmp.ne.s32.totalorder %s318, %s319
      %p333 = scmp.eq.s32.totalorder %s28, 1
      %p334 = por %p332, %p333
      %p336 = scmp.ne.s32.totalorder %s319, %s335
      %p337 = scmp.eq.s32.totalorder %s28, 0
      %p338 = por %p336, %p337
      %p339 = scmp.le.s32.totalorder 1, %s22
      %p340 = scmp.lt.s32.totalorder %s22, 3
      %p341 = pnand %p339, %p340
      %p342 = pneg %p341
      // Predicated region
      $region9: #{tpu_custom_call.1} parent=5 // pred_check
        _
      $region10: #{tpu_custom_call.1} parent=5 // pred_check_branch
        %344 = sbr.rel (%p341) target = $region12
      $region11: #{tpu_custom_call.1} parent=5 // pred_region
        %s345 = ssub.s32 %s22, 1
        // Predicated region
        $region13: #{tpu_custom_call.1} parent=11 // pred_check
          %p346 = pneg %p95
        $region14: #{tpu_custom_call.1} parent=11 // pred_check_branch
          %348 = sbr.rel (%p346) target = $region16
        $region15: #{tpu_custom_call.1} parent=11 // pred_region
          _
        $region16: #{tpu_custom_call.1} parent=11 // pred_fallthru
          _
        // Predicated region
        $region17: #{tpu_custom_call.1} parent=11 // pred_check
          %p349 = pneg %p116
        $region18: #{tpu_custom_call.1} parent=11 // pred_check_branch
          %351 = sbr.rel (%p349) target = $region20
        $region19: #{tpu_custom_call.1} parent=11 // pred_region
          _
        $region20: #{tpu_custom_call.1} parent=11 // pred_fallthru
          _
        // Predicated region
        $region21: #{tpu_custom_call.1} parent=11 // pred_check
          %p352 = pneg %p137
        $region22: #{tpu_custom_call.1} parent=11 // pred_check_branch
          %354 = sbr.rel (%p352) target = $region24
        $region23: #{tpu_custom_call.1} parent=11 // pred_region
          _
        $region24: #{tpu_custom_call.1} parent=11 // pred_fallthru
          _
        // Predicated region
        $region25: #{tpu_custom_call.1} parent=11 // pred_check
          %p355 = pneg %p158
        $region26: #{tpu_custom_call.1} parent=11 // pred_check_branch
          %357 = sbr.rel (%p355) target = $region28
        $region27: #{tpu_custom_call.1} parent=11 // pred_region
          _
        $region28: #{tpu_custom_call.1} parent=11 // pred_fallthru
          _
        // Predicated region
        $region29: #{tpu_custom_call.1} parent=11 // pred_check
          %p358 = pneg %p179
        $region30: #{tpu_custom_call.1} parent=11 // pred_check_branch
          %360 = sbr.rel (%p358) target = $region32
        $region31: #{tpu_custom_call.1} parent=11 // pred_region
          _
        $region32: #{tpu_custom_call.1} parent=11 // pred_fallthru
          _
        // Predicated region
        $region33: #{tpu_custom_call.1} parent=11 // pred_check
          %p361 = pneg %p200
        $region34: #{tpu_custom_call.1} parent=11 // pred_check_branch
          %363 = sbr.rel (%p361) target = $region36
        $region35: #{tpu_custom_call.1} parent=11 // pred_region
          _
        $region36: #{tpu_custom_call.1} parent=11 // pred_fallthru
          _
        // Predicated region
        $region37: #{tpu_custom_call.1} parent=11 // pred_check
          %p364 = pneg %p221
        $region38: #{tpu_custom_call.1} parent=11 // pred_check_branch
          %366 = sbr.rel (%p364) target = $region40
        $region39: #{tpu_custom_call.1} parent=11 // pred_region
          _
        $region40: #{tpu_custom_call.1} parent=11 // pred_fallthru
          _
        // Predicated region
        $region41: #{tpu_custom_call.1} parent=11 // pred_check
          %p367 = pneg %p242
        $region42: #{tpu_custom_call.1} parent=11 // pred_check_branch
          %369 = sbr.rel (%p367) target = $region44
        $region43: #{tpu_custom_call.1} parent=11 // pred_region
          _
        $region44: #{tpu_custom_call.1} parent=11 // pred_fallthru
          _
        // Predicated region
        $region45: #{tpu_custom_call.1} parent=11 // pred_check
          %p370 = pneg %p263
        $region46: #{tpu_custom_call.1} parent=11 // pred_check_branch
          %372 = sbr.rel (%p370) target = $region48
        $region47: #{tpu_custom_call.1} parent=11 // pred_region
          _
        $region48: #{tpu_custom_call.1} parent=11 // pred_fallthru
          _
        // Predicated region
        $region49: #{tpu_custom_call.1} parent=11 // pred_check
          %p373 = pneg %p284
        $region50: #{tpu_custom_call.1} parent=11 // pred_check_branch
          %375 = sbr.rel (%p373) target = $region52
        $region51: #{tpu_custom_call.1} parent=11 // pred_region
          _
        $region52: #{tpu_custom_call.1} parent=11 // pred_fallthru
          _
        // Predicated region
        $region53: #{tpu_custom_call.1} parent=11 // pred_check
          %p376 = pneg %p305
        $region54: #{tpu_custom_call.1} parent=11 // pred_check_branch
          %378 = sbr.rel (%p376) target = $region56
        $region55: #{tpu_custom_call.1} parent=11 // pred_region
          _
        $region56: #{tpu_custom_call.1} parent=11 // pred_fallthru
          _
      $region12: #{tpu_custom_call.1} parent=5 // pred_fallthru
        _
      %p379 = scmp.lt.s32.totalorder %s22, 2
      // Predicated region
      $region57: #{tpu_custom_call.1} parent=5 // pred_check
        %p380 = pneg %p379
      $region58: #{tpu_custom_call.1} parent=5 // pred_check_branch
        %382 = sbr.rel (%p380) target = $region60
      $region59: #{tpu_custom_call.1} parent=5 // pred_region
        // Predicated region
        $region61: #{tpu_custom_call.1} parent=59 // pred_check
          %p383 = pneg %p42
        $region62: #{tpu_custom_call.1} parent=59 // pred_check_branch
          %385 = sbr.rel (%p383) target = $region64
        $region63: #{tpu_custom_call.1} parent=59 // pred_region
          %p386 = scmp.lt.s32.totalorder %s22, 1
          %s387 = scalar_select %p386, %s22, 1
          %s388 = smul.addr %s387, 8
          %s389 = smul.addr %s388, 8
          %s390 = scalar_lea.vmem %s0, %s389
        $region64: #{tpu_custom_call.1} parent=59 // pred_fallthru
          _
        // Predicated region
        $region65: #{tpu_custom_call.1} parent=59 // pred_check
          %p391 = pneg %p68
        $region66: #{tpu_custom_call.1} parent=59 // pred_check_branch
          %393 = sbr.rel (%p391) target = $region68
        $region67: #{tpu_custom_call.1} parent=59 // pred_region
          %s394 = sand.u32 %s58, 1
          %s395 = scalar_lea.sflag [#allocation4], %s394
          %s396 = sand.u32 %s58, 1
          %s397 = smul.addr %s396, 64
          %s398 = scalar_lea.vmem [#allocation3], %s397
          %s400 = ssub.s32 1024, 1024
          %401 = vsyncadd %s395, %s400
          %s402 = smul.addr %s22, 8
          %s403 = smul.addr %s402, 128
          %s404 = scalar_lea.hbm %s1, %s403
          %s405 = sshll.u32 %s398, 4
          %s406 = int_to_ptr.vmem [resolvable:$true] %s405
          %411 = dma.hbm_to_vmem [thread:$0]  %s404, 1024, %s406, %s395, 128, 128, 8
        $region68: #{tpu_custom_call.1} parent=59 // pred_fallthru
          _
      $region60: #{tpu_custom_call.1} parent=5 // pred_fallthru
        _
      %p412 = scmp.le.s32.totalorder 1, %s22
      %p413 = scmp.lt.s32.totalorder %s22, 3
      %p414 = pnand %p412, %p413
      %p415 = pneg %p414
      // Predicated region
      $region69: #{tpu_custom_call.1} parent=5 // pred_check
        _
      $region70: #{tpu_custom_call.1} parent=5 // pred_check_branch
        %417 = sbr.rel (%p414) target = $region72
      $region71: #{tpu_custom_call.1} parent=5 // pred_region
        %s418 = ssub.s32 %s22, 1
        %s419 = sand.u32 %s61, 1
        %s420 = scalar_lea.sflag [#allocation4], %s419
        %s421 = sand.u32 %s61, 1
        %s422 = smul.addr %s421, 64
        %s423 = scalar_lea.vmem [#allocation3], %s422
        // Predicated region
        $region73: #{tpu_custom_call.1} parent=71 // pred_check
          %p424 = pneg %p74
        $region74: #{tpu_custom_call.1} parent=71 // pred_check_branch
          %426 = sbr.rel (%p424) target = $region76
        $region75: #{tpu_custom_call.1} parent=71 // pred_region
          %427 = dma.done %s420, 1024
        $region76: #{tpu_custom_call.1} parent=71 // pred_fallthru
          _
        %p428 = scmp.lt.s32.totalorder %s27, 1
        %s429 = scalar_select %p428, %s27, 1
        %s430 = smul.addr %s429, 8
        %s431 = smul.addr %s430, 8
        %s432 = scalar_lea.vmem %s0, %s431
        %p433 = pneg %p48
        %p434 = pneg %p45
        %s435 = sand.u32 %s61, 1
        %s436 = scalar_lea.sflag [#allocation4], %s435
        %s437 = sand.u32 %s61, 1
        %s438 = smul.addr %s437, 64
        %s439 = scalar_lea.vmem [#allocation3], %s438
        %p440 = pneg %p74
        %p441 = pneg %p71
        %p442 = pneg %p95
        %p443 = pneg %p92
        %p444 = pneg %p116
        %p445 = pneg %p113
        %p446 = pneg %p137
        %p447 = pneg %p134
        %p448 = pneg %p158
        %p449 = pneg %p155
        %p450 = pneg %p179
        %p451 = pneg %p176
        %p452 = pneg %p200
        %p453 = pneg %p197
        %p454 = pneg %p221
        %p455 = pneg %p218
        %p456 = pneg %p242
        %p457 = pneg %p239
        %p458 = pneg %p263
        %p459 = pneg %p260
        %p460 = pneg %p284
        %p461 = pneg %p281
        %p462 = pneg %p305
        %p463 = pneg %p302
        %p464 = pneg %p331
        %p465 = pneg %p328
        %p466 = scmp.lt.s32.totalorder %s27, 1
        %s467 = scalar_select %p466, %s27, 1
        %s468 = smul.addr %s467, 32
        %s469 = smul.addr %s468, 8
        %s470 = scalar_lea.vmem %s13, %s469
        %p471 = scmp.lt.s32.totalorder %s27, 1
        %s472 = scalar_select %p471, %s27, 1
        %s473 = smul.addr %s472, 8
        %s474 = smul.addr %s473, 8
        %s475 = scalar_lea.vmem %s0, %s474
        %p476 = scmp.lt.s32.totalorder %s27, 1
        %s477 = scalar_select %p476, %s27, 1
        %s478 = smul.addr %s477, 32
        %s479 = smul.addr %s478, 8
        %s480 = scalar_lea.vmem %s13, %s479
        %vm482 = vcmask 64512
        %483 = vst.msk [vmem:[#allocation2] sm:$0xff] %vm482, 0.0
        %vm484 = vcmask 58368
        %485 = vst.msk [vmem:[#allocation2 + $0x8] sm:$0x3] %vm484, 0.0
        %s486 = scalar_lea.vmem [#allocation2], 144
        %487 = vst.msk [vmem:[%s486] sm:$0xff] %vm482, 0.0
        %488 = vst.msk [vmem:[%s486 + $0x8] sm:$0x3] %vm484, 0.0
        %vm489 = vcmask 57344
        %490 = vst.msk [vmem:[#allocation2] sm:$0x1] %vm489, 0.0
        %491 = vst.msk [vmem:[#allocation2 + $0x10] sm:$0x1] %vm489, 0.0
        %492 = vst.msk [vmem:[#allocation2 + $0x20] sm:$0x1] %vm489, 0.0
        %493 = vst.msk [vmem:[#allocation2 + $0x30] sm:$0x1] %vm489, 0.0
        %494 = vst.msk [vmem:[#allocation2 + $0x40] sm:$0x1] %vm489, 0.0
        %495 = vst.msk [vmem:[#allocation2 + $0x50] sm:$0x1] %vm489, 0.0
        %496 = vst.msk [vmem:[#allocation2 + $0x60] sm:$0x1] %vm489, 0.0
        %497 = vst.msk [vmem:[#allocation2 + $0x70] sm:$0x1] %vm489, 0.0
        %498 = vst.msk [vmem:[#allocation2 + $0x80] sm:$0x1] %vm489, 0.0
        %499 = vst.msk [vmem:[#allocation2 + $0x90] sm:$0x1] %vm489, 0.0
        %500 = vst.msk [vmem:[#allocation2 + $0x9] sm:$0x1] %vm489, 0.0
        %501 = vst.msk [vmem:[#allocation2 + $0x19] sm:$0x1] %vm489, 0.0
        %502 = vst.msk [vmem:[#allocation2 + $0x29] sm:$0x1] %vm489, 0.0
        %503 = vst.msk [vmem:[#allocation2 + $0x39] sm:$0x1] %vm489, 0.0
        %504 = vst.msk [vmem:[#allocation2 + $0x49] sm:$0x1] %vm489, 0.0
        %505 = vst.msk [vmem:[#allocation2 + $0x59] sm:$0x1] %vm489, 0.0
        %506 = vst.msk [vmem:[#allocation2 + $0x69] sm:$0x1] %vm489, 0.0
        %507 = vst.msk [vmem:[#allocation2 + $0x79] sm:$0x1] %vm489, 0.0
        %508 = vst.msk [vmem:[#allocation2 + $0x89] sm:$0x1] %vm489, 0.0
        %509 = vst.msk [vmem:[#allocation2 + $0x99] sm:$0x1] %vm489, 0.0
        %v510 = vld [vmem:[%s475] sm:$0xff]
        %v511 = vld [vmem:[%s475 + $0x8] sm:$0xff]
        %v512 = vld [vmem:[%s475 + $0x10] sm:$0xff]
        %v513 = vld [vmem:[%s475 + $0x18] sm:$0xff]
        %v514 = vld [vmem:[%s475 + $0x20] sm:$0xff]
        %v515 = vld [vmem:[%s475 + $0x28] sm:$0xff]
        %v516 = vld [vmem:[%s475 + $0x30] sm:$0xff]
        %v517 = vld [vmem:[%s475 + $0x38] sm:$0xff]
        %v518 = vld [vmem:[%s423] sm:$0xff]
        %v519 = vld [vmem:[%s423 + $0x8] sm:$0xff]
        %v520 = vld [vmem:[%s423 + $0x10] sm:$0xff]
        %v521 = vld [vmem:[%s423 + $0x18] sm:$0xff]
        %v522 = vld [vmem:[%s423 + $0x20] sm:$0xff]
        %v523 = vld [vmem:[%s423 + $0x28] sm:$0xff]
        %v524 = vld [vmem:[%s423 + $0x30] sm:$0xff]
        %v525 = vld [vmem:[%s423 + $0x38] sm:$0xff]
        %v526 = vmax.f32 %v518, 0.0
        %v527 = vmax.f32 %v519, 0.0
        %v528 = vmax.f32 %v520, 0.0
        %v529 = vmax.f32 %v521, 0.0
        %v530 = vmax.f32 %v522, 0.0
        %v531 = vmax.f32 %v523, 0.0
        %v532 = vmax.f32 %v524, 0.0
        %v533 = vmax.f32 %v525, 0.0
        %s534 = scalar_lea.vmem [#allocation2], 16
        %535 = vst.msk [vmem:[%s534 + $0x1] sm:$0xff] %vm482, %v526
        %536 = vst.msk [vmem:[%s534 + $0x11] sm:$0xff] %vm482, %v527
        %537 = vst.msk [vmem:[%s534 + $0x21] sm:$0xff] %vm482, %v528
        %538 = vst.msk [vmem:[%s534 + $0x31] sm:$0xff] %vm482, %v529
        %539 = vst.msk [vmem:[%s534 + $0x41] sm:$0xff] %vm482, %v530
        %540 = vst.msk [vmem:[%s534 + $0x51] sm:$0xff] %vm482, %v531
        %541 = vst.msk [vmem:[%s534 + $0x61] sm:$0xff] %vm482, %v532
        %542 = vst.msk [vmem:[%s534 + $0x71] sm:$0xff] %vm482, %v533
        %v543 = vld [vmem:[#allocation2] sm:$0xff]
        %v544 = vld [vmem:[#allocation2 + $0x10] sm:$0xff]
        %v545 = vld [vmem:[#allocation2 + $0x20] sm:$0xff]
        %v546 = vld [vmem:[#allocation2 + $0x30] sm:$0xff]
        %v547 = vld [vmem:[#allocation2 + $0x40] sm:$0xff]
        %v548 = vld [vmem:[#allocation2 + $0x50] sm:$0xff]
        %v549 = vld [vmem:[#allocation2 + $0x60] sm:$0xff]
        %v550 = vld [vmem:[#allocation2 + $0x70] sm:$0xff]
        %v551 = vpack.c.bf16 %v544, %v543
        %v552 = vpack.c.bf16 %v546, %v545
        %v553 = vpack.c.bf16 %v548, %v547
        %v554 = vpack.c.bf16 %v550, %v549
        %v555 = vld [vmem:[%s2] sm:$0xf]
        %v556 = vld [vmem:[#allocation2 + $0x1] sm:$0xff]
        %v557 = vld [vmem:[#allocation2 + $0x11] sm:$0xff]
        %v558 = vld [vmem:[#allocation2 + $0x21] sm:$0xff]
        %v559 = vld [vmem:[#allocation2 + $0x31] sm:$0xff]
        %v560 = vld [vmem:[#allocation2 + $0x41] sm:$0xff]
        %v561 = vld [vmem:[#allocation2 + $0x51] sm:$0xff]
        %v562 = vld [vmem:[#allocation2 + $0x61] sm:$0xff]
        %v563 = vld [vmem:[#allocation2 + $0x71] sm:$0xff]
        %v564 = vpack.c.bf16 %v557, %v556
        %v565 = vpack.c.bf16 %v559, %v558
        %v566 = vpack.c.bf16 %v561, %v560
        %v567 = vpack.c.bf16 %v563, %v562
        %v568 = vld [vmem:[%s2 + $0x4] sm:$0xf]
        %v570 = vsel %vm482, %v564, 0
        %v573 = vsel %vm482, %v565, 0
        %v576 = vsel %vm482, %v566, 0
        %v579 = vsel %vm482, %v567, 0
        %vm581 = vcmask 1043456
        %v583 = vsel %vm581, %v568, 0
        %585 = vmatprep.subr.bf16.mxu0 0
        %586 = vmatpush1.bf16.msra.mxu0 %v583
        %587 = vmatprep.subr.bf16.mxu0 0
        %588 = vmatpush1.bf16.msra.mxu0 0
        %589 = vmatprep.subr.bf16.mxu0 0
        %590 = vmatpush1.bf16.msra.mxu0 0
        %591 = vmatprep.subr.bf16.mxu0 0
        %592 = vmatpush1.bf16.msra.mxu0 0
        %593 = vmatprep.subr.bf16.mxu0 0
        %594 = vmatpush1.bf16.msra.mxu0 0
        %595 = vmatprep.subr.bf16.mxu0 0
        %596 = vmatpush1.bf16.msra.mxu0 0
        %597 = vmatprep.subr.bf16.mxu0 0
        %598 = vmatpush1.bf16.msra.mxu0 0
        %599 = vmatprep.subr.bf16.mxu0 0
        %600 = vmatpush1.bf16.msra.mxu0 0
        %601 = vmatprep.subr.bf16.mxu0 0
        %602 = vmatpush1.bf16.msra.mxu0 0
        %603 = vmatprep.subr.bf16.mxu0 0
        %604 = vmatpush1.bf16.msra.mxu0 0
        %605 = vmatprep.subr.bf16.mxu0 0
        %606 = vmatpush1.bf16.msra.mxu0 0
        %607 = vmatprep.subr.bf16.mxu0 0
        %608 = vmatpush1.bf16.msra.mxu0 0
        %609 = vmatprep.subr.bf16.mxu0 0
        %610 = vmatpush1.bf16.msra.mxu0 0
        %611 = vmatprep.subr.bf16.mxu0 0
        %612 = vmatpush1.bf16.msra.mxu0 0
        %613 = vmatprep.subr.bf16.mxu0 0
        %614 = vmatpush1.bf16.msra.mxu0 0
        %615 = vmatprep.subr.bf16.mxu0 0
        %616 = vmatpush1.bf16.msra.mxu0 0
        %617 = vmatprep.mubr.bf16.mxu0 0
        %618 = vmatmul.mubr.bf16.gmra.mrb[0].mxu0 %v570
        %v619 = vpop.f32.mrb[0].mxu0
        %v620 = vadd.f32 0.0, %v619
        %v621 = vpop.f32.mrb[0].mxu0
        %v622 = vpop.f32.mrb[0].mxu0
        %v623 = vadd.f32 0.0, %v622
        %v624 = vpop.f32.mrb[0].mxu0
        %625 = vmatprep.mubr.bf16.mxu0 0
        %626 = vmatmul.mubr.bf16.gmra.mrb[0].mxu0 %v573
        %v627 = vpop.f32.mrb[0].mxu0
        %v628 = vadd.f32 0.0, %v627
        %v629 = vpop.f32.mrb[0].mxu0
        %v630 = vpop.f32.mrb[0].mxu0
        %v631 = vadd.f32 0.0, %v630
        %v632 = vpop.f32.mrb[0].mxu0
        %633 = vmatprep.mubr.bf16.mxu0 0
        %634 = vmatmul.mubr.bf16.gmra.mrb[0].mxu0 %v576
        %v635 = vpop.f32.mrb[0].mxu0
        %v636 = vadd.f32 0.0, %v635
        %v637 = vpop.f32.mrb[0].mxu0
        %v638 = vpop.f32.mrb[0].mxu0
        %v639 = vadd.f32 0.0, %v638
        %v640 = vpop.f32.mrb[0].mxu0
        %641 = vmatprep.mubr.bf16.mxu0 0
        %642 = vmatmul.mubr.bf16.gmra.mrb[0].mxu0 %v579
        %v643 = vpop.f32.mrb[0].mxu0
        %v644 = vadd.f32 0.0, %v643
        %v645 = vpop.f32.mrb[0].mxu0
        %v646 = vpop.f32.mrb[0].mxu0
        %v647 = vadd.f32 0.0, %v646
        %v648 = vpop.f32.mrb[0].mxu0
        %649 = vdwg.mxu0
        %v651 = vsel %vm482, %v551, 0
        %v654 = vsel %vm482, %v552, 0
        %v657 = vsel %vm482, %v553, 0
        %v660 = vsel %vm482, %v554, 0
        %v663 = vsel %vm581, %v555, 0
        %665 = vmatprep.subr.bf16.mxu0 0
        %666 = vmatpush1.bf16.msra.mxu0 %v663
        %667 = vmatprep.subr.bf16.mxu0 0
        %668 = vmatpush1.bf16.msra.mxu0 0
        %669 = vmatprep.subr.bf16.mxu0 0
        %670 = vmatpush1.bf16.msra.mxu0 0
        %671 = vmatprep.subr.bf16.mxu0 0
        %672 = vmatpush1.bf16.msra.mxu0 0
        %673 = vmatprep.subr.bf16.mxu0 0
        %674 = vmatpush1.bf16.msra.mxu0 0
        %675 = vmatprep.subr.bf16.mxu0 0
        %676 = vmatpush1.bf16.msra.mxu0 0
        %677 = vmatprep.subr.bf16.mxu0 0
        %678 = vmatpush1.bf16.msra.mxu0 0
        %679 = vmatprep.subr.bf16.mxu0 0
        %680 = vmatpush1.bf16.msra.mxu0 0
        %681 = vmatprep.subr.bf16.mxu0 0
        %682 = vmatpush1.bf16.msra.mxu0 0
        %683 = vmatprep.subr.bf16.mxu0 0
        %684 = vmatpush1.bf16.msra.mxu0 0
        %685 = vmatprep.subr.bf16.mxu0 0
        %686 = vmatpush1.bf16.msra.mxu0 0
        %687 = vmatprep.subr.bf16.mxu0 0
        %688 = vmatpush1.bf16.msra.mxu0 0
        %689 = vmatprep.subr.bf16.mxu0 0
        %690 = vmatpush1.bf16.msra.mxu0 0
        %691 = vmatprep.subr.bf16.mxu0 0
        %692 = vmatpush1.bf16.msra.mxu0 0
        %693 = vmatprep.subr.bf16.mxu0 0
        %694 = vmatpush1.bf16.msra.mxu0 0
        %695 = vmatprep.subr.bf16.mxu0 0
        %696 = vmatpush1.bf16.msra.mxu0 0
        %697 = vmatprep.mubr.bf16.mxu0 0
        %698 = vmatmul.mubr.bf16.gmra.mrb[0].mxu0 %v651
        %v699 = vpop.f32.mrb[0].mxu0
        %v700 = vadd.f32 %v620, %v699
        %v701 = vpop.f32.mrb[0].mxu0
        %v702 = vpop.f32.mrb[0].mxu0
        %v703 = vadd.f32 %v623, %v702
        %v704 = vpop.f32.mrb[0].mxu0
        %705 = vmatprep.mubr.bf16.mxu0 0
        %706 = vmatmul.mubr.bf16.gmra.mrb[0].mxu0 %v654
        %v707 = vpop.f32.mrb[0].mxu0
        %v708 = vadd.f32 %v628, %v707
        %v709 = vpop.f32.mrb[0].mxu0
        %v710 = vpop.f32.mrb[0].mxu0
        %v711 = vadd.f32 %v631, %v710
        %v712 = vpop.f32.mrb[0].mxu0
        %713 = vmatprep.mubr.bf16.mxu0 0
        %714 = vmatmul.mubr.bf16.gmra.mrb[0].mxu0 %v657
        %v715 = vpop.f32.mrb[0].mxu0
        %v716 = vadd.f32 %v636, %v715
        %v717 = vpop.f32.mrb[0].mxu0
        %v718 = vpop.f32.mrb[0].mxu0
        %v719 = vadd.f32 %v639, %v718
        %v720 = vpop.f32.mrb[0].mxu0
        %721 = vmatprep.mubr.bf16.mxu0 0
        %722 = vmatmul.mubr.bf16.gmra.mrb[0].mxu0 %v660
        %v723 = vpop.f32.mrb[0].mxu0
        %v724 = vadd.f32 %v644, %v723
        %v725 = vpop.f32.mrb[0].mxu0
        %v726 = vpop.f32.mrb[0].mxu0
        %v727 = vadd.f32 %v647, %v726
        %v728 = vpop.f32.mrb[0].mxu0
        %729 = vdwg.mxu0
        %v730 = vld [vmem:[#allocation2 + $0x2] sm:$0xff]
        %v731 = vld [vmem:[#allocation2 + $0x12] sm:$0xff]
        %v732 = vld [vmem:[#allocation2 + $0x22] sm:$0xff]
        %v733 = vld [vmem:[#allocation2 + $0x32] sm:$0xff]
        %v734 = vld [vmem:[#allocation2 + $0x42] sm:$0xff]
        %v735 = vld [vmem:[#allocation2 + $0x52] sm:$0xff]
        %v736 = vld [vmem:[#allocation2 + $0x62] sm:$0xff]
        %v737 = vld [vmem:[#allocation2 + $0x72] sm:$0xff]
        %v738 = vpack.c.bf16 %v731, %v730
        %v739 = vpack.c.bf16 %v733, %v732
        %v740 = vpack.c.bf16 %v735, %v734
        %v741 = vpack.c.bf16 %v737, %v736
        %v742 = vld [vmem:[%s2 + $0x8] sm:$0xf]
        %v744 = vsel %vm482, %v738, 0
        %v747 = vsel %vm482, %v739, 0
        %v750 = vsel %vm482, %v740, 0
        %v753 = vsel %vm482, %v741, 0
        %v756 = vsel %vm581, %v742, 0
        %758 = vmatprep.subr.bf16.mxu0 0
        %759 = vmatpush1.bf16.msra.mxu0 %v756
        %760 = vmatprep.subr.bf16.mxu0 0
        %761 = vmatpush1.bf16.msra.mxu0 0
        %762 = vmatprep.subr.bf16.mxu0 0
        %763 = vmatpush1.bf16.msra.mxu0 0
        %764 = vmatprep.subr.bf16.mxu0 0
        %765 = vmatpush1.bf16.msra.mxu0 0
        %766 = vmatprep.subr.bf16.mxu0 0
        %767 = vmatpush1.bf16.msra.mxu0 0
        %768 = vmatprep.subr.bf16.mxu0 0
        %769 = vmatpush1.bf16.msra.mxu0 0
        %770 = vmatprep.subr.bf16.mxu0 0
        %771 = vmatpush1.bf16.msra.mxu0 0
        %772 = vmatprep.subr.bf16.mxu0 0
        %773 = vmatpush1.bf16.msra.mxu0 0
        %774 = vmatprep.subr.bf16.mxu0 0
        %775 = vmatpush1.bf16.msra.mxu0 0
        %776 = vmatprep.subr.bf16.mxu0 0
        %777 = vmatpush1.bf16.msra.mxu0 0
        %778 = vmatprep.subr.bf16.mxu0 0
        %779 = vmatpush1.bf16.msra.mxu0 0
        %780 = vmatprep.subr.bf16.mxu0 0
        %781 = vmatpush1.bf16.msra.mxu0 0
        %782 = vmatprep.subr.bf16.mxu0 0
        %783 = vmatpush1.bf16.msra.mxu0 0
        %784 = vmatprep.subr.bf16.mxu0 0
        %785 = vmatpush1.bf16.msra.mxu0 0
        %786 = vmatprep.subr.bf16.mxu0 0
        %787 = vmatpush1.bf16.msra.mxu0 0
        %788 = vmatprep.subr.bf16.mxu0 0
        %789 = vmatpush1.bf16.msra.mxu0 0
        %790 = vmatprep.mubr.bf16.mxu0 0
        %791 = vmatmul.mubr.bf16.gmra.mrb[0].mxu0 %v744
        %v792 = vpop.f32.mrb[0].mxu0
        %v793 = vadd.f32 0.0, %v792
        %v794 = vpop.f32.mrb[0].mxu0
        %v795 = vpop.f32.mrb[0].mxu0
        %v796 = vadd.f32 0.0, %v795
        %v797 = vpop.f32.mrb[0].mxu0
        %798 = vmatprep.mubr.bf16.mxu0 0
        %799 = vmatmul.mubr.bf16.gmra.mrb[0].mxu0 %v747
        %v800 = vpop.f32.mrb[0].mxu0
        %v801 = vadd.f32 0.0, %v800
        %v802 = vpop.f32.mrb[0].mxu0
        %v803 = vpop.f32.mrb[0].mxu0
        %v804 = vadd.f32 0.0, %v803
        %v805 = vpop.f32.mrb[0].mxu0
        %806 = vmatprep.mubr.bf16.mxu0 0
        %807 = vmatmul.mubr.bf16.gmra.mrb[0].mxu0 %v750
        %v808 = vpop.f32.mrb[0].mxu0
        %v809 = vadd.f32 0.0, %v808
        %v810 = vpop.f32.mrb[0].mxu0
        %v811 = vpop.f32.mrb[0].mxu0
        %v812 = vadd.f32 0.0, %v811
        %v813 = vpop.f32.mrb[0].mxu0
        %814 = vmatprep.mubr.bf16.mxu0 0
        %815 = vmatmul.mubr.bf16.gmra.mrb[0].mxu0 %v753
        %v816 = vpop.f32.mrb[0].mxu0
        %v817 = vadd.f32 0.0, %v816
        %v818 = vpop.f32.mrb[0].mxu0
        %v819 = vpop.f32.mrb[0].mxu0
        %v820 = vadd.f32 0.0, %v819
        %v821 = vpop.f32.mrb[0].mxu0
        %822 = vdwg.mxu0
        %v823 = vadd.f32 %v700, %v793
        %v824 = vadd.f32 %v703, %v796
        %v825 = vadd.f32 %v708, %v801
        %v826 = vadd.f32 %v711, %v804
        %v827 = vadd.f32 %v716, %v809
        %v828 = vadd.f32 %v719, %v812
        %v829 = vadd.f32 %v724, %v817
        %v830 = vadd.f32 %v727, %v820
        %v831 = vld [vmem:[%s534] sm:$0xff]
        %v832 = vld [vmem:[%s534 + $0x10] sm:$0xff]
        %v833 = vld [vmem:[%s534 + $0x20] sm:$0xff]
        %v834 = vld [vmem:[%s534 + $0x30] sm:$0xff]
        %v835 = vld [vmem:[%s534 + $0x40] sm:$0xff]
        %v836 = vld [vmem:[%s534 + $0x50] sm:$0xff]
        %v837 = vld [vmem:[%s534 + $0x60] sm:$0xff]
        %v838 = vld [vmem:[%s534 + $0x70] sm:$0xff]
        %v839 = vpack.c.bf16 %v832, %v831
        %v840 = vpack.c.bf16 %v834, %v833
        %v841 = vpack.c.bf16 %v836, %v835
        %v842 = vpack.c.bf16 %v838, %v837
        %v843 = vld [vmem:[%s2 + $0xc] sm:$0xf]
        %v845 = vsel %vm482, %v839, 0
        %v848 = vsel %vm482, %v840, 0
        %v851 = vsel %vm482, %v841, 0
        %v854 = vsel %vm482, %v842, 0
        %v857 = vsel %vm581, %v843, 0
        %859 = vmatprep.subr.bf16.mxu0 0
        %860 = vmatpush1.bf16.msra.mxu0 %v857
        %861 = vmatprep.subr.bf16.mxu0 0
        %862 = vmatpush1.bf16.msra.mxu0 0
        %863 = vmatprep.subr.bf16.mxu0 0
        %864 = vmatpush1.bf16.msra.mxu0 0
        %865 = vmatprep.subr.bf16.mxu0 0
        %866 = vmatpush1.bf16.msra.mxu0 0
        %867 = vmatprep.subr.bf16.mxu0 0
        %868 = vmatpush1.bf16.msra.mxu0 0
        %869 = vmatprep.subr.bf16.mxu0 0
        %870 = vmatpush1.bf16.msra.mxu0 0
        %871 = vmatprep.subr.bf16.mxu0 0
        %872 = vmatpush1.bf16.msra.mxu0 0
        %873 = vmatprep.subr.bf16.mxu0 0
        %874 = vmatpush1.bf16.msra.mxu0 0
        %875 = vmatprep.subr.bf16.mxu0 0
        %876 = vmatpush1.bf16.msra.mxu0 0
        %877 = vmatprep.subr.bf16.mxu0 0
        %878 = vmatpush1.bf16.msra.mxu0 0
        %879 = vmatprep.subr.bf16.mxu0 0
        %880 = vmatpush1.bf16.msra.mxu0 0
        %881 = vmatprep.subr.bf16.mxu0 0
        %882 = vmatpush1.bf16.msra.mxu0 0
        %883 = vmatprep.subr.bf16.mxu0 0
        %884 = vmatpush1.bf16.msra.mxu0 0
        %885 = vmatprep.subr.bf16.mxu0 0
        %886 = vmatpush1.bf16.msra.mxu0 0
        %887 = vmatprep.subr.bf16.mxu0 0
        %888 = vmatpush1.bf16.msra.mxu0 0
        %889 = vmatprep.subr.bf16.mxu0 0
        %890 = vmatpush1.bf16.msra.mxu0 0
        %891 = vmatprep.mubr.bf16.mxu0 0
        %892 = vmatmul.mubr.bf16.gmra.mrb[0].mxu0 %v845
        %v893 = vpop.f32.mrb[0].mxu0
        %v894 = vadd.f32 0.0, %v893
        %v895 = vpop.f32.mrb[0].mxu0
        %v896 = vpop.f32.mrb[0].mxu0
        %v897 = vadd.f32 0.0, %v896
        %v898 = vpop.f32.mrb[0].mxu0
        %899 = vmatprep.mubr.bf16.mxu0 0
        %900 = vmatmul.mubr.bf16.gmra.mrb[0].mxu0 %v848
        %v901 = vpop.f32.mrb[0].mxu0
        %v902 = vadd.f32 0.0, %v901
        %v903 = vpop.f32.mrb[0].mxu0
        %v904 = vpop.f32.mrb[0].mxu0
        %v905 = vadd.f32 0.0, %v904
        %v906 = vpop.f32.mrb[0].mxu0
        %907 = vmatprep.mubr.bf16.mxu0 0
        %908 = vmatmul.mubr.bf16.gmra.mrb[0].mxu0 %v851
        %v909 = vpop.f32.mrb[0].mxu0
        %v910 = vadd.f32 0.0, %v909
        %v911 = vpop.f32.mrb[0].mxu0
        %v912 = vpop.f32.mrb[0].mxu0
        %v913 = vadd.f32 0.0, %v912
        %v914 = vpop.f32.mrb[0].mxu0
        %915 = vmatprep.mubr.bf16.mxu0 0
        %916 = vmatmul.mubr.bf16.gmra.mrb[0].mxu0 %v854
        %v917 = vpop.f32.mrb[0].mxu0
        %v918 = vadd.f32 0.0, %v917
        %v919 = vpop.f32.mrb[0].mxu0
        %v920 = vpop.f32.mrb[0].mxu0
        %v921 = vadd.f32 0.0, %v920
        %v922 = vpop.f32.mrb[0].mxu0
        %923 = vdwg.mxu0
        %v924 = vadd.f32 %v823, %v894
        %v925 = vadd.f32 %v824, %v897
        %v926 = vadd.f32 %v825, %v902
        %v927 = vadd.f32 %v826, %v905
        %v928 = vadd.f32 %v827, %v910
        %v929 = vadd.f32 %v828, %v913
        %v930 = vadd.f32 %v829, %v918
        %v931 = vadd.f32 %v830, %v921
        %v932 = vld [vmem:[%s534 + $0x1] sm:$0xff]
        %v933 = vld [vmem:[%s534 + $0x11] sm:$0xff]
        %v934 = vld [vmem:[%s534 + $0x21] sm:$0xff]
        %v935 = vld [vmem:[%s534 + $0x31] sm:$0xff]
        %v936 = vld [vmem:[%s534 + $0x41] sm:$0xff]
        %v937 = vld [vmem:[%s534 + $0x51] sm:$0xff]
        %v938 = vld [vmem:[%s534 + $0x61] sm:$0xff]
        %v939 = vld [vmem:[%s534 + $0x71] sm:$0xff]
        %v940 = vpack.c.bf16 %v933, %v932
        %v941 = vpack.c.bf16 %v935, %v934
        %v942 = vpack.c.bf16 %v937, %v936
        %v943 = vpack.c.bf16 %v939, %v938
        %v944 = vld [vmem:[%s2 + $0x10] sm:$0xf]
        %v946 = vsel %vm482, %v940, 0
        %v949 = vsel %vm482, %v941, 0
        %v952 = vsel %vm482, %v942, 0
        %v955 = vsel %vm482, %v943, 0
        %v958 = vsel %vm581, %v944, 0
        %960 = vmatprep.subr.bf16.mxu0 0
        %961 = vmatpush1.bf16.msra.mxu0 %v958
        %962 = vmatprep.subr.bf16.mxu0 0
        %963 = vmatpush1.bf16.msra.mxu0 0
        %964 = vmatprep.subr.bf16.mxu0 0
        %965 = vmatpush1.bf16.msra.mxu0 0
        %966 = vmatprep.subr.bf16.mxu0 0
        %967 = vmatpush1.bf16.msra.mxu0 0
        %968 = vmatprep.subr.bf16.mxu0 0
        %969 = vmatpush1.bf16.msra.mxu0 0
        %970 = vmatprep.subr.bf16.mxu0 0
        %971 = vmatpush1.bf16.msra.mxu0 0
        %972 = vmatprep.subr.bf16.mxu0 0
        %973 = vmatpush1.bf16.msra.mxu0 0
        %974 = vmatprep.subr.bf16.mxu0 0
        %975 = vmatpush1.bf16.msra.mxu0 0
        %976 = vmatprep.subr.bf16.mxu0 0
        %977 = vmatpush1.bf16.msra.mxu0 0
        %978 = vmatprep.subr.bf16.mxu0 0
        %979 = vmatpush1.bf16.msra.mxu0 0
        %980 = vmatprep.subr.bf16.mxu0 0
        %981 = vmatpush1.bf16.msra.mxu0 0
        %982 = vmatprep.subr.bf16.mxu0 0
        %983 = vmatpush1.bf16.msra.mxu0 0
        %984 = vmatprep.subr.bf16.mxu0 0
        %985 = vmatpush1.bf16.msra.mxu0 0
        %986 = vmatprep.subr.bf16.mxu0 0
        %987 = vmatpush1.bf16.msra.mxu0 0
        %988 = vmatprep.subr.bf16.mxu0 0
        %989 = vmatpush1.bf16.msra.mxu0 0
        %990 = vmatprep.subr.bf16.mxu0 0
        %991 = vmatpush1.bf16.msra.mxu0 0
        %992 = vmatprep.mubr.bf16.mxu0 0
        %993 = vmatmul.mubr.bf16.gmra.mrb[0].mxu0 %v946
        %v994 = vpop.f32.mrb[0].mxu0
        %v995 = vadd.f32 0.0, %v994
        %v996 = vpop.f32.mrb[0].mxu0
        %v997 = vpop.f32.mrb[0].mxu0
        %v998 = vadd.f32 0.0, %v997
        %v999 = vpop.f32.mrb[0].mxu0
        %1000 = vmatprep.mubr.bf16.mxu0 0
        %1001 = vmatmul.mubr.bf16.gmra.mrb[0].mxu0 %v949
        %v1002 = vpop.f32.mrb[0].mxu0
        %v1003 = vadd.f32 0.0, %v1002
        %v1004 = vpop.f32.mrb[0].mxu0
        %v1005 = vpop.f32.mrb[0].mxu0
        %v1006 = vadd.f32 0.0, %v1005
        %v1007 = vpop.f32.mrb[0].mxu0
        %1008 = vmatprep.mubr.bf16.mxu0 0
        %1009 = vmatmul.mubr.bf16.gmra.mrb[0].mxu0 %v952
        %v1010 = vpop.f32.mrb[0].mxu0
        %v1011 = vadd.f32 0.0, %v1010
        %v1012 = vpop.f32.mrb[0].mxu0
        %v1013 = vpop.f32.mrb[0].mxu0
        %v1014 = vadd.f32 0.0, %v1013
        %v1015 = vpop.f32.mrb[0].mxu0
        %1016 = vmatprep.mubr.bf16.mxu0 0
        %1017 = vmatmul.mubr.bf16.gmra.mrb[0].mxu0 %v955
        %v1018 = vpop.f32.mrb[0].mxu0
        %v1019 = vadd.f32 0.0, %v1018
        %v1020 = vpop.f32.mrb[0].mxu0
        %v1021 = vpop.f32.mrb[0].mxu0
        %v1022 = vadd.f32 0.0, %v1021
        %v1023 = vpop.f32.mrb[0].mxu0
        %1024 = vdwg.mxu0
        %v1025 = vadd.f32 %v924, %v995
        %v1026 = vadd.f32 %v925, %v998
        %v1027 = vadd.f32 %v926, %v1003
        %v1028 = vadd.f32 %v927, %v1006
        %v1029 = vadd.f32 %v928, %v1011
        %v1030 = vadd.f32 %v929, %v1014
        %v1031 = vadd.f32 %v930, %v1019
        %v1032 = vadd.f32 %v931, %v1022
        %v1033 = vld [vmem:[%s534 + $0x2] sm:$0xff]
        %v1034 = vld [vmem:[%s534 + $0x12] sm:$0xff]
        %v1035 = vld [vmem:[%s534 + $0x22] sm:$0xff]
        %v1036 = vld [vmem:[%s534 + $0x32] sm:$0xff]
        %v1037 = vld [vmem:[%s534 + $0x42] sm:$0xff]
        %v1038 = vld [vmem:[%s534 + $0x52] sm:$0xff]
        %v1039 = vld [vmem:[%s534 + $0x62] sm:$0xff]
        %v1040 = vld [vmem:[%s534 + $0x72] sm:$0xff]
        %v1041 = vpack.c.bf16 %v1034, %v1033
        %v1042 = vpack.c.bf16 %v1036, %v1035
        %v1043 = vpack.c.bf16 %v1038, %v1037
        %v1044 = vpack.c.bf16 %v1040, %v1039
        %v1045 = vld [vmem:[%s2 + $0x14] sm:$0xf]
        %v1047 = vsel %vm482, %v1041, 0
        %v1050 = vsel %vm482, %v1042, 0
        %v1053 = vsel %vm482, %v1043, 0
        %v1056 = vsel %vm482, %v1044, 0
        %v1059 = vsel %vm581, %v1045, 0
        %1061 = vmatprep.subr.bf16.mxu0 0
        %1062 = vmatpush1.bf16.msra.mxu0 %v1059
        %1063 = vmatprep.subr.bf16.mxu0 0
        %1064 = vmatpush1.bf16.msra.mxu0 0
        %1065 = vmatprep.subr.bf16.mxu0 0
        %1066 = vmatpush1.bf16.msra.mxu0 0
        %1067 = vmatprep.subr.bf16.mxu0 0
        %1068 = vmatpush1.bf16.msra.mxu0 0
        %1069 = vmatprep.subr.bf16.mxu0 0
        %1070 = vmatpush1.bf16.msra.mxu0 0
        %1071 = vmatprep.subr.bf16.mxu0 0
        %1072 = vmatpush1.bf16.msra.mxu0 0
        %1073 = vmatprep.subr.bf16.mxu0 0
        %1074 = vmatpush1.bf16.msra.mxu0 0
        %1075 = vmatprep.subr.bf16.mxu0 0
        %1076 = vmatpush1.bf16.msra.mxu0 0
        %1077 = vmatprep.subr.bf16.mxu0 0
        %1078 = vmatpush1.bf16.msra.mxu0 0
        %1079 = vmatprep.subr.bf16.mxu0 0
        %1080 = vmatpush1.bf16.msra.mxu0 0
        %1081 = vmatprep.subr.bf16.mxu0 0
        %1082 = vmatpush1.bf16.msra.mxu0 0
        %1083 = vmatprep.subr.bf16.mxu0 0
        %1084 = vmatpush1.bf16.msra.mxu0 0
        %1085 = vmatprep.subr.bf16.mxu0 0
        %1086 = vmatpush1.bf16.msra.mxu0 0
        %1087 = vmatprep.subr.bf16.mxu0 0
        %1088 = vmatpush1.bf16.msra.mxu0 0
        %1089 = vmatprep.subr.bf16.mxu0 0
        %1090 = vmatpush1.bf16.msra.mxu0 0
        %1091 = vmatprep.subr.bf16.mxu0 0
        %1092 = vmatpush1.bf16.msra.mxu0 0
        %1093 = vmatprep.mubr.bf16.mxu0 0
        %1094 = vmatmul.mubr.bf16.gmra.mrb[0].mxu0 %v1047
        %v1095 = vpop.f32.mrb[0].mxu0
        %v1096 = vadd.f32 0.0, %v1095
        %v1097 = vpop.f32.mrb[0].mxu0
        %v1098 = vpop.f32.mrb[0].mxu0
        %v1099 = vadd.f32 0.0, %v1098
        %v1100 = vpop.f32.mrb[0].mxu0
        %1101 = vmatprep.mubr.bf16.mxu0 0
        %1102 = vmatmul.mubr.bf16.gmra.mrb[0].mxu0 %v1050
        %v1103 = vpop.f32.mrb[0].mxu0
        %v1104 = vadd.f32 0.0, %v1103
        %v1105 = vpop.f32.mrb[0].mxu0
        %v1106 = vpop.f32.mrb[0].mxu0
        %v1107 = vadd.f32 0.0, %v1106
        %v1108 = vpop.f32.mrb[0].mxu0
        %1109 = vmatprep.mubr.bf16.mxu0 0
        %1110 = vmatmul.mubr.bf16.gmra.mrb[0].mxu0 %v1053
        %v1111 = vpop.f32.mrb[0].mxu0
        %v1112 = vadd.f32 0.0, %v1111
        %v1113 = vpop.f32.mrb[0].mxu0
        %v1114 = vpop.f32.mrb[0].mxu0
        %v1115 = vadd.f32 0.0, %v1114
        %v1116 = vpop.f32.mrb[0].mxu0
        %1117 = vmatprep.mubr.bf16.mxu0 0
        %1118 = vmatmul.mubr.bf16.gmra.mrb[0].mxu0 %v1056
        %v1119 = vpop.f32.mrb[0].mxu0
        %v1120 = vadd.f32 0.0, %v1119
        %v1121 = vpop.f32.mrb[0].mxu0
        %v1122 = vpop.f32.mrb[0].mxu0
        %v1123 = vadd.f32 0.0, %v1122
        %v1124 = vpop.f32.mrb[0].mxu0
        %1125 = vdwg.mxu0
        %v1126 = vadd.f32 %v1025, %v1096
        %v1127 = vadd.f32 %v1026, %v1099
        %v1128 = vadd.f32 %v1027, %v1104
        %v1129 = vadd.f32 %v1028, %v1107
        %v1130 = vadd.f32 %v1029, %v1112
        %v1131 = vadd.f32 %v1030, %v1115
        %v1132 = vadd.f32 %v1031, %v1120
        %v1133 = vadd.f32 %v1032, %v1123
        %s1134 = scalar_lea.vmem [#allocation2], 32
        %v1135 = vld [vmem:[%s1134] sm:$0xff]
        %v1136 = vld [vmem:[%s1134 + $0x10] sm:$0xff]
        %v1137 = vld [vmem:[%s1134 + $0x20] sm:$0xff]
        %v1138 = vld [vmem:[%s1134 + $0x30] sm:$0xff]
        %v1139 = vld [vmem:[%s1134 + $0x40] sm:$0xff]
        %v1140 = vld [vmem:[%s1134 + $0x50] sm:$0xff]
        %v1141 = vld [vmem:[%s1134 + $0x60] sm:$0xff]
        %v1142 = vld [vmem:[%s1134 + $0x70] sm:$0xff]
        %v1143 = vpack.c.bf16 %v1136, %v1135
        %v1144 = vpack.c.bf16 %v1138, %v1137
        %v1145 = vpack.c.bf16 %v1140, %v1139
        %v1146 = vpack.c.bf16 %v1142, %v1141
        %v1147 = vld [vmem:[%s2 + $0x18] sm:$0xf]
        %v1149 = vsel %vm482, %v1143, 0
        %v1152 = vsel %vm482, %v1144, 0
        %v1155 = vsel %vm482, %v1145, 0
        %v1158 = vsel %vm482, %v1146, 0
        %v1161 = vsel %vm581, %v1147, 0
        %1163 = vmatprep.subr.bf16.mxu0 0
        %1164 = vmatpush1.bf16.msra.mxu0 %v1161
        %1165 = vmatprep.subr.bf16.mxu0 0
        %1166 = vmatpush1.bf16.msra.mxu0 0
        %1167 = vmatprep.subr.bf16.mxu0 0
        %1168 = vmatpush1.bf16.msra.mxu0 0
        %1169 = vmatprep.subr.bf16.mxu0 0
        %1170 = vmatpush1.bf16.msra.mxu0 0
        %1171 = vmatprep.subr.bf16.mxu0 0
        %1172 = vmatpush1.bf16.msra.mxu0 0
        %1173 = vmatprep.subr.bf16.mxu0 0
        %1174 = vmatpush1.bf16.msra.mxu0 0
        %1175 = vmatprep.subr.bf16.mxu0 0
        %1176 = vmatpush1.bf16.msra.mxu0 0
        %1177 = vmatprep.subr.bf16.mxu0 0
        %1178 = vmatpush1.bf16.msra.mxu0 0
        %1179 = vmatprep.subr.bf16.mxu0 0
        %1180 = vmatpush1.bf16.msra.mxu0 0
        %1181 = vmatprep.subr.bf16.mxu0 0
        %1182 = vmatpush1.bf16.msra.mxu0 0
        %1183 = vmatprep.subr.bf16.mxu0 0
        %1184 = vmatpush1.bf16.msra.mxu0 0
        %1185 = vmatprep.subr.bf16.mxu0 0
        %1186 = vmatpush1.bf16.msra.mxu0 0
        %1187 = vmatprep.subr.bf16.mxu0 0
        %1188 = vmatpush1.bf16.msra.mxu0 0
        %1189 = vmatprep.subr.bf16.mxu0 0
        %1190 = vmatpush1.bf16.msra.mxu0 0
        %1191 = vmatprep.subr.bf16.mxu0 0
        %1192 = vmatpush1.bf16.msra.mxu0 0
        %1193 = vmatprep.subr.bf16.mxu0 0
        %1194 = vmatpush1.bf16.msra.mxu0 0
        %1195 = vmatprep.mubr.bf16.mxu0 0
        %1196 = vmatmul.mubr.bf16.gmra.mrb[0].mxu0 %v1149
        %v1197 = vpop.f32.mrb[0].mxu0
        %v1198 = vadd.f32 0.0, %v1197
        %v1199 = vpop.f32.mrb[0].mxu0
        %v1200 = vpop.f32.mrb[0].mxu0
        %v1201 = vadd.f32 0.0, %v1200
        %v1202 = vpop.f32.mrb[0].mxu0
        %1203 = vmatprep.mubr.bf16.mxu0 0
        %1204 = vmatmul.mubr.bf16.gmra.mrb[0].mxu0 %v1152
        %v1205 = vpop.f32.mrb[0].mxu0
        %v1206 = vadd.f32 0.0, %v1205
        %v1207 = vpop.f32.mrb[0].mxu0
        %v1208 = vpop.f32.mrb[0].mxu0
        %v1209 = vadd.f32 0.0, %v1208
        %v1210 = vpop.f32.mrb[0].mxu0
        %1211 = vmatprep.mubr.bf16.mxu0 0
        %1212 = vmatmul.mubr.bf16.gmra.mrb[0].mxu0 %v1155
        %v1213 = vpop.f32.mrb[0].mxu0
        %v1214 = vadd.f32 0.0, %v1213
        %v1215 = vpop.f32.mrb[0].mxu0
        %v1216 = vpop.f32.mrb[0].mxu0
        %v1217 = vadd.f32 0.0, %v1216
        %v1218 = vpop.f32.mrb[0].mxu0
        %1219 = vmatprep.mubr.bf16.mxu0 0
        %1220 = vmatmul.mubr.bf16.gmra.mrb[0].mxu0 %v1158
        %v1221 = vpop.f32.mrb[0].mxu0
        %v1222 = vadd.f32 0.0, %v1221
        %v1223 = vpop.f32.mrb[0].mxu0
        %v1224 = vpop.f32.mrb[0].mxu0
        %v1225 = vadd.f32 0.0, %v1224
        %v1226 = vpop.f32.mrb[0].mxu0
        %1227 = vdwg.mxu0
        %v1228 = vadd.f32 %v1126, %v1198
        %v1229 = vadd.f32 %v1127, %v1201
        %v1230 = vadd.f32 %v1128, %v1206
        %v1231 = vadd.f32 %v1129, %v1209
        %v1232 = vadd.f32 %v1130, %v1214
        %v1233 = vadd.f32 %v1131, %v1217
        %v1234 = vadd.f32 %v1132, %v1222
        %v1235 = vadd.f32 %v1133, %v1225
        %v1236 = vld [vmem:[%s1134 + $0x1] sm:$0xff]
        %v1237 = vld [vmem:[%s1134 + $0x11] sm:$0xff]
        %v1238 = vld [vmem:[%s1134 + $0x21] sm:$0xff]
        %v1239 = vld [vmem:[%s1134 + $0x31] sm:$0xff]
        %v1240 = vld [vmem:[%s1134 + $0x41] sm:$0xff]
        %v1241 = vld [vmem:[%s1134 + $0x51] sm:$0xff]
        %v1242 = vld [vmem:[%s1134 + $0x61] sm:$0xff]
        %v1243 = vld [vmem:[%s1134 + $0x71] sm:$0xff]
        %v1244 = vpack.c.bf16 %v1237, %v1236
        %v1245 = vpack.c.bf16 %v1239, %v1238
        %v1246 = vpack.c.bf16 %v1241, %v1240
        %v1247 = vpack.c.bf16 %v1243, %v1242
        %v1248 = vld [vmem:[%s2 + $0x1c] sm:$0xf]
        %v1250 = vsel %vm482, %v1244, 0
        %v1253 = vsel %vm482, %v1245, 0
        %v1256 = vsel %vm482, %v1246, 0
        %v1259 = vsel %vm482, %v1247, 0
        %v1262 = vsel %vm581, %v1248, 0
        %1264 = vmatprep.subr.bf16.mxu0 0
        %1265 = vmatpush1.bf16.msra.mxu0 %v1262
        %1266 = vmatprep.subr.bf16.mxu0 0
        %1267 = vmatpush1.bf16.msra.mxu0 0
        %1268 = vmatprep.subr.bf16.mxu0 0
        %1269 = vmatpush1.bf16.msra.mxu0 0
        %1270 = vmatprep.subr.bf16.mxu0 0
        %1271 = vmatpush1.bf16.msra.mxu0 0
        %1272 = vmatprep.subr.bf16.mxu0 0
        %1273 = vmatpush1.bf16.msra.mxu0 0
        %1274 = vmatprep.subr.bf16.mxu0 0
        %1275 = vmatpush1.bf16.msra.mxu0 0
        %1276 = vmatprep.subr.bf16.mxu0 0
        %1277 = vmatpush1.bf16.msra.mxu0 0
        %1278 = vmatprep.subr.bf16.mxu0 0
        %1279 = vmatpush1.bf16.msra.mxu0 0
        %1280 = vmatprep.subr.bf16.mxu0 0
        %1281 = vmatpush1.bf16.msra.mxu0 0
        %1282 = vmatprep.subr.bf16.mxu0 0
        %1283 = vmatpush1.bf16.msra.mxu0 0
        %1284 = vmatprep.subr.bf16.mxu0 0
        %1285 = vmatpush1.bf16.msra.mxu0 0
        %1286 = vmatprep.subr.bf16.mxu0 0
        %1287 = vmatpush1.bf16.msra.mxu0 0
        %1288 = vmatprep.subr.bf16.mxu0 0
        %1289 = vmatpush1.bf16.msra.mxu0 0
        %1290 = vmatprep.subr.bf16.mxu0 0
        %1291 = vmatpush1.bf16.msra.mxu0 0
        %1292 = vmatprep.subr.bf16.mxu0 0
        %1293 = vmatpush1.bf16.msra.mxu0 0
        %1294 = vmatprep.subr.bf16.mxu0 0
        %1295 = vmatpush1.bf16.msra.mxu0 0
        %1296 = vmatprep.mubr.bf16.mxu0 0
        %1297 = vmatmul.mubr.bf16.gmra.mrb[0].mxu0 %v1250
        %v1298 = vpop.f32.mrb[0].mxu0
        %v1299 = vadd.f32 0.0, %v1298
        %v1300 = vpop.f32.mrb[0].mxu0
        %v1301 = vpop.f32.mrb[0].mxu0
        %v1302 = vadd.f32 0.0, %v1301
        %v1303 = vpop.f32.mrb[0].mxu0
        %1304 = vmatprep.mubr.bf16.mxu0 0
        %1305 = vmatmul.mubr.bf16.gmra.mrb[0].mxu0 %v1253
        %v1306 = vpop.f32.mrb[0].mxu0
        %v1307 = vadd.f32 0.0, %v1306
        %v1308 = vpop.f32.mrb[0].mxu0
        %v1309 = vpop.f32.mrb[0].mxu0
        %v1310 = vadd.f32 0.0, %v1309
        %v1311 = vpop.f32.mrb[0].mxu0
        %1312 = vmatprep.mubr.bf16.mxu0 0
        %1313 = vmatmul.mubr.bf16.gmra.mrb[0].mxu0 %v1256
        %v1314 = vpop.f32.mrb[0].mxu0
        %v1315 = vadd.f32 0.0, %v1314
        %v1316 = vpop.f32.mrb[0].mxu0
        %v1317 = vpop.f32.mrb[0].mxu0
        %v1318 = vadd.f32 0.0, %v1317
        %v1319 = vpop.f32.mrb[0].mxu0
        %1320 = vmatprep.mubr.bf16.mxu0 0
        %1321 = vmatmul.mubr.bf16.gmra.mrb[0].mxu0 %v1259
        %v1322 = vpop.f32.mrb[0].mxu0
        %v1323 = vadd.f32 0.0, %v1322
        %v1324 = vpop.f32.mrb[0].mxu0
        %v1325 = vpop.f32.mrb[0].mxu0
        %v1326 = vadd.f32 0.0, %v1325
        %v1327 = vpop.f32.mrb[0].mxu0
        %1328 = vdwg.mxu0
        %v1329 = vadd.f32 %v1228, %v1299
        %v1330 = vadd.f32 %v1229, %v1302
        %v1331 = vadd.f32 %v1230, %v1307
        %v1332 = vadd.f32 %v1231, %v1310
        %v1333 = vadd.f32 %v1232, %v1315
        %v1334 = vadd.f32 %v1233, %v1318
        %v1335 = vadd.f32 %v1234, %v1323
        %v1336 = vadd.f32 %v1235, %v1326
        %v1337 = vld [vmem:[%s1134 + $0x2] sm:$0xff]
        %v1338 = vld [vmem:[%s1134 + $0x12] sm:$0xff]
        %v1339 = vld [vmem:[%s1134 + $0x22] sm:$0xff]
        %v1340 = vld [vmem:[%s1134 + $0x32] sm:$0xff]
        %v1341 = vld [vmem:[%s1134 + $0x42] sm:$0xff]
        %v1342 = vld [vmem:[%s1134 + $0x52] sm:$0xff]
        %v1343 = vld [vmem:[%s1134 + $0x62] sm:$0xff]
        %v1344 = vld [vmem:[%s1134 + $0x72] sm:$0xff]
        %v1345 = vpack.c.bf16 %v1338, %v1337
        %v1346 = vpack.c.bf16 %v1340, %v1339
        %v1347 = vpack.c.bf16 %v1342, %v1341
        %v1348 = vpack.c.bf16 %v1344, %v1343
        %v1349 = vld [vmem:[%s2 + $0x20] sm:$0xf]
        %v1351 = vsel %vm482, %v1345, 0
        %v1354 = vsel %vm482, %v1346, 0
        %v1357 = vsel %vm482, %v1347, 0
        %v1360 = vsel %vm482, %v1348, 0
        %v1363 = vsel %vm581, %v1349, 0
        %1365 = vmatprep.subr.bf16.mxu0 0
        %1366 = vmatpush1.bf16.msra.mxu0 %v1363
        %1367 = vmatprep.subr.bf16.mxu0 0
        %1368 = vmatpush1.bf16.msra.mxu0 0
        %1369 = vmatprep.subr.bf16.mxu0 0
        %1370 = vmatpush1.bf16.msra.mxu0 0
        %1371 = vmatprep.subr.bf16.mxu0 0
        %1372 = vmatpush1.bf16.msra.mxu0 0
        %1373 = vmatprep.subr.bf16.mxu0 0
        %1374 = vmatpush1.bf16.msra.mxu0 0
        %1375 = vmatprep.subr.bf16.mxu0 0
        %1376 = vmatpush1.bf16.msra.mxu0 0
        %1377 = vmatprep.subr.bf16.mxu0 0
        %1378 = vmatpush1.bf16.msra.mxu0 0
        %1379 = vmatprep.subr.bf16.mxu0 0
        %1380 = vmatpush1.bf16.msra.mxu0 0
        %1381 = vmatprep.subr.bf16.mxu0 0
        %1382 = vmatpush1.bf16.msra.mxu0 0
        %1383 = vmatprep.subr.bf16.mxu0 0
        %1384 = vmatpush1.bf16.msra.mxu0 0
        %1385 = vmatprep.subr.bf16.mxu0 0
        %1386 = vmatpush1.bf16.msra.mxu0 0
        %1387 = vmatprep.subr.bf16.mxu0 0
        %1388 = vmatpush1.bf16.msra.mxu0 0
        %1389 = vmatprep.subr.bf16.mxu0 0
        %1390 = vmatpush1.bf16.msra.mxu0 0
        %1391 = vmatprep.subr.bf16.mxu0 0
        %1392 = vmatpush1.bf16.msra.mxu0 0
        %1393 = vmatprep.subr.bf16.mxu0 0
        %1394 = vmatpush1.bf16.msra.mxu0 0
        %1395 = vmatprep.subr.bf16.mxu0 0
        %1396 = vmatpush1.bf16.msra.mxu0 0
        %1397 = vmatprep.mubr.bf16.mxu0 0
        %1398 = vmatmul.mubr.bf16.gmra.mrb[0].mxu0 %v1351
        %v1399 = vpop.f32.mrb[0].mxu0
        %v1400 = vadd.f32 0.0, %v1399
        %v1401 = vpop.f32.mrb[0].mxu0
        %v1402 = vpop.f32.mrb[0].mxu0
        %v1403 = vadd.f32 0.0, %v1402
        %v1404 = vpop.f32.mrb[0].mxu0
        %1405 = vmatprep.mubr.bf16.mxu0 0
        %1406 = vmatmul.mubr.bf16.gmra.mrb[0].mxu0 %v1354
        %v1407 = vpop.f32.mrb[0].mxu0
        %v1408 = vadd.f32 0.0, %v1407
        %v1409 = vpop.f32.mrb[0].mxu0
        %v1410 = vpop.f32.mrb[0].mxu0
        %v1411 = vadd.f32 0.0, %v1410
        %v1412 = vpop.f32.mrb[0].mxu0
        %1413 = vmatprep.mubr.bf16.mxu0 0
        %1414 = vmatmul.mubr.bf16.gmra.mrb[0].mxu0 %v1357
        %v1415 = vpop.f32.mrb[0].mxu0
        %v1416 = vadd.f32 0.0, %v1415
        %v1417 = vpop.f32.mrb[0].mxu0
        %v1418 = vpop.f32.mrb[0].mxu0
        %v1419 = vadd.f32 0.0, %v1418
        %v1420 = vpop.f32.mrb[0].mxu0
        %1421 = vmatprep.mubr.bf16.mxu0 0
        %1422 = vmatmul.mubr.bf16.gmra.mrb[0].mxu0 %v1360
        %v1423 = vpop.f32.mrb[0].mxu0
        %v1424 = vadd.f32 0.0, %v1423
        %v1425 = vpop.f32.mrb[0].mxu0
        %v1426 = vpop.f32.mrb[0].mxu0
        %v1427 = vadd.f32 0.0, %v1426
        %v1428 = vpop.f32.mrb[0].mxu0
        %1429 = vdwg.mxu0
        %v1430 = vadd.f32 %v1329, %v1400
        %v1431 = vadd.f32 %v1330, %v1403
        %v1432 = vadd.f32 %v1331, %v1408
        %v1433 = vadd.f32 %v1332, %v1411
        %v1434 = vadd.f32 %v1333, %v1416
        %v1435 = vadd.f32 %v1334, %v1419
        %v1436 = vadd.f32 %v1335, %v1424
        %v1437 = vadd.f32 %v1336, %v1427
        %v1438 = vld [vmem:[%s3] sm:$0x1]
        %v1440 = vlaneseq
        %v1441 = vshrl.u32 %v1440, 7
        %v1442 = vsub.s32 0, %v1441
        %v1443 = vrot.slane %v1438, %v1442
        %v1445 = vadd.f32 %v1430, %v1443
        %v1446 = vadd.f32 %v1431, %v1443
        %v1447 = vadd.f32 %v1432, %v1443
        %v1448 = vadd.f32 %v1433, %v1443
        %v1449 = vadd.f32 %v1434, %v1443
        %v1450 = vadd.f32 %v1435, %v1443
        %v1451 = vadd.f32 %v1436, %v1443
        %v1452 = vadd.f32 %v1437, %v1443
        %v1453 = vmax.f32 %v1445, 0.0
        %v1454 = vmax.f32 %v1446, 0.0
        %v1455 = vmax.f32 %v1447, 0.0
        %v1456 = vmax.f32 %v1448, 0.0
        %v1457 = vmax.f32 %v1449, 0.0
        %v1458 = vmax.f32 %v1450, 0.0
        %v1459 = vmax.f32 %v1451, 0.0
        %v1460 = vmax.f32 %v1452, 0.0
        %1461 = vst.msk [vmem:[%s534 + $0x1] sm:$0xff] %vm482, %v1453
        %1462 = vst.msk [vmem:[%s534 + $0x11] sm:$0xff] %vm482, %v1454
        %1463 = vst.msk [vmem:[%s534 + $0x21] sm:$0xff] %vm482, %v1455
        %1464 = vst.msk [vmem:[%s534 + $0x31] sm:$0xff] %vm482, %v1456
        %1465 = vst.msk [vmem:[%s534 + $0x41] sm:$0xff] %vm482, %v1457
        %1466 = vst.msk [vmem:[%s534 + $0x51] sm:$0xff] %vm482, %v1458
        %1467 = vst.msk [vmem:[%s534 + $0x61] sm:$0xff] %vm482, %v1459
        %1468 = vst.msk [vmem:[%s534 + $0x71] sm:$0xff] %vm482, %v1460
        %v1469 = vld [vmem:[#allocation2] sm:$0xff]
        %v1470 = vld [vmem:[#allocation2 + $0x10] sm:$0xff]
        %v1471 = vld [vmem:[#allocation2 + $0x20] sm:$0xff]
        %v1472 = vld [vmem:[#allocation2 + $0x30] sm:$0xff]
        %v1473 = vld [vmem:[#allocation2 + $0x40] sm:$0xff]
        %v1474 = vld [vmem:[#allocation2 + $0x50] sm:$0xff]
        %v1475 = vld [vmem:[#allocation2 + $0x60] sm:$0xff]
        %v1476 = vld [vmem:[#allocation2 + $0x70] sm:$0xff]
        %v1477 = vpack.c.bf16 %v1470, %v1469
        %v1478 = vpack.c.bf16 %v1472, %v1471
        %v1479 = vpack.c.bf16 %v1474, %v1473
        %v1480 = vpack.c.bf16 %v1476, %v1475
        %v1481 = vld [vmem:[%s4] sm:$0xf]
        %v1482 = vld [vmem:[#allocation2 + $0x1] sm:$0xff]
        %v1483 = vld [vmem:[#allocation2 + $0x11] sm:$0xff]
        %v1484 = vld [vmem:[#allocation2 + $0x21] sm:$0xff]
        %v1485 = vld [vmem:[#allocation2 + $0x31] sm:$0xff]
        %v1486 = vld [vmem:[#allocation2 + $0x41] sm:$0xff]
        %v1487 = vld [vmem:[#allocation2 + $0x51] sm:$0xff]
        %v1488 = vld [vmem:[#allocation2 + $0x61] sm:$0xff]
        %v1489 = vld [vmem:[#allocation2 + $0x71] sm:$0xff]
        %v1490 = vpack.c.bf16 %v1483, %v1482
        %v1491 = vpack.c.bf16 %v1485, %v1484
        %v1492 = vpack.c.bf16 %v1487, %v1486
        %v1493 = vpack.c.bf16 %v1489, %v1488
        %v1494 = vld [vmem:[%s4 + $0x4] sm:$0xf]
        %v1496 = vsel %vm482, %v1490, 0
        %v1499 = vsel %vm482, %v1491, 0
        %v1502 = vsel %vm482, %v1492, 0
        %v1505 = vsel %vm482, %v1493, 0
        %v1508 = vsel %vm581, %v1494, 0
        %1510 = vmatprep.subr.bf16.mxu0 0
        %1511 = vmatpush1.bf16.msra.mxu0 %v1508
        %1512 = vmatprep.subr.bf16.mxu0 0
        %1513 = vmatpush1.bf16.msra.mxu0 0
        %1514 = vmatprep.subr.bf16.mxu0 0
        %1515 = vmatpush1.bf16.msra.mxu0 0
        %1516 = vmatprep.subr.bf16.mxu0 0
        %1517 = vmatpush1.bf16.msra.mxu0 0
        %1518 = vmatprep.subr.bf16.mxu0 0
        %1519 = vmatpush1.bf16.msra.mxu0 0
        %1520 = vmatprep.subr.bf16.mxu0 0
        %1521 = vmatpush1.bf16.msra.mxu0 0
        %1522 = vmatprep.subr.bf16.mxu0 0
        %1523 = vmatpush1.bf16.msra.mxu0 0
        %1524 = vmatprep.subr.bf16.mxu0 0
        %1525 = vmatpush1.bf16.msra.mxu0 0
        %1526 = vmatprep.subr.bf16.mxu0 0
        %1527 = vmatpush1.bf16.msra.mxu0 0
        %1528 = vmatprep.subr.bf16.mxu0 0
        %1529 = vmatpush1.bf16.msra.mxu0 0
        %1530 = vmatprep.subr.bf16.mxu0 0
        %1531 = vmatpush1.bf16.msra.mxu0 0
        %1532 = vmatprep.subr.bf16.mxu0 0
        %1533 = vmatpush1.bf16.msra.mxu0 0
        %1534 = vmatprep.subr.bf16.mxu0 0
        %1535 = vmatpush1.bf16.msra.mxu0 0
        %1536 = vmatprep.subr.bf16.mxu0 0
        %1537 = vmatpush1.bf16.msra.mxu0 0
        %1538 = vmatprep.subr.bf16.mxu0 0
        %1539 = vmatpush1.bf16.msra.mxu0 0
        %1540 = vmatprep.subr.bf16.mxu0 0
        %1541 = vmatpush1.bf16.msra.mxu0 0
        %1542 = vmatprep.mubr.bf16.mxu0 0
        %1543 = vmatmul.mubr.bf16.gmra.mrb[0].mxu0 %v1496
        %v1544 = vpop.f32.mrb[0].mxu0
        %v1545 = vadd.f32 0.0, %v1544
        %v1546 = vpop.f32.mrb[0].mxu0
        %v1547 = vpop.f32.mrb[0].mxu0
        %v1548 = vadd.f32 0.0, %v1547
        %v1549 = vpop.f32.mrb[0].mxu0
        %1550 = vmatprep.mubr.bf16.mxu0 0
        %1551 = vmatmul.mubr.bf16.gmra.mrb[0].mxu0 %v1499
        %v1552 = vpop.f32.mrb[0].mxu0
        %v1553 = vadd.f32 0.0, %v1552
        %v1554 = vpop.f32.mrb[0].mxu0
        %v1555 = vpop.f32.mrb[0].mxu0
        %v1556 = vadd.f32 0.0, %v1555
        %v1557 = vpop.f32.mrb[0].mxu0
        %1558 = vmatprep.mubr.bf16.mxu0 0
        %1559 = vmatmul.mubr.bf16.gmra.mrb[0].mxu0 %v1502
        %v1560 = vpop.f32.mrb[0].mxu0
        %v1561 = vadd.f32 0.0, %v1560
        %v1562 = vpop.f32.mrb[0].mxu0
        %v1563 = vpop.f32.mrb[0].mxu0
        %v1564 = vadd.f32 0.0, %v1563
        %v1565 = vpop.f32.mrb[0].mxu0
        %1566 = vmatprep.mubr.bf16.mxu0 0
        %1567 = vmatmul.mubr.bf16.gmra.mrb[0].mxu0 %v1505
        %v1568 = vpop.f32.mrb[0].mxu0
        %v1569 = vadd.f32 0.0, %v1568
        %v1570 = vpop.f32.mrb[0].mxu0
        %v1571 = vpop.f32.mrb[0].mxu0
        %v1572 = vadd.f32 0.0, %v1571
        %v1573 = vpop.f32.mrb[0].mxu0
        %1574 = vdwg.mxu0
        %v1576 = vsel %vm482, %v1477, 0
        %v1579 = vsel %vm482, %v1478, 0
        %v1582 = vsel %vm482, %v1479, 0
        %v1585 = vsel %vm482, %v1480, 0
        %v1588 = vsel %vm581, %v1481, 0
        %1590 = vmatprep.subr.bf16.mxu0 0
        %1591 = vmatpush1.bf16.msra.mxu0 %v1588
        %1592 = vmatprep.subr.bf16.mxu0 0
        %1593 = vmatpush1.bf16.msra.mxu0 0
        %1594 = vmatprep.subr.bf16.mxu0 0
        %1595 = vmatpush1.bf16.msra.mxu0 0
        %1596 = vmatprep.subr.bf16.mxu0 0
        %1597 = vmatpush1.bf16.msra.mxu0 0
        %1598 = vmatprep.subr.bf16.mxu0 0
        %1599 = vmatpush1.bf16.msra.mxu0 0
        %1600 = vmatprep.subr.bf16.mxu0 0
        %1601 = vmatpush1.bf16.msra.mxu0 0
        %1602 = vmatprep.subr.bf16.mxu0 0
        %1603 = vmatpush1.bf16.msra.mxu0 0
        %1604 = vmatprep.subr.bf16.mxu0 0
        %1605 = vmatpush1.bf16.msra.mxu0 0
        %1606 = vmatprep.subr.bf16.mxu0 0
        %1607 = vmatpush1.bf16.msra.mxu0 0
        %1608 = vmatprep.subr.bf16.mxu0 0
        %1609 = vmatpush1.bf16.msra.mxu0 0
        %1610 = vmatprep.subr.bf16.mxu0 0
        %1611 = vmatpush1.bf16.msra.mxu0 0
        %1612 = vmatprep.subr.bf16.mxu0 0
        %1613 = vmatpush1.bf16.msra.mxu0 0
        %1614 = vmatprep.subr.bf16.mxu0 0
        %1615 = vmatpush1.bf16.msra.mxu0 0
        %1616 = vmatprep.subr.bf16.mxu0 0
        %1617 = vmatpush1.bf16.msra.mxu0 0
        %1618 = vmatprep.subr.bf16.mxu0 0
        %1619 = vmatpush1.bf16.msra.mxu0 0
        %1620 = vmatprep.subr.bf16.mxu0 0
        %1621 = vmatpush1.bf16.msra.mxu0 0
        %1622 = vmatprep.mubr.bf16.mxu0 0
        %1623 = vmatmul.mubr.bf16.gmra.mrb[0].mxu0 %v1576
        %v1624 = vpop.f32.mrb[0].mxu0
        %v1625 = vadd.f32 %v1545, %v1624
        %v1626 = vpop.f32.mrb[0].mxu0
        %v1627 = vpop.f32.mrb[0].mxu0
        %v1628 = vadd.f32 %v1548, %v1627
        %v1629 = vpop.f32.mrb[0].mxu0
        %1630 = vmatprep.mubr.bf16.mxu0 0
        %1631 = vmatmul.mubr.bf16.gmra.mrb[0].mxu0 %v1579
        %v1632 = vpop.f32.mrb[0].mxu0
        %v1633 = vadd.f32 %v1553, %v1632
        %v1634 = vpop.f32.mrb[0].mxu0
        %v1635 = vpop.f32.mrb[0].mxu0
        %v1636 = vadd.f32 %v1556, %v1635
        %v1637 = vpop.f32.mrb[0].mxu0
        %1638 = vmatprep.mubr.bf16.mxu0 0
        %1639 = vmatmul.mubr.bf16.gmra.mrb[0].mxu0 %v1582
        %v1640 = vpop.f32.mrb[0].mxu0
        %v1641 = vadd.f32 %v1561, %v1640
        %v1642 = vpop.f32.mrb[0].mxu0
        %v1643 = vpop.f32.mrb[0].mxu0
        %v1644 = vadd.f32 %v1564, %v1643
        %v1645 = vpop.f32.mrb[0].mxu0
        %1646 = vmatprep.mubr.bf16.mxu0 0
        %1647 = vmatmul.mubr.bf16.gmra.mrb[0].mxu0 %v1585
        %v1648 = vpop.f32.mrb[0].mxu0
        %v1649 = vadd.f32 %v1569, %v1648
        %v1650 = vpop.f32.mrb[0].mxu0
        %v1651 = vpop.f32.mrb[0].mxu0
        %v1652 = vadd.f32 %v1572, %v1651
        %v1653 = vpop.f32.mrb[0].mxu0
        %1654 = vdwg.mxu0
        %v1655 = vld [vmem:[#allocation2 + $0x2] sm:$0xff]
        %v1656 = vld [vmem:[#allocation2 + $0x12] sm:$0xff]
        %v1657 = vld [vmem:[#allocation2 + $0x22] sm:$0xff]
        %v1658 = vld [vmem:[#allocation2 + $0x32] sm:$0xff]
        %v1659 = vld [vmem:[#allocation2 + $0x42] sm:$0xff]
        %v1660 = vld [vmem:[#allocation2 + $0x52] sm:$0xff]
        %v1661 = vld [vmem:[#allocation2 + $0x62] sm:$0xff]
        %v1662 = vld [vmem:[#allocation2 + $0x72] sm:$0xff]
        %v1663 = vpack.c.bf16 %v1656, %v1655
        %v1664 = vpack.c.bf16 %v1658, %v1657
        %v1665 = vpack.c.bf16 %v1660, %v1659
        %v1666 = vpack.c.bf16 %v1662, %v1661
        %v1667 = vld [vmem:[%s4 + $0x8] sm:$0xf]
        %v1669 = vsel %vm482, %v1663, 0
        %v1672 = vsel %vm482, %v1664, 0
        %v1675 = vsel %vm482, %v1665, 0
        %v1678 = vsel %vm482, %v1666, 0
        %v1681 = vsel %vm581, %v1667, 0
        %1683 = vmatprep.subr.bf16.mxu0 0
        %1684 = vmatpush1.bf16.msra.mxu0 %v1681
        %1685 = vmatprep.subr.bf16.mxu0 0
        %1686 = vmatpush1.bf16.msra.mxu0 0
        %1687 = vmatprep.subr.bf16.mxu0 0
        %1688 = vmatpush1.bf16.msra.mxu0 0
        %1689 = vmatprep.subr.bf16.mxu0 0
        %1690 = vmatpush1.bf16.msra.mxu0 0
        %1691 = vmatprep.subr.bf16.mxu0 0
        %1692 = vmatpush1.bf16.msra.mxu0 0
        %1693 = vmatprep.subr.bf16.mxu0 0
        %1694 = vmatpush1.bf16.msra.mxu0 0
        %1695 = vmatprep.subr.bf16.mxu0 0
        %1696 = vmatpush1.bf16.msra.mxu0 0
        %1697 = vmatprep.subr.bf16.mxu0 0
        %1698 = vmatpush1.bf16.msra.mxu0 0
        %1699 = vmatprep.subr.bf16.mxu0 0
        %1700 = vmatpush1.bf16.msra.mxu0 0
        %1701 = vmatprep.subr.bf16.mxu0 0
        %1702 = vmatpush1.bf16.msra.mxu0 0
        %1703 = vmatprep.subr.bf16.mxu0 0
        %1704 = vmatpush1.bf16.msra.mxu0 0
        %1705 = vmatprep.subr.bf16.mxu0 0
        %1706 = vmatpush1.bf16.msra.mxu0 0
        %1707 = vmatprep.subr.bf16.mxu0 0
        %1708 = vmatpush1.bf16.msra.mxu0 0
        %1709 = vmatprep.subr.bf16.mxu0 0
        %1710 = vmatpush1.bf16.msra.mxu0 0
        %1711 = vmatprep.subr.bf16.mxu0 0
        %1712 = vmatpush1.bf16.msra.mxu0 0
        %1713 = vmatprep.subr.bf16.mxu0 0
        %1714 = vmatpush1.bf16.msra.mxu0 0
        %1715 = vmatprep.mubr.bf16.mxu0 0
        %1716 = vmatmul.mubr.bf16.gmra.mrb[0].mxu0 %v1669
        %v1717 = vpop.f32.mrb[0].mxu0
        %v1718 = vadd.f32 0.0, %v1717
        %v1719 = vpop.f32.mrb[0].mxu0
        %v1720 = vpop.f32.mrb[0].mxu0
        %v1721 = vadd.f32 0.0, %v1720
        %v1722 = vpop.f32.mrb[0].mxu0
        %1723 = vmatprep.mubr.bf16.mxu0 0
        %1724 = vmatmul.mubr.bf16.gmra.mrb[0].mxu0 %v1672
        %v1725 = vpop.f32.mrb[0].mxu0
        %v1726 = vadd.f32 0.0, %v1725
        %v1727 = vpop.f32.mrb[0].mxu0
        %v1728 = vpop.f32.mrb[0].mxu0
        %v1729 = vadd.f32 0.0, %v1728
        %v1730 = vpop.f32.mrb[0].mxu0
        %1731 = vmatprep.mubr.bf16.mxu0 0
        %1732 = vmatmul.mubr.bf16.gmra.mrb[0].mxu0 %v1675
        %v1733 = vpop.f32.mrb[0].mxu0
        %v1734 = vadd.f32 0.0, %v1733
        %v1735 = vpop.f32.mrb[0].mxu0
        %v1736 = vpop.f32.mrb[0].mxu0
        %v1737 = vadd.f32 0.0, %v1736
        %v1738 = vpop.f32.mrb[0].mxu0
        %1739 = vmatprep.mubr.bf16.mxu0 0
        %1740 = vmatmul.mubr.bf16.gmra.mrb[0].mxu0 %v1678
        %v1741 = vpop.f32.mrb[0].mxu0
        %v1742 = vadd.f32 0.0, %v1741
        %v1743 = vpop.f32.mrb[0].mxu0
        %v1744 = vpop.f32.mrb[0].mxu0
        %v1745 = vadd.f32 0.0, %v1744
        %v1746 = vpop.f32.mrb[0].mxu0
        %1747 = vdwg.mxu0
        %v1748 = vadd.f32 %v1625, %v1718
        %v1749 = vadd.f32 %v1628, %v1721
        %v1750 = vadd.f32 %v1633, %v1726
        %v1751 = vadd.f32 %v1636, %v1729
        %v1752 = vadd.f32 %v1641, %v1734
        %v1753 = vadd.f32 %v1644, %v1737
        %v1754 = vadd.f32 %v1649, %v1742
        %v1755 = vadd.f32 %v1652, %v1745
        %v1756 = vld [vmem:[%s534] sm:$0xff]
        %v1757 = vld [vmem:[%s534 + $0x10] sm:$0xff]
        %v1758 = vld [vmem:[%s534 + $0x20] sm:$0xff]
        %v1759 = vld [vmem:[%s534 + $0x30] sm:$0xff]
        %v1760 = vld [vmem:[%s534 + $0x40] sm:$0xff]
        %v1761 = vld [vmem:[%s534 + $0x50] sm:$0xff]
        %v1762 = vld [vmem:[%s534 + $0x60] sm:$0xff]
        %v1763 = vld [vmem:[%s534 + $0x70] sm:$0xff]
        %v1764 = vpack.c.bf16 %v1757, %v1756
        %v1765 = vpack.c.bf16 %v1759, %v1758
        %v1766 = vpack.c.bf16 %v1761, %v1760
        %v1767 = vpack.c.bf16 %v1763, %v1762
        %v1768 = vld [vmem:[%s4 + $0xc] sm:$0xf]
        %v1770 = vsel %vm482, %v1764, 0
        %v1773 = vsel %vm482, %v1765, 0
        %v1776 = vsel %vm482, %v1766, 0
        %v1779 = vsel %vm482, %v1767, 0
        %v1782 = vsel %vm581, %v1768, 0
        %1784 = vmatprep.subr.bf16.mxu0 0
        %1785 = vmatpush1.bf16.msra.mxu0 %v1782
        %1786 = vmatprep.subr.bf16.mxu0 0
        %1787 = vmatpush1.bf16.msra.mxu0 0
        %1788 = vmatprep.subr.bf16.mxu0 0
        %1789 = vmatpush1.bf16.msra.mxu0 0
        %1790 = vmatprep.subr.bf16.mxu0 0
        %1791 = vmatpush1.bf16.msra.mxu0 0
        %1792 = vmatprep.subr.bf16.mxu0 0
        %1793 = vmatpush1.bf16.msra.mxu0 0
        %1794 = vmatprep.subr.bf16.mxu0 0
        %1795 = vmatpush1.bf16.msra.mxu0 0
        %1796 = vmatprep.subr.bf16.mxu0 0
        %1797 = vmatpush1.bf16.msra.mxu0 0
        %1798 = vmatprep.subr.bf16.mxu0 0
        %1799 = vmatpush1.bf16.msra.mxu0 0
        %1800 = vmatprep.subr.bf16.mxu0 0
        %1801 = vmatpush1.bf16.msra.mxu0 0
        %1802 = vmatprep.subr.bf16.mxu0 0
        %1803 = vmatpush1.bf16.msra.mxu0 0
        %1804 = vmatprep.subr.bf16.mxu0 0
        %1805 = vmatpush1.bf16.msra.mxu0 0
        %1806 = vmatprep.subr.bf16.mxu0 0
        %1807 = vmatpush1.bf16.msra.mxu0 0
        %1808 = vmatprep.subr.bf16.mxu0 0
        %1809 = vmatpush1.bf16.msra.mxu0 0
        %1810 = vmatprep.subr.bf16.mxu0 0
        %1811 = vmatpush1.bf16.msra.mxu0 0
        %1812 = vmatprep.subr.bf16.mxu0 0
        %1813 = vmatpush1.bf16.msra.mxu0 0
        %1814 = vmatprep.subr.bf16.mxu0 0
        %1815 = vmatpush1.bf16.msra.mxu0 0
        %1816 = vmatprep.mubr.bf16.mxu0 0
        %1817 = vmatmul.mubr.bf16.gmra.mrb[0].mxu0 %v1770
        %v1818 = vpop.f32.mrb[0].mxu0
        %v1819 = vadd.f32 0.0, %v1818
        %v1820 = vpop.f32.mrb[0].mxu0
        %v1821 = vpop.f32.mrb[0].mxu0
        %v1822 = vadd.f32 0.0, %v1821
        %v1823 = vpop.f32.mrb[0].mxu0
        %1824 = vmatprep.mubr.bf16.mxu0 0
        %1825 = vmatmul.mubr.bf16.gmra.mrb[0].mxu0 %v1773
        %v1826 = vpop.f32.mrb[0].mxu0
        %v1827 = vadd.f32 0.0, %v1826
        %v1828 = vpop.f32.mrb[0].mxu0
        %v1829 = vpop.f32.mrb[0].mxu0
        %v1830 = vadd.f32 0.0, %v1829
        %v1831 = vpop.f32.mrb[0].mxu0
        %1832 = vmatprep.mubr.bf16.mxu0 0
        %1833 = vmatmul.mubr.bf16.gmra.mrb[0].mxu0 %v1776
        %v1834 = vpop.f32.mrb[0].mxu0
        %v1835 = vadd.f32 0.0, %v1834
        %v1836 = vpop.f32.mrb[0].mxu0
        %v1837 = vpop.f32.mrb[0].mxu0
        %v1838 = vadd.f32 0.0, %v1837
        %v1839 = vpop.f32.mrb[0].mxu0
        %1840 = vmatprep.mubr.bf16.mxu0 0
        %1841 = vmatmul.mubr.bf16.gmra.mrb[0].mxu0 %v1779
        %v1842 = vpop.f32.mrb[0].mxu0
        %v1843 = vadd.f32 0.0, %v1842
        %v1844 = vpop.f32.mrb[0].mxu0
        %v1845 = vpop.f32.mrb[0].mxu0
        %v1846 = vadd.f32 0.0, %v1845
        %v1847 = vpop.f32.mrb[0].mxu0
        %1848 = vdwg.mxu0
        %v1849 = vadd.f32 %v1748, %v1819
        %v1850 = vadd.f32 %v1749, %v1822
        %v1851 = vadd.f32 %v1750, %v1827
        %v1852 = vadd.f32 %v1751, %v1830
        %v1853 = vadd.f32 %v1752, %v1835
        %v1854 = vadd.f32 %v1753, %v1838
        %v1855 = vadd.f32 %v1754, %v1843
        %v1856 = vadd.f32 %v1755, %v1846
        %v1857 = vld [vmem:[%s534 + $0x1] sm:$0xff]
        %v1858 = vld [vmem:[%s534 + $0x11] sm:$0xff]
        %v1859 = vld [vmem:[%s534 + $0x21] sm:$0xff]
        %v1860 = vld [vmem:[%s534 + $0x31] sm:$0xff]
        %v1861 = vld [vmem:[%s534 + $0x41] sm:$0xff]
        %v1862 = vld [vmem:[%s534 + $0x51] sm:$0xff]
        %v1863 = vld [vmem:[%s534 + $0x61] sm:$0xff]
        %v1864 = vld [vmem:[%s534 + $0x71] sm:$0xff]
        %v1865 = vpack.c.bf16 %v1858, %v1857
        %v1866 = vpack.c.bf16 %v1860, %v1859
        %v1867 = vpack.c.bf16 %v1862, %v1861
        %v1868 = vpack.c.bf16 %v1864, %v1863
        %v1869 = vld [vmem:[%s4 + $0x10] sm:$0xf]
        %v1871 = vsel %vm482, %v1865, 0
        %v1874 = vsel %vm482, %v1866, 0
        %v1877 = vsel %vm482, %v1867, 0
        %v1880 = vsel %vm482, %v1868, 0
        %v1883 = vsel %vm581, %v1869, 0
        %1885 = vmatprep.subr.bf16.mxu0 0
        %1886 = vmatpush1.bf16.msra.mxu0 %v1883
        %1887 = vmatprep.subr.bf16.mxu0 0
        %1888 = vmatpush1.bf16.msra.mxu0 0
        %1889 = vmatprep.subr.bf16.mxu0 0
        %1890 = vmatpush1.bf16.msra.mxu0 0
        %1891 = vmatprep.subr.bf16.mxu0 0
        %1892 = vmatpush1.bf16.msra.mxu0 0
        %1893 = vmatprep.subr.bf16.mxu0 0
        %1894 = vmatpush1.bf16.msra.mxu0 0
        %1895 = vmatprep.subr.bf16.mxu0 0
        %1896 = vmatpush1.bf16.msra.mxu0 0
        %1897 = vmatprep.subr.bf16.mxu0 0
        %1898 = vmatpush1.bf16.msra.mxu0 0
        %1899 = vmatprep.subr.bf16.mxu0 0
        %1900 = vmatpush1.bf16.msra.mxu0 0
        %1901 = vmatprep.subr.bf16.mxu0 0
        %1902 = vmatpush1.bf16.msra.mxu0 0
        %1903 = vmatprep.subr.bf16.mxu0 0
        %1904 = vmatpush1.bf16.msra.mxu0 0
        %1905 = vmatprep.subr.bf16.mxu0 0
        %1906 = vmatpush1.bf16.msra.mxu0 0
        %1907 = vmatprep.subr.bf16.mxu0 0
        %1908 = vmatpush1.bf16.msra.mxu0 0
        %1909 = vmatprep.subr.bf16.mxu0 0
        %1910 = vmatpush1.bf16.msra.mxu0 0
        %1911 = vmatprep.subr.bf16.mxu0 0
        %1912 = vmatpush1.bf16.msra.mxu0 0
        %1913 = vmatprep.subr.bf16.mxu0 0
        %1914 = vmatpush1.bf16.msra.mxu0 0
        %1915 = vmatprep.subr.bf16.mxu0 0
        %1916 = vmatpush1.bf16.msra.mxu0 0
        %1917 = vmatprep.mubr.bf16.mxu0 0
        %1918 = vmatmul.mubr.bf16.gmra.mrb[0].mxu0 %v1871
        %v1919 = vpop.f32.mrb[0].mxu0
        %v1920 = vadd.f32 0.0, %v1919
        %v1921 = vpop.f32.mrb[0].mxu0
        %v1922 = vpop.f32.mrb[0].mxu0
        %v1923 = vadd.f32 0.0, %v1922
        %v1924 = vpop.f32.mrb[0].mxu0
        %1925 = vmatprep.mubr.bf16.mxu0 0
        %1926 = vmatmul.mubr.bf16.gmra.mrb[0].mxu0 %v1874
        %v1927 = vpop.f32.mrb[0].mxu0
        %v1928 = vadd.f32 0.0, %v1927
        %v1929 = vpop.f32.mrb[0].mxu0
        %v1930 = vpop.f32.mrb[0].mxu0
        %v1931 = vadd.f32 0.0, %v1930
        %v1932 = vpop.f32.mrb[0].mxu0
        %1933 = vmatprep.mubr.bf16.mxu0 0
        %1934 = vmatmul.mubr.bf16.gmra.mrb[0].mxu0 %v1877
        %v1935 = vpop.f32.mrb[0].mxu0
        %v1936 = vadd.f32 0.0, %v1935
        %v1937 = vpop.f32.mrb[0].mxu0
        %v1938 = vpop.f32.mrb[0].mxu0
        %v1939 = vadd.f32 0.0, %v1938
        %v1940 = vpop.f32.mrb[0].mxu0
        %1941 = vmatprep.mubr.bf16.mxu0 0
        %1942 = vmatmul.mubr.bf16.gmra.mrb[0].mxu0 %v1880
        %v1943 = vpop.f32.mrb[0].mxu0
        %v1944 = vadd.f32 0.0, %v1943
        %v1945 = vpop.f32.mrb[0].mxu0
        %v1946 = vpop.f32.mrb[0].mxu0
        %v1947 = vadd.f32 0.0, %v1946
        %v1948 = vpop.f32.mrb[0].mxu0
        %1949 = vdwg.mxu0
        %v1950 = vadd.f32 %v1849, %v1920
        %v1951 = vadd.f32 %v1850, %v1923
        %v1952 = vadd.f32 %v1851, %v1928
        %v1953 = vadd.f32 %v1852, %v1931
        %v1954 = vadd.f32 %v1853, %v1936
        %v1955 = vadd.f32 %v1854, %v1939
        %v1956 = vadd.f32 %v1855, %v1944
        %v1957 = vadd.f32 %v1856, %v1947
        %v1958 = vld [vmem:[%s534 + $0x2] sm:$0xff]
        %v1959 = vld [vmem:[%s534 + $0x12] sm:$0xff]
        %v1960 = vld [vmem:[%s534 + $0x22] sm:$0xff]
        %v1961 = vld [vmem:[%s534 + $0x32] sm:$0xff]
        %v1962 = vld [vmem:[%s534 + $0x42] sm:$0xff]
        %v1963 = vld [vmem:[%s534 + $0x52] sm:$0xff]
        %v1964 = vld [vmem:[%s534 + $0x62] sm:$0xff]
        %v1965 = vld [vmem:[%s534 + $0x72] sm:$0xff]
        %v1966 = vpack.c.bf16 %v1959, %v1958
        %v1967 = vpack.c.bf16 %v1961, %v1960
        %v1968 = vpack.c.bf16 %v1963, %v1962
        %v1969 = vpack.c.bf16 %v1965, %v1964
        %v1970 = vld [vmem:[%s4 + $0x14] sm:$0xf]
        %v1972 = vsel %vm482, %v1966, 0
        %v1975 = vsel %vm482, %v1967, 0
        %v1978 = vsel %vm482, %v1968, 0
        %v1981 = vsel %vm482, %v1969, 0
        %v1984 = vsel %vm581, %v1970, 0
        %1986 = vmatprep.subr.bf16.mxu0 0
        %1987 = vmatpush1.bf16.msra.mxu0 %v1984
        %1988 = vmatprep.subr.bf16.mxu0 0
        %1989 = vmatpush1.bf16.msra.mxu0 0
        %1990 = vmatprep.subr.bf16.mxu0 0
        %1991 = vmatpush1.bf16.msra.mxu0 0
        %1992 = vmatprep.subr.bf16.mxu0 0
        %1993 = vmatpush1.bf16.msra.mxu0 0
        %1994 = vmatprep.subr.bf16.mxu0 0
        %1995 = vmatpush1.bf16.msra.mxu0 0
        %1996 = vmatprep.subr.bf16.mxu0 0
        %1997 = vmatpush1.bf16.msra.mxu0 0
        %1998 = vmatprep.subr.bf16.mxu0 0
        %1999 = vmatpush1.bf16.msra.mxu0 0
        %2000 = vmatprep.subr.bf16.mxu0 0
        %2001 = vmatpush1.bf16.msra.mxu0 0
        %2002 = vmatprep.subr.bf16.mxu0 0
        %2003 = vmatpush1.bf16.msra.mxu0 0
        %2004 = vmatprep.subr.bf16.mxu0 0
        %2005 = vmatpush1.bf16.msra.mxu0 0
        %2006 = vmatprep.subr.bf16.mxu0 0
        %2007 = vmatpush1.bf16.msra.mxu0 0
        %2008 = vmatprep.subr.bf16.mxu0 0
        %2009 = vmatpush1.bf16.msra.mxu0 0
        %2010 = vmatprep.subr.bf16.mxu0 0
        %2011 = vmatpush1.bf16.msra.mxu0 0
        %2012 = vmatprep.subr.bf16.mxu0 0
        %2013 = vmatpush1.bf16.msra.mxu0 0
        %2014 = vmatprep.subr.bf16.mxu0 0
        %2015 = vmatpush1.bf16.msra.mxu0 0
        %2016 = vmatprep.subr.bf16.mxu0 0
        %2017 = vmatpush1.bf16.msra.mxu0 0
        %2018 = vmatprep.mubr.bf16.mxu0 0
        %2019 = vmatmul.mubr.bf16.gmra.mrb[0].mxu0 %v1972
        %v2020 = vpop.f32.mrb[0].mxu0
        %v2021 = vadd.f32 0.0, %v2020
        %v2022 = vpop.f32.mrb[0].mxu0
        %v2023 = vpop.f32.mrb[0].mxu0
        %v2024 = vadd.f32 0.0, %v2023
        %v2025 = vpop.f32.mrb[0].mxu0
        %2026 = vmatprep.mubr.bf16.mxu0 0
        %2027 = vmatmul.mubr.bf16.gmra.mrb[0].mxu0 %v1975
        %v2028 = vpop.f32.mrb[0].mxu0
        %v2029 = vadd.f32 0.0, %v2028
        %v2030 = vpop.f32.mrb[0].mxu0
        %v2031 = vpop.f32.mrb[0].mxu0
        %v2032 = vadd.f32 0.0, %v2031
        %v2033 = vpop.f32.mrb[0].mxu0
        %2034 = vmatprep.mubr.bf16.mxu0 0
        %2035 = vmatmul.mubr.bf16.gmra.mrb[0].mxu0 %v1978
        %v2036 = vpop.f32.mrb[0].mxu0
        %v2037 = vadd.f32 0.0, %v2036
        %v2038 = vpop.f32.mrb[0].mxu0
        %v2039 = vpop.f32.mrb[0].mxu0
        %v2040 = vadd.f32 0.0, %v2039
        %v2041 = vpop.f32.mrb[0].mxu0
        %2042 = vmatprep.mubr.bf16.mxu0 0
        %2043 = vmatmul.mubr.bf16.gmra.mrb[0].mxu0 %v1981
        %v2044 = vpop.f32.mrb[0].mxu0
        %v2045 = vadd.f32 0.0, %v2044
        %v2046 = vpop.f32.mrb[0].mxu0
        %v2047 = vpop.f32.mrb[0].mxu0
        %v2048 = vadd.f32 0.0, %v2047
        %v2049 = vpop.f32.mrb[0].mxu0
        %2050 = vdwg.mxu0
        %v2051 = vadd.f32 %v1950, %v2021
        %v2052 = vadd.f32 %v1951, %v2024
        %v2053 = vadd.f32 %v1952, %v2029
        %v2054 = vadd.f32 %v1953, %v2032
        %v2055 = vadd.f32 %v1954, %v2037
        %v2056 = vadd.f32 %v1955, %v2040
        %v2057 = vadd.f32 %v1956, %v2045
        %v2058 = vadd.f32 %v1957, %v2048
        %v2059 = vld [vmem:[%s1134] sm:$0xff]
        %v2060 = vld [vmem:[%s1134 + $0x10] sm:$0xff]
        %v2061 = vld [vmem:[%s1134 + $0x20] sm:$0xff]
        %v2062 = vld [vmem:[%s1134 + $0x30] sm:$0xff]
        %v2063 = vld [vmem:[%s1134 + $0x40] sm:$0xff]
        %v2064 = vld [vmem:[%s1134 + $0x50] sm:$0xff]
        %v2065 = vld [vmem:[%s1134 + $0x60] sm:$0xff]
        %v2066 = vld [vmem:[%s1134 + $0x70] sm:$0xff]
        %v2067 = vpack.c.bf16 %v2060, %v2059
        %v2068 = vpack.c.bf16 %v2062, %v2061
        %v2069 = vpack.c.bf16 %v2064, %v2063
        %v2070 = vpack.c.bf16 %v2066, %v2065
        %v2071 = vld [vmem:[%s4 + $0x18] sm:$0xf]
        %v2073 = vsel %vm482, %v2067, 0
        %v2076 = vsel %vm482, %v2068, 0
        %v2079 = vsel %vm482, %v2069, 0
        %v2082 = vsel %vm482, %v2070, 0
        %v2085 = vsel %vm581, %v2071, 0
        %2087 = vmatprep.subr.bf16.mxu0 0
        %2088 = vmatpush1.bf16.msra.mxu0 %v2085
        %2089 = vmatprep.subr.bf16.mxu0 0
        %2090 = vmatpush1.bf16.msra.mxu0 0
        %2091 = vmatprep.subr.bf16.mxu0 0
        %2092 = vmatpush1.bf16.msra.mxu0 0
        %2093 = vmatprep.subr.bf16.mxu0 0
        %2094 = vmatpush1.bf16.msra.mxu0 0
        %2095 = vmatprep.subr.bf16.mxu0 0
        %2096 = vmatpush1.bf16.msra.mxu0 0
        %2097 = vmatprep.subr.bf16.mxu0 0
        %2098 = vmatpush1.bf16.msra.mxu0 0
        %2099 = vmatprep.subr.bf16.mxu0 0
        %2100 = vmatpush1.bf16.msra.mxu0 0
        %2101 = vmatprep.subr.bf16.mxu0 0
        %2102 = vmatpush1.bf16.msra.mxu0 0
        %2103 = vmatprep.subr.bf16.mxu0 0
        %2104 = vmatpush1.bf16.msra.mxu0 0
        %2105 = vmatprep.subr.bf16.mxu0 0
        %2106 = vmatpush1.bf16.msra.mxu0 0
        %2107 = vmatprep.subr.bf16.mxu0 0
        %2108 = vmatpush1.bf16.msra.mxu0 0
        %2109 = vmatprep.subr.bf16.mxu0 0
        %2110 = vmatpush1.bf16.msra.mxu0 0
        %2111 = vmatprep.subr.bf16.mxu0 0
        %2112 = vmatpush1.bf16.msra.mxu0 0
        %2113 = vmatprep.subr.bf16.mxu0 0
        %2114 = vmatpush1.bf16.msra.mxu0 0
        %2115 = vmatprep.subr.bf16.mxu0 0
        %2116 = vmatpush1.bf16.msra.mxu0 0
        %2117 = vmatprep.subr.bf16.mxu0 0
        %2118 = vmatpush1.bf16.msra.mxu0 0
        %2119 = vmatprep.mubr.bf16.mxu0 0
        %2120 = vmatmul.mubr.bf16.gmra.mrb[0].mxu0 %v2073
        %v2121 = vpop.f32.mrb[0].mxu0
        %v2122 = vadd.f32 0.0, %v2121
        %v2123 = vpop.f32.mrb[0].mxu0
        %v2124 = vpop.f32.mrb[0].mxu0
        %v2125 = vadd.f32 0.0, %v2124
        %v2126 = vpop.f32.mrb[0].mxu0
        %2127 = vmatprep.mubr.bf16.mxu0 0
        %2128 = vmatmul.mubr.bf16.gmra.mrb[0].mxu0 %v2076
        %v2129 = vpop.f32.mrb[0].mxu0
        %v2130 = vadd.f32 0.0, %v2129
        %v2131 = vpop.f32.mrb[0].mxu0
        %v2132 = vpop.f32.mrb[0].mxu0
        %v2133 = vadd.f32 0.0, %v2132
        %v2134 = vpop.f32.mrb[0].mxu0
        %2135 = vmatprep.mubr.bf16.mxu0 0
        %2136 = vmatmul.mubr.bf16.gmra.mrb[0].mxu0 %v2079
        %v2137 = vpop.f32.mrb[0].mxu0
        %v2138 = vadd.f32 0.0, %v2137
        %v2139 = vpop.f32.mrb[0].mxu0
        %v2140 = vpop.f32.mrb[0].mxu0
        %v2141 = vadd.f32 0.0, %v2140
        %v2142 = vpop.f32.mrb[0].mxu0
        %2143 = vmatprep.mubr.bf16.mxu0 0
        %2144 = vmatmul.mubr.bf16.gmra.mrb[0].mxu0 %v2082
        %v2145 = vpop.f32.mrb[0].mxu0
        %v2146 = vadd.f32 0.0, %v2145
        %v2147 = vpop.f32.mrb[0].mxu0
        %v2148 = vpop.f32.mrb[0].mxu0
        %v2149 = vadd.f32 0.0, %v2148
        %v2150 = vpop.f32.mrb[0].mxu0
        %2151 = vdwg.mxu0
        %v2152 = vadd.f32 %v2051, %v2122
        %v2153 = vadd.f32 %v2052, %v2125
        %v2154 = vadd.f32 %v2053, %v2130
        %v2155 = vadd.f32 %v2054, %v2133
        %v2156 = vadd.f32 %v2055, %v2138
        %v2157 = vadd.f32 %v2056, %v2141
        %v2158 = vadd.f32 %v2057, %v2146
        %v2159 = vadd.f32 %v2058, %v2149
        %v2160 = vld [vmem:[%s1134 + $0x1] sm:$0xff]
        %v2161 = vld [vmem:[%s1134 + $0x11] sm:$0xff]
        %v2162 = vld [vmem:[%s1134 + $0x21] sm:$0xff]
        %v2163 = vld [vmem:[%s1134 + $0x31] sm:$0xff]
        %v2164 = vld [vmem:[%s1134 + $0x41] sm:$0xff]
        %v2165 = vld [vmem:[%s1134 + $0x51] sm:$0xff]
        %v2166 = vld [vmem:[%s1134 + $0x61] sm:$0xff]
        %v2167 = vld [vmem:[%s1134 + $0x71] sm:$0xff]
        %v2168 = vpack.c.bf16 %v2161, %v2160
        %v2169 = vpack.c.bf16 %v2163, %v2162
        %v2170 = vpack.c.bf16 %v2165, %v2164
        %v2171 = vpack.c.bf16 %v2167, %v2166
        %v2172 = vld [vmem:[%s4 + $0x1c] sm:$0xf]
        %v2174 = vsel %vm482, %v2168, 0
        %v2177 = vsel %vm482, %v2169, 0
        %v2180 = vsel %vm482, %v2170, 0
        %v2183 = vsel %vm482, %v2171, 0
        %v2186 = vsel %vm581, %v2172, 0
        %2188 = vmatprep.subr.bf16.mxu0 0
        %2189 = vmatpush1.bf16.msra.mxu0 %v2186
        %2190 = vmatprep.subr.bf16.mxu0 0
        %2191 = vmatpush1.bf16.msra.mxu0 0
        %2192 = vmatprep.subr.bf16.mxu0 0
        %2193 = vmatpush1.bf16.msra.mxu0 0
        %2194 = vmatprep.subr.bf16.mxu0 0
        %2195 = vmatpush1.bf16.msra.mxu0 0
        %2196 = vmatprep.subr.bf16.mxu0 0
        %2197 = vmatpush1.bf16.msra.mxu0 0
        %2198 = vmatprep.subr.bf16.mxu0 0
        %2199 = vmatpush1.bf16.msra.mxu0 0
        %2200 = vmatprep.subr.bf16.mxu0 0
        %2201 = vmatpush1.bf16.msra.mxu0 0
        %2202 = vmatprep.subr.bf16.mxu0 0
        %2203 = vmatpush1.bf16.msra.mxu0 0
        %2204 = vmatprep.subr.bf16.mxu0 0
        %2205 = vmatpush1.bf16.msra.mxu0 0
        %2206 = vmatprep.subr.bf16.mxu0 0
        %2207 = vmatpush1.bf16.msra.mxu0 0
        %2208 = vmatprep.subr.bf16.mxu0 0
        %2209 = vmatpush1.bf16.msra.mxu0 0
        %2210 = vmatprep.subr.bf16.mxu0 0
        %2211 = vmatpush1.bf16.msra.mxu0 0
        %2212 = vmatprep.subr.bf16.mxu0 0
        %2213 = vmatpush1.bf16.msra.mxu0 0
        %2214 = vmatprep.subr.bf16.mxu0 0
        %2215 = vmatpush1.bf16.msra.mxu0 0
        %2216 = vmatprep.subr.bf16.mxu0 0
        %2217 = vmatpush1.bf16.msra.mxu0 0
        %2218 = vmatprep.subr.bf16.mxu0 0
        %2219 = vmatpush1.bf16.msra.mxu0 0
        %2220 = vmatprep.mubr.bf16.mxu0 0
        %2221 = vmatmul.mubr.bf16.gmra.mrb[0].mxu0 %v2174
        %v2222 = vpop.f32.mrb[0].mxu0
        %v2223 = vadd.f32 0.0, %v2222
        %v2224 = vpop.f32.mrb[0].mxu0
        %v2225 = vpop.f32.mrb[0].mxu0
        %v2226 = vadd.f32 0.0, %v2225
        %v2227 = vpop.f32.mrb[0].mxu0
        %2228 = vmatprep.mubr.bf16.mxu0 0
        %2229 = vmatmul.mubr.bf16.gmra.mrb[0].mxu0 %v2177
        %v2230 = vpop.f32.mrb[0].mxu0
        %v2231 = vadd.f32 0.0, %v2230
        %v2232 = vpop.f32.mrb[0].mxu0
        %v2233 = vpop.f32.mrb[0].mxu0
        %v2234 = vadd.f32 0.0, %v2233
        %v2235 = vpop.f32.mrb[0].mxu0
        %2236 = vmatprep.mubr.bf16.mxu0 0
        %2237 = vmatmul.mubr.bf16.gmra.mrb[0].mxu0 %v2180
        %v2238 = vpop.f32.mrb[0].mxu0
        %v2239 = vadd.f32 0.0, %v2238
        %v2240 = vpop.f32.mrb[0].mxu0
        %v2241 = vpop.f32.mrb[0].mxu0
        %v2242 = vadd.f32 0.0, %v2241
        %v2243 = vpop.f32.mrb[0].mxu0
        %2244 = vmatprep.mubr.bf16.mxu0 0
        %2245 = vmatmul.mubr.bf16.gmra.mrb[0].mxu0 %v2183
        %v2246 = vpop.f32.mrb[0].mxu0
        %v2247 = vadd.f32 0.0, %v2246
        %v2248 = vpop.f32.mrb[0].mxu0
        %v2249 = vpop.f32.mrb[0].mxu0
        %v2250 = vadd.f32 0.0, %v2249
        %v2251 = vpop.f32.mrb[0].mxu0
        %2252 = vdwg.mxu0
        %v2253 = vadd.f32 %v2152, %v2223
        %v2254 = vadd.f32 %v2153, %v2226
        %v2255 = vadd.f32 %v2154, %v2231
        %v2256 = vadd.f32 %v2155, %v2234
        %v2257 = vadd.f32 %v2156, %v2239
        %v2258 = vadd.f32 %v2157, %v2242
        %v2259 = vadd.f32 %v2158, %v2247
        %v2260 = vadd.f32 %v2159, %v2250
        %v2261 = vld [vmem:[%s1134 + $0x2] sm:$0xff]
        %v2262 = vld [vmem:[%s1134 + $0x12] sm:$0xff]
        %v2263 = vld [vmem:[%s1134 + $0x22] sm:$0xff]
        %v2264 = vld [vmem:[%s1134 + $0x32] sm:$0xff]
        %v2265 = vld [vmem:[%s1134 + $0x42] sm:$0xff]
        %v2266 = vld [vmem:[%s1134 + $0x52] sm:$0xff]
        %v2267 = vld [vmem:[%s1134 + $0x62] sm:$0xff]
        %v2268 = vld [vmem:[%s1134 + $0x72] sm:$0xff]
        %v2269 = vpack.c.bf16 %v2262, %v2261
        %v2270 = vpack.c.bf16 %v2264, %v2263
        %v2271 = vpack.c.bf16 %v2266, %v2265
        %v2272 = vpack.c.bf16 %v2268, %v2267
        %v2273 = vld [vmem:[%s4 + $0x20] sm:$0xf]
        %v2275 = vsel %vm482, %v2269, 0
        %v2278 = vsel %vm482, %v2270, 0
        %v2281 = vsel %vm482, %v2271, 0
        %v2284 = vsel %vm482, %v2272, 0
        %v2287 = vsel %vm581, %v2273, 0
        %2289 = vmatprep.subr.bf16.mxu0 0
        %2290 = vmatpush1.bf16.msra.mxu0 %v2287
        %2291 = vmatprep.subr.bf16.mxu0 0
        %2292 = vmatpush1.bf16.msra.mxu0 0
        %2293 = vmatprep.subr.bf16.mxu0 0
        %2294 = vmatpush1.bf16.msra.mxu0 0
        %2295 = vmatprep.subr.bf16.mxu0 0
        %2296 = vmatpush1.bf16.msra.mxu0 0
        %2297 = vmatprep.subr.bf16.mxu0 0
        %2298 = vmatpush1.bf16.msra.mxu0 0
        %2299 = vmatprep.subr.bf16.mxu0 0
        %2300 = vmatpush1.bf16.msra.mxu0 0
        %2301 = vmatprep.subr.bf16.mxu0 0
        %2302 = vmatpush1.bf16.msra.mxu0 0
        %2303 = vmatprep.subr.bf16.mxu0 0
        %2304 = vmatpush1.bf16.msra.mxu0 0
        %2305 = vmatprep.subr.bf16.mxu0 0
        %2306 = vmatpush1.bf16.msra.mxu0 0
        %2307 = vmatprep.subr.bf16.mxu0 0
        %2308 = vmatpush1.bf16.msra.mxu0 0
        %2309 = vmatprep.subr.bf16.mxu0 0
        %2310 = vmatpush1.bf16.msra.mxu0 0
        %2311 = vmatprep.subr.bf16.mxu0 0
        %2312 = vmatpush1.bf16.msra.mxu0 0
        %2313 = vmatprep.subr.bf16.mxu0 0
        %2314 = vmatpush1.bf16.msra.mxu0 0
        %2315 = vmatprep.subr.bf16.mxu0 0
        %2316 = vmatpush1.bf16.msra.mxu0 0
        %2317 = vmatprep.subr.bf16.mxu0 0
        %2318 = vmatpush1.bf16.msra.mxu0 0
        %2319 = vmatprep.subr.bf16.mxu0 0
        %2320 = vmatpush1.bf16.msra.mxu0 0
        %2321 = vmatprep.mubr.bf16.mxu0 0
        %2322 = vmatmul.mubr.bf16.gmra.mrb[0].mxu0 %v2275
        %v2323 = vpop.f32.mrb[0].mxu0
        %v2324 = vadd.f32 0.0, %v2323
        %v2325 = vpop.f32.mrb[0].mxu0
        %v2326 = vpop.f32.mrb[0].mxu0
        %v2327 = vadd.f32 0.0, %v2326
        %v2328 = vpop.f32.mrb[0].mxu0
        %2329 = vmatprep.mubr.bf16.mxu0 0
        %2330 = vmatmul.mubr.bf16.gmra.mrb[0].mxu0 %v2278
        %v2331 = vpop.f32.mrb[0].mxu0
        %v2332 = vadd.f32 0.0, %v2331
        %v2333 = vpop.f32.mrb[0].mxu0
        %v2334 = vpop.f32.mrb[0].mxu0
        %v2335 = vadd.f32 0.0, %v2334
        %v2336 = vpop.f32.mrb[0].mxu0
        %2337 = vmatprep.mubr.bf16.mxu0 0
        %2338 = vmatmul.mubr.bf16.gmra.mrb[0].mxu0 %v2281
        %v2339 = vpop.f32.mrb[0].mxu0
        %v2340 = vadd.f32 0.0, %v2339
        %v2341 = vpop.f32.mrb[0].mxu0
        %v2342 = vpop.f32.mrb[0].mxu0
        %v2343 = vadd.f32 0.0, %v2342
        %v2344 = vpop.f32.mrb[0].mxu0
        %2345 = vmatprep.mubr.bf16.mxu0 0
        %2346 = vmatmul.mubr.bf16.gmra.mrb[0].mxu0 %v2284
        %v2347 = vpop.f32.mrb[0].mxu0
        %v2348 = vadd.f32 0.0, %v2347
        %v2349 = vpop.f32.mrb[0].mxu0
        %v2350 = vpop.f32.mrb[0].mxu0
        %v2351 = vadd.f32 0.0, %v2350
        %v2352 = vpop.f32.mrb[0].mxu0
        %2353 = vdwg.mxu0
        %v2354 = vadd.f32 %v2253, %v2324
        %v2355 = vadd.f32 %v2254, %v2327
        %v2356 = vadd.f32 %v2255, %v2332
        %v2357 = vadd.f32 %v2256, %v2335
        %v2358 = vadd.f32 %v2257, %v2340
        %v2359 = vadd.f32 %v2258, %v2343
        %v2360 = vadd.f32 %v2259, %v2348
        %v2361 = vadd.f32 %v2260, %v2351
        %v2362 = vld [vmem:[%s5] sm:$0x1]
        %v2364 = vlaneseq
        %v2365 = vshrl.u32 %v2364, 7
        %v2366 = vsub.s32 0, %v2365
        %v2367 = vrot.slane %v2362, %v2366
        %v2369 = vadd.f32 %v2354, %v2367
        %v2370 = vadd.f32 %v2355, %v2367
        %v2371 = vadd.f32 %v2356, %v2367
        %v2372 = vadd.f32 %v2357, %v2367
        %v2373 = vadd.f32 %v2358, %v2367
        %v2374 = vadd.f32 %v2359, %v2367
        %v2375 = vadd.f32 %v2360, %v2367
        %v2376 = vadd.f32 %v2361, %v2367
        %v2377 = vadd.f32 %v2369, %v518
        %v2378 = vadd.f32 %v2370, %v519
        %v2379 = vadd.f32 %v2371, %v520
        %v2380 = vadd.f32 %v2372, %v521
        %v2381 = vadd.f32 %v2373, %v522
        %v2382 = vadd.f32 %v2374, %v523
        %v2383 = vadd.f32 %v2375, %v524
        %v2384 = vadd.f32 %v2376, %v525
        %v2385 = vadd.f32 %v510, %v2377
        %v2386 = vadd.f32 %v511, %v2378
        %v2387 = vadd.f32 %v512, %v2379
        %v2388 = vadd.f32 %v513, %v2380
        %v2389 = vadd.f32 %v514, %v2381
        %v2390 = vadd.f32 %v515, %v2382
        %v2391 = vadd.f32 %v516, %v2383
        %v2392 = vadd.f32 %v517, %v2384
        %v2393 = vmax.f32 %v2385, 0.0
        %v2394 = vmax.f32 %v2386, 0.0
        %v2395 = vmax.f32 %v2387, 0.0
        %v2396 = vmax.f32 %v2388, 0.0
        %v2397 = vmax.f32 %v2389, 0.0
        %v2398 = vmax.f32 %v2390, 0.0
        %v2399 = vmax.f32 %v2391, 0.0
        %v2400 = vmax.f32 %v2392, 0.0
        %2401 = vst.msk [vmem:[%s534 + $0x1] sm:$0xff] %vm482, %v2393
        %2402 = vst.msk [vmem:[%s534 + $0x11] sm:$0xff] %vm482, %v2394
        %2403 = vst.msk [vmem:[%s534 + $0x21] sm:$0xff] %vm482, %v2395
        %2404 = vst.msk [vmem:[%s534 + $0x31] sm:$0xff] %vm482, %v2396
        %2405 = vst.msk [vmem:[%s534 + $0x41] sm:$0xff] %vm482, %v2397
        %2406 = vst.msk [vmem:[%s534 + $0x51] sm:$0xff] %vm482, %v2398
        %2407 = vst.msk [vmem:[%s534 + $0x61] sm:$0xff] %vm482, %v2399
        %2408 = vst.msk [vmem:[%s534 + $0x71] sm:$0xff] %vm482, %v2400
        %v2409 = vld [vmem:[#allocation2] sm:$0xff]
        %v2410 = vld [vmem:[#allocation2 + $0x10] sm:$0xff]
        %v2411 = vld [vmem:[#allocation2 + $0x20] sm:$0xff]
        %v2412 = vld [vmem:[#allocation2 + $0x30] sm:$0xff]
        %v2413 = vld [vmem:[#allocation2 + $0x40] sm:$0xff]
        %v2414 = vld [vmem:[#allocation2 + $0x50] sm:$0xff]
        %v2415 = vld [vmem:[#allocation2 + $0x60] sm:$0xff]
        %v2416 = vld [vmem:[#allocation2 + $0x70] sm:$0xff]
        %v2417 = vpack.c.bf16 %v2410, %v2409
        %v2418 = vpack.c.bf16 %v2412, %v2411
        %v2419 = vpack.c.bf16 %v2414, %v2413
        %v2420 = vpack.c.bf16 %v2416, %v2415
        %v2421 = vld [vmem:[%s6] sm:$0xf]
        %v2422 = vld [vmem:[#allocation2 + $0x1] sm:$0xff]
        %v2423 = vld [vmem:[#allocation2 + $0x11] sm:$0xff]
        %v2424 = vld [vmem:[#allocation2 + $0x21] sm:$0xff]
        %v2425 = vld [vmem:[#allocation2 + $0x31] sm:$0xff]
        %v2426 = vld [vmem:[#allocation2 + $0x41] sm:$0xff]
        %v2427 = vld [vmem:[#allocation2 + $0x51] sm:$0xff]
        %v2428 = vld [vmem:[#allocation2 + $0x61] sm:$0xff]
        %v2429 = vld [vmem:[#allocation2 + $0x71] sm:$0xff]
        %v2430 = vpack.c.bf16 %v2423, %v2422
        %v2431 = vpack.c.bf16 %v2425, %v2424
        %v2432 = vpack.c.bf16 %v2427, %v2426
        %v2433 = vpack.c.bf16 %v2429, %v2428
        %v2434 = vld [vmem:[%s6 + $0x4] sm:$0xf]
        %v2436 = vsel %vm482, %v2430, 0
        %v2439 = vsel %vm482, %v2431, 0
        %v2442 = vsel %vm482, %v2432, 0
        %v2445 = vsel %vm482, %v2433, 0
        %v2448 = vsel %vm581, %v2434, 0
        %2450 = vmatprep.subr.bf16.mxu0 0
        %2451 = vmatpush1.bf16.msra.mxu0 %v2448
        %2452 = vmatprep.subr.bf16.mxu0 0
        %2453 = vmatpush1.bf16.msra.mxu0 0
        %2454 = vmatprep.subr.bf16.mxu0 0
        %2455 = vmatpush1.bf16.msra.mxu0 0
        %2456 = vmatprep.subr.bf16.mxu0 0
        %2457 = vmatpush1.bf16.msra.mxu0 0
        %2458 = vmatprep.subr.bf16.mxu0 0
        %2459 = vmatpush1.bf16.msra.mxu0 0
        %2460 = vmatprep.subr.bf16.mxu0 0
        %2461 = vmatpush1.bf16.msra.mxu0 0
        %2462 = vmatprep.subr.bf16.mxu0 0
        %2463 = vmatpush1.bf16.msra.mxu0 0
        %2464 = vmatprep.subr.bf16.mxu0 0
        %2465 = vmatpush1.bf16.msra.mxu0 0
        %2466 = vmatprep.subr.bf16.mxu0 0
        %2467 = vmatpush1.bf16.msra.mxu0 0
        %2468 = vmatprep.subr.bf16.mxu0 0
        %2469 = vmatpush1.bf16.msra.mxu0 0
        %2470 = vmatprep.subr.bf16.mxu0 0
        %2471 = vmatpush1.bf16.msra.mxu0 0
        %2472 = vmatprep.subr.bf16.mxu0 0
        %2473 = vmatpush1.bf16.msra.mxu0 0
        %2474 = vmatprep.subr.bf16.mxu0 0
        %2475 = vmatpush1.bf16.msra.mxu0 0
        %2476 = vmatprep.subr.bf16.mxu0 0
        %2477 = vmatpush1.bf16.msra.mxu0 0
        %2478 = vmatprep.subr.bf16.mxu0 0
        %2479 = vmatpush1.bf16.msra.mxu0 0
        %2480 = vmatprep.subr.bf16.mxu0 0
        %2481 = vmatpush1.bf16.msra.mxu0 0
        %2482 = vmatprep.mubr.bf16.mxu0 0
        %2483 = vmatmul.mubr.bf16.gmra.mrb[0].mxu0 %v2436
        %v2484 = vpop.f32.mrb[0].mxu0
        %v2485 = vadd.f32 0.0, %v2484
        %v2486 = vpop.f32.mrb[0].mxu0
        %v2487 = vpop.f32.mrb[0].mxu0
        %v2488 = vadd.f32 0.0, %v2487
        %v2489 = vpop.f32.mrb[0].mxu0
        %2490 = vmatprep.mubr.bf16.mxu0 0
        %2491 = vmatmul.mubr.bf16.gmra.mrb[0].mxu0 %v2439
        %v2492 = vpop.f32.mrb[0].mxu0
        %v2493 = vadd.f32 0.0, %v2492
        %v2494 = vpop.f32.mrb[0].mxu0
        %v2495 = vpop.f32.mrb[0].mxu0
        %v2496 = vadd.f32 0.0, %v2495
        %v2497 = vpop.f32.mrb[0].mxu0
        %2498 = vmatprep.mubr.bf16.mxu0 0
        %2499 = vmatmul.mubr.bf16.gmra.mrb[0].mxu0 %v2442
        %v2500 = vpop.f32.mrb[0].mxu0
        %v2501 = vadd.f32 0.0, %v2500
        %v2502 = vpop.f32.mrb[0].mxu0
        %v2503 = vpop.f32.mrb[0].mxu0
        %v2504 = vadd.f32 0.0, %v2503
        %v2505 = vpop.f32.mrb[0].mxu0
        %2506 = vmatprep.mubr.bf16.mxu0 0
        %2507 = vmatmul.mubr.bf16.gmra.mrb[0].mxu0 %v2445
        %v2508 = vpop.f32.mrb[0].mxu0
        %v2509 = vadd.f32 0.0, %v2508
        %v2510 = vpop.f32.mrb[0].mxu0
        %v2511 = vpop.f32.mrb[0].mxu0
        %v2512 = vadd.f32 0.0, %v2511
        %v2513 = vpop.f32.mrb[0].mxu0
        %2514 = vdwg.mxu0
        %v2516 = vsel %vm482, %v2417, 0
        %v2519 = vsel %vm482, %v2418, 0
        %v2522 = vsel %vm482, %v2419, 0
        %v2525 = vsel %vm482, %v2420, 0
        %v2528 = vsel %vm581, %v2421, 0
        %2530 = vmatprep.subr.bf16.mxu0 0
        %2531 = vmatpush1.bf16.msra.mxu0 %v2528
        %2532 = vmatprep.subr.bf16.mxu0 0
        %2533 = vmatpush1.bf16.msra.mxu0 0
        %2534 = vmatprep.subr.bf16.mxu0 0
        %2535 = vmatpush1.bf16.msra.mxu0 0
        %2536 = vmatprep.subr.bf16.mxu0 0
        %2537 = vmatpush1.bf16.msra.mxu0 0
        %2538 = vmatprep.subr.bf16.mxu0 0
        %2539 = vmatpush1.bf16.msra.mxu0 0
        %2540 = vmatprep.subr.bf16.mxu0 0
        %2541 = vmatpush1.bf16.msra.mxu0 0
        %2542 = vmatprep.subr.bf16.mxu0 0
        %2543 = vmatpush1.bf16.msra.mxu0 0
        %2544 = vmatprep.subr.bf16.mxu0 0
        %2545 = vmatpush1.bf16.msra.mxu0 0
        %2546 = vmatprep.subr.bf16.mxu0 0
        %2547 = vmatpush1.bf16.msra.mxu0 0
        %2548 = vmatprep.subr.bf16.mxu0 0
        %2549 = vmatpush1.bf16.msra.mxu0 0
        %2550 = vmatprep.subr.bf16.mxu0 0
        %2551 = vmatpush1.bf16.msra.mxu0 0
        %2552 = vmatprep.subr.bf16.mxu0 0
        %2553 = vmatpush1.bf16.msra.mxu0 0
        %2554 = vmatprep.subr.bf16.mxu0 0
        %2555 = vmatpush1.bf16.msra.mxu0 0
        %2556 = vmatprep.subr.bf16.mxu0 0
        %2557 = vmatpush1.bf16.msra.mxu0 0
        %2558 = vmatprep.subr.bf16.mxu0 0
        %2559 = vmatpush1.bf16.msra.mxu0 0
        %2560 = vmatprep.subr.bf16.mxu0 0
        %2561 = vmatpush1.bf16.msra.mxu0 0
        %2562 = vmatprep.mubr.bf16.mxu0 0
        %2563 = vmatmul.mubr.bf16.gmra.mrb[0].mxu0 %v2516
        %v2564 = vpop.f32.mrb[0].mxu0
        %v2565 = vadd.f32 %v2485, %v2564
        %v2566 = vpop.f32.mrb[0].mxu0
        %v2567 = vpop.f32.mrb[0].mxu0
        %v2568 = vadd.f32 %v2488, %v2567
        %v2569 = vpop.f32.mrb[0].mxu0
        %2570 = vmatprep.mubr.bf16.mxu0 0
        %2571 = vmatmul.mubr.bf16.gmra.mrb[0].mxu0 %v2519
        %v2572 = vpop.f32.mrb[0].mxu0
        %v2573 = vadd.f32 %v2493, %v2572
        %v2574 = vpop.f32.mrb[0].mxu0
        %v2575 = vpop.f32.mrb[0].mxu0
        %v2576 = vadd.f32 %v2496, %v2575
        %v2577 = vpop.f32.mrb[0].mxu0
        %2578 = vmatprep.mubr.bf16.mxu0 0
        %2579 = vmatmul.mubr.bf16.gmra.mrb[0].mxu0 %v2522
        %v2580 = vpop.f32.mrb[0].mxu0
        %v2581 = vadd.f32 %v2501, %v2580
        %v2582 = vpop.f32.mrb[0].mxu0
        %v2583 = vpop.f32.mrb[0].mxu0
        %v2584 = vadd.f32 %v2504, %v2583
        %v2585 = vpop.f32.mrb[0].mxu0
        %2586 = vmatprep.mubr.bf16.mxu0 0
        %2587 = vmatmul.mubr.bf16.gmra.mrb[0].mxu0 %v2525
        %v2588 = vpop.f32.mrb[0].mxu0
        %v2589 = vadd.f32 %v2509, %v2588
        %v2590 = vpop.f32.mrb[0].mxu0
        %v2591 = vpop.f32.mrb[0].mxu0
        %v2592 = vadd.f32 %v2512, %v2591
        %v2593 = vpop.f32.mrb[0].mxu0
        %2594 = vdwg.mxu0
        %v2595 = vld [vmem:[#allocation2 + $0x2] sm:$0xff]
        %v2596 = vld [vmem:[#allocation2 + $0x12] sm:$0xff]
        %v2597 = vld [vmem:[#allocation2 + $0x22] sm:$0xff]
        %v2598 = vld [vmem:[#allocation2 + $0x32] sm:$0xff]
        %v2599 = vld [vmem:[#allocation2 + $0x42] sm:$0xff]
        %v2600 = vld [vmem:[#allocation2 + $0x52] sm:$0xff]
        %v2601 = vld [vmem:[#allocation2 + $0x62] sm:$0xff]
        %v2602 = vld [vmem:[#allocation2 + $0x72] sm:$0xff]
        %v2603 = vpack.c.bf16 %v2596, %v2595
        %v2604 = vpack.c.bf16 %v2598, %v2597
        %v2605 = vpack.c.bf16 %v2600, %v2599
        %v2606 = vpack.c.bf16 %v2602, %v2601
        %v2607 = vld [vmem:[%s6 + $0x8] sm:$0xf]
        %v2609 = vsel %vm482, %v2603, 0
        %v2612 = vsel %vm482, %v2604, 0
        %v2615 = vsel %vm482, %v2605, 0
        %v2618 = vsel %vm482, %v2606, 0
        %v2621 = vsel %vm581, %v2607, 0
        %2623 = vmatprep.subr.bf16.mxu0 0
        %2624 = vmatpush1.bf16.msra.mxu0 %v2621
        %2625 = vmatprep.subr.bf16.mxu0 0
        %2626 = vmatpush1.bf16.msra.mxu0 0
        %2627 = vmatprep.subr.bf16.mxu0 0
        %2628 = vmatpush1.bf16.msra.mxu0 0
        %2629 = vmatprep.subr.bf16.mxu0 0
        %2630 = vmatpush1.bf16.msra.mxu0 0
        %2631 = vmatprep.subr.bf16.mxu0 0
        %2632 = vmatpush1.bf16.msra.mxu0 0
        %2633 = vmatprep.subr.bf16.mxu0 0
        %2634 = vmatpush1.bf16.msra.mxu0 0
        %2635 = vmatprep.subr.bf16.mxu0 0
        %2636 = vmatpush1.bf16.msra.mxu0 0
        %2637 = vmatprep.subr.bf16.mxu0 0
        %2638 = vmatpush1.bf16.msra.mxu0 0
        %2639 = vmatprep.subr.bf16.mxu0 0
        %2640 = vmatpush1.bf16.msra.mxu0 0
        %2641 = vmatprep.subr.bf16.mxu0 0
        %2642 = vmatpush1.bf16.msra.mxu0 0
        %2643 = vmatprep.subr.bf16.mxu0 0
        %2644 = vmatpush1.bf16.msra.mxu0 0
        %2645 = vmatprep.subr.bf16.mxu0 0
        %2646 = vmatpush1.bf16.msra.mxu0 0
        %2647 = vmatprep.subr.bf16.mxu0 0
        %2648 = vmatpush1.bf16.msra.mxu0 0
        %2649 = vmatprep.subr.bf16.mxu0 0
        %2650 = vmatpush1.bf16.msra.mxu0 0
        %2651 = vmatprep.subr.bf16.mxu0 0
        %2652 = vmatpush1.bf16.msra.mxu0 0
        %2653 = vmatprep.subr.bf16.mxu0 0
        %2654 = vmatpush1.bf16.msra.mxu0 0
        %2655 = vmatprep.mubr.bf16.mxu0 0
        %2656 = vmatmul.mubr.bf16.gmra.mrb[0].mxu0 %v2609
        %v2657 = vpop.f32.mrb[0].mxu0
        %v2658 = vadd.f32 0.0, %v2657
        %v2659 = vpop.f32.mrb[0].mxu0
        %v2660 = vpop.f32.mrb[0].mxu0
        %v2661 = vadd.f32 0.0, %v2660
        %v2662 = vpop.f32.mrb[0].mxu0
        %2663 = vmatprep.mubr.bf16.mxu0 0
        %2664 = vmatmul.mubr.bf16.gmra.mrb[0].mxu0 %v2612
        %v2665 = vpop.f32.mrb[0].mxu0
        %v2666 = vadd.f32 0.0, %v2665
        %v2667 = vpop.f32.mrb[0].mxu0
        %v2668 = vpop.f32.mrb[0].mxu0
        %v2669 = vadd.f32 0.0, %v2668
        %v2670 = vpop.f32.mrb[0].mxu0
        %2671 = vmatprep.mubr.bf16.mxu0 0
        %2672 = vmatmul.mubr.bf16.gmra.mrb[0].mxu0 %v2615
        %v2673 = vpop.f32.mrb[0].mxu0
        %v2674 = vadd.f32 0.0, %v2673
        %v2675 = vpop.f32.mrb[0].mxu0
        %v2676 = vpop.f32.mrb[0].mxu0
        %v2677 = vadd.f32 0.0, %v2676
        %v2678 = vpop.f32.mrb[0].mxu0
        %2679 = vmatprep.mubr.bf16.mxu0 0
        %2680 = vmatmul.mubr.bf16.gmra.mrb[0].mxu0 %v2618
        %v2681 = vpop.f32.mrb[0].mxu0
        %v2682 = vadd.f32 0.0, %v2681
        %v2683 = vpop.f32.mrb[0].mxu0
        %v2684 = vpop.f32.mrb[0].mxu0
        %v2685 = vadd.f32 0.0, %v2684
        %v2686 = vpop.f32.mrb[0].mxu0
        %2687 = vdwg.mxu0
        %v2688 = vadd.f32 %v2565, %v2658
        %v2689 = vadd.f32 %v2568, %v2661
        %v2690 = vadd.f32 %v2573, %v2666
        %v2691 = vadd.f32 %v2576, %v2669
        %v2692 = vadd.f32 %v2581, %v2674
        %v2693 = vadd.f32 %v2584, %v2677
        %v2694 = vadd.f32 %v2589, %v2682
        %v2695 = vadd.f32 %v2592, %v2685
        %v2696 = vld [vmem:[%s534] sm:$0xff]
        %v2697 = vld [vmem:[%s534 + $0x10] sm:$0xff]
        %v2698 = vld [vmem:[%s534 + $0x20] sm:$0xff]
        %v2699 = vld [vmem:[%s534 + $0x30] sm:$0xff]
        %v2700 = vld [vmem:[%s534 + $0x40] sm:$0xff]
        %v2701 = vld [vmem:[%s534 + $0x50] sm:$0xff]
        %v2702 = vld [vmem:[%s534 + $0x60] sm:$0xff]
        %v2703 = vld [vmem:[%s534 + $0x70] sm:$0xff]
        %v2704 = vpack.c.bf16 %v2697, %v2696
        %v2705 = vpack.c.bf16 %v2699, %v2698
        %v2706 = vpack.c.bf16 %v2701, %v2700
        %v2707 = vpack.c.bf16 %v2703, %v2702
        %v2708 = vld [vmem:[%s6 + $0xc] sm:$0xf]
        %v2710 = vsel %vm482, %v2704, 0
        %v2713 = vsel %vm482, %v2705, 0
        %v2716 = vsel %vm482, %v2706, 0
        %v2719 = vsel %vm482, %v2707, 0
        %v2722 = vsel %vm581, %v2708, 0
        %2724 = vmatprep.subr.bf16.mxu0 0
        %2725 = vmatpush1.bf16.msra.mxu0 %v2722
        %2726 = vmatprep.subr.bf16.mxu0 0
        %2727 = vmatpush1.bf16.msra.mxu0 0
        %2728 = vmatprep.subr.bf16.mxu0 0
        %2729 = vmatpush1.bf16.msra.mxu0 0
        %2730 = vmatprep.subr.bf16.mxu0 0
        %2731 = vmatpush1.bf16.msra.mxu0 0
        %2732 = vmatprep.subr.bf16.mxu0 0
        %2733 = vmatpush1.bf16.msra.mxu0 0
        %2734 = vmatprep.subr.bf16.mxu0 0
        %2735 = vmatpush1.bf16.msra.mxu0 0
        %2736 = vmatprep.subr.bf16.mxu0 0
        %2737 = vmatpush1.bf16.msra.mxu0 0
        %2738 = vmatprep.subr.bf16.mxu0 0
        %2739 = vmatpush1.bf16.msra.mxu0 0
        %2740 = vmatprep.subr.bf16.mxu0 0
        %2741 = vmatpush1.bf16.msra.mxu0 0
        %2742 = vmatprep.subr.bf16.mxu0 0
        %2743 = vmatpush1.bf16.msra.mxu0 0
        %2744 = vmatprep.subr.bf16.mxu0 0
        %2745 = vmatpush1.bf16.msra.mxu0 0
        %2746 = vmatprep.subr.bf16.mxu0 0
        %2747 = vmatpush1.bf16.msra.mxu0 0
        %2748 = vmatprep.subr.bf16.mxu0 0
        %2749 = vmatpush1.bf16.msra.mxu0 0
        %2750 = vmatprep.subr.bf16.mxu0 0
        %2751 = vmatpush1.bf16.msra.mxu0 0
        %2752 = vmatprep.subr.bf16.mxu0 0
        %2753 = vmatpush1.bf16.msra.mxu0 0
        %2754 = vmatprep.subr.bf16.mxu0 0
        %2755 = vmatpush1.bf16.msra.mxu0 0
        %2756 = vmatprep.mubr.bf16.mxu0 0
        %2757 = vmatmul.mubr.bf16.gmra.mrb[0].mxu0 %v2710
        %v2758 = vpop.f32.mrb[0].mxu0
        %v2759 = vadd.f32 0.0, %v2758
        %v2760 = vpop.f32.mrb[0].mxu0
        %v2761 = vpop.f32.mrb[0].mxu0
        %v2762 = vadd.f32 0.0, %v2761
        %v2763 = vpop.f32.mrb[0].mxu0
        %2764 = vmatprep.mubr.bf16.mxu0 0
        %2765 = vmatmul.mubr.bf16.gmra.mrb[0].mxu0 %v2713
        %v2766 = vpop.f32.mrb[0].mxu0
        %v2767 = vadd.f32 0.0, %v2766
        %v2768 = vpop.f32.mrb[0].mxu0
        %v2769 = vpop.f32.mrb[0].mxu0
        %v2770 = vadd.f32 0.0, %v2769
        %v2771 = vpop.f32.mrb[0].mxu0
        %2772 = vmatprep.mubr.bf16.mxu0 0
        %2773 = vmatmul.mubr.bf16.gmra.mrb[0].mxu0 %v2716
        %v2774 = vpop.f32.mrb[0].mxu0
        %v2775 = vadd.f32 0.0, %v2774
        %v2776 = vpop.f32.mrb[0].mxu0
        %v2777 = vpop.f32.mrb[0].mxu0
        %v2778 = vadd.f32 0.0, %v2777
        %v2779 = vpop.f32.mrb[0].mxu0
        %2780 = vmatprep.mubr.bf16.mxu0 0
        %2781 = vmatmul.mubr.bf16.gmra.mrb[0].mxu0 %v2719
        %v2782 = vpop.f32.mrb[0].mxu0
        %v2783 = vadd.f32 0.0, %v2782
        %v2784 = vpop.f32.mrb[0].mxu0
        %v2785 = vpop.f32.mrb[0].mxu0
        %v2786 = vadd.f32 0.0, %v2785
        %v2787 = vpop.f32.mrb[0].mxu0
        %2788 = vdwg.mxu0
        %v2789 = vadd.f32 %v2688, %v2759
        %v2790 = vadd.f32 %v2689, %v2762
        %v2791 = vadd.f32 %v2690, %v2767
        %v2792 = vadd.f32 %v2691, %v2770
        %v2793 = vadd.f32 %v2692, %v2775
        %v2794 = vadd.f32 %v2693, %v2778
        %v2795 = vadd.f32 %v2694, %v2783
        %v2796 = vadd.f32 %v2695, %v2786
        %v2797 = vld [vmem:[%s534 + $0x1] sm:$0xff]
        %v2798 = vld [vmem:[%s534 + $0x11] sm:$0xff]
        %v2799 = vld [vmem:[%s534 + $0x21] sm:$0xff]
        %v2800 = vld [vmem:[%s534 + $0x31] sm:$0xff]
        %v2801 = vld [vmem:[%s534 + $0x41] sm:$0xff]
        %v2802 = vld [vmem:[%s534 + $0x51] sm:$0xff]
        %v2803 = vld [vmem:[%s534 + $0x61] sm:$0xff]
        %v2804 = vld [vmem:[%s534 + $0x71] sm:$0xff]
        %v2805 = vpack.c.bf16 %v2798, %v2797
        %v2806 = vpack.c.bf16 %v2800, %v2799
        %v2807 = vpack.c.bf16 %v2802, %v2801
        %v2808 = vpack.c.bf16 %v2804, %v2803
        %v2809 = vld [vmem:[%s6 + $0x10] sm:$0xf]
        %v2811 = vsel %vm482, %v2805, 0
        %v2814 = vsel %vm482, %v2806, 0
        %v2817 = vsel %vm482, %v2807, 0
        %v2820 = vsel %vm482, %v2808, 0
        %v2823 = vsel %vm581, %v2809, 0
        %2825 = vmatprep.subr.bf16.mxu0 0
        %2826 = vmatpush1.bf16.msra.mxu0 %v2823
        %2827 = vmatprep.subr.bf16.mxu0 0
        %2828 = vmatpush1.bf16.msra.mxu0 0
        %2829 = vmatprep.subr.bf16.mxu0 0
        %2830 = vmatpush1.bf16.msra.mxu0 0
        %2831 = vmatprep.subr.bf16.mxu0 0
        %2832 = vmatpush1.bf16.msra.mxu0 0
        %2833 = vmatprep.subr.bf16.mxu0 0
        %2834 = vmatpush1.bf16.msra.mxu0 0
        %2835 = vmatprep.subr.bf16.mxu0 0
        %2836 = vmatpush1.bf16.msra.mxu0 0
        %2837 = vmatprep.subr.bf16.mxu0 0
        %2838 = vmatpush1.bf16.msra.mxu0 0
        %2839 = vmatprep.subr.bf16.mxu0 0
        %2840 = vmatpush1.bf16.msra.mxu0 0
        %2841 = vmatprep.subr.bf16.mxu0 0
        %2842 = vmatpush1.bf16.msra.mxu0 0
        %2843 = vmatprep.subr.bf16.mxu0 0
        %2844 = vmatpush1.bf16.msra.mxu0 0
        %2845 = vmatprep.subr.bf16.mxu0 0
        %2846 = vmatpush1.bf16.msra.mxu0 0
        %2847 = vmatprep.subr.bf16.mxu0 0
        %2848 = vmatpush1.bf16.msra.mxu0 0
        %2849 = vmatprep.subr.bf16.mxu0 0
        %2850 = vmatpush1.bf16.msra.mxu0 0
        %2851 = vmatprep.subr.bf16.mxu0 0
        %2852 = vmatpush1.bf16.msra.mxu0 0
        %2853 = vmatprep.subr.bf16.mxu0 0
        %2854 = vmatpush1.bf16.msra.mxu0 0
        %2855 = vmatprep.subr.bf16.mxu0 0
        %2856 = vmatpush1.bf16.msra.mxu0 0
        %2857 = vmatprep.mubr.bf16.mxu0 0
        %2858 = vmatmul.mubr.bf16.gmra.mrb[0].mxu0 %v2811
        %v2859 = vpop.f32.mrb[0].mxu0
        %v2860 = vadd.f32 0.0, %v2859
        %v2861 = vpop.f32.mrb[0].mxu0
        %v2862 = vpop.f32.mrb[0].mxu0
        %v2863 = vadd.f32 0.0, %v2862
        %v2864 = vpop.f32.mrb[0].mxu0
        %2865 = vmatprep.mubr.bf16.mxu0 0
        %2866 = vmatmul.mubr.bf16.gmra.mrb[0].mxu0 %v2814
        %v2867 = vpop.f32.mrb[0].mxu0
        %v2868 = vadd.f32 0.0, %v2867
        %v2869 = vpop.f32.mrb[0].mxu0
        %v2870 = vpop.f32.mrb[0].mxu0
        %v2871 = vadd.f32 0.0, %v2870
        %v2872 = vpop.f32.mrb[0].mxu0
        %2873 = vmatprep.mubr.bf16.mxu0 0
        %2874 = vmatmul.mubr.bf16.gmra.mrb[0].mxu0 %v2817
        %v2875 = vpop.f32.mrb[0].mxu0
        %v2876 = vadd.f32 0.0, %v2875
        %v2877 = vpop.f32.mrb[0].mxu0
        %v2878 = vpop.f32.mrb[0].mxu0
        %v2879 = vadd.f32 0.0, %v2878
        %v2880 = vpop.f32.mrb[0].mxu0
        %2881 = vmatprep.mubr.bf16.mxu0 0
        %2882 = vmatmul.mubr.bf16.gmra.mrb[0].mxu0 %v2820
        %v2883 = vpop.f32.mrb[0].mxu0
        %v2884 = vadd.f32 0.0, %v2883
        %v2885 = vpop.f32.mrb[0].mxu0
        %v2886 = vpop.f32.mrb[0].mxu0
        %v2887 = vadd.f32 0.0, %v2886
        %v2888 = vpop.f32.mrb[0].mxu0
        %2889 = vdwg.mxu0
        %v2890 = vadd.f32 %v2789, %v2860
        %v2891 = vadd.f32 %v2790, %v2863
        %v2892 = vadd.f32 %v2791, %v2868
        %v2893 = vadd.f32 %v2792, %v2871
        %v2894 = vadd.f32 %v2793, %v2876
        %v2895 = vadd.f32 %v2794, %v2879
        %v2896 = vadd.f32 %v2795, %v2884
        %v2897 = vadd.f32 %v2796, %v2887
        %v2898 = vld [vmem:[%s534 + $0x2] sm:$0xff]
        %v2899 = vld [vmem:[%s534 + $0x12] sm:$0xff]
        %v2900 = vld [vmem:[%s534 + $0x22] sm:$0xff]
        %v2901 = vld [vmem:[%s534 + $0x32] sm:$0xff]
        %v2902 = vld [vmem:[%s534 + $0x42] sm:$0xff]
        %v2903 = vld [vmem:[%s534 + $0x52] sm:$0xff]
        %v2904 = vld [vmem:[%s534 + $0x62] sm:$0xff]
        %v2905 = vld [vmem:[%s534 + $0x72] sm:$0xff]
        %v2906 = vpack.c.bf16 %v2899, %v2898
        %v2907 = vpack.c.bf16 %v2901, %v2900
        %v2908 = vpack.c.bf16 %v2903, %v2902
        %v2909 = vpack.c.bf16 %v2905, %v2904
        %v2910 = vld [vmem:[%s6 + $0x14] sm:$0xf]
        %v2912 = vsel %vm482, %v2906, 0
        %v2915 = vsel %vm482, %v2907, 0
        %v2918 = vsel %vm482, %v2908, 0
        %v2921 = vsel %vm482, %v2909, 0
        %v2924 = vsel %vm581, %v2910, 0
        %2926 = vmatprep.subr.bf16.mxu0 0
        %2927 = vmatpush1.bf16.msra.mxu0 %v2924
        %2928 = vmatprep.subr.bf16.mxu0 0
        %2929 = vmatpush1.bf16.msra.mxu0 0
        %2930 = vmatprep.subr.bf16.mxu0 0
        %2931 = vmatpush1.bf16.msra.mxu0 0
        %2932 = vmatprep.subr.bf16.mxu0 0
        %2933 = vmatpush1.bf16.msra.mxu0 0
        %2934 = vmatprep.subr.bf16.mxu0 0
        %2935 = vmatpush1.bf16.msra.mxu0 0
        %2936 = vmatprep.subr.bf16.mxu0 0
        %2937 = vmatpush1.bf16.msra.mxu0 0
        %2938 = vmatprep.subr.bf16.mxu0 0
        %2939 = vmatpush1.bf16.msra.mxu0 0
        %2940 = vmatprep.subr.bf16.mxu0 0
        %2941 = vmatpush1.bf16.msra.mxu0 0
        %2942 = vmatprep.subr.bf16.mxu0 0
        %2943 = vmatpush1.bf16.msra.mxu0 0
        %2944 = vmatprep.subr.bf16.mxu0 0
        %2945 = vmatpush1.bf16.msra.mxu0 0
        %2946 = vmatprep.subr.bf16.mxu0 0
        %2947 = vmatpush1.bf16.msra.mxu0 0
        %2948 = vmatprep.subr.bf16.mxu0 0
        %2949 = vmatpush1.bf16.msra.mxu0 0
        %2950 = vmatprep.subr.bf16.mxu0 0
        %2951 = vmatpush1.bf16.msra.mxu0 0
        %2952 = vmatprep.subr.bf16.mxu0 0
        %2953 = vmatpush1.bf16.msra.mxu0 0
        %2954 = vmatprep.subr.bf16.mxu0 0
        %2955 = vmatpush1.bf16.msra.mxu0 0
        %2956 = vmatprep.subr.bf16.mxu0 0
        %2957 = vmatpush1.bf16.msra.mxu0 0
        %2958 = vmatprep.mubr.bf16.mxu0 0
        %2959 = vmatmul.mubr.bf16.gmra.mrb[0].mxu0 %v2912
        %v2960 = vpop.f32.mrb[0].mxu0
        %v2961 = vadd.f32 0.0, %v2960
        %v2962 = vpop.f32.mrb[0].mxu0
        %v2963 = vpop.f32.mrb[0].mxu0
        %v2964 = vadd.f32 0.0, %v2963
        %v2965 = vpop.f32.mrb[0].mxu0
        %2966 = vmatprep.mubr.bf16.mxu0 0
        %2967 = vmatmul.mubr.bf16.gmra.mrb[0].mxu0 %v2915
        %v2968 = vpop.f32.mrb[0].mxu0
        %v2969 = vadd.f32 0.0, %v2968
        %v2970 = vpop.f32.mrb[0].mxu0
        %v2971 = vpop.f32.mrb[0].mxu0
        %v2972 = vadd.f32 0.0, %v2971
        %v2973 = vpop.f32.mrb[0].mxu0
        %2974 = vmatprep.mubr.bf16.mxu0 0
        %2975 = vmatmul.mubr.bf16.gmra.mrb[0].mxu0 %v2918
        %v2976 = vpop.f32.mrb[0].mxu0
        %v2977 = vadd.f32 0.0, %v2976
        %v2978 = vpop.f32.mrb[0].mxu0
        %v2979 = vpop.f32.mrb[0].mxu0
        %v2980 = vadd.f32 0.0, %v2979
        %v2981 = vpop.f32.mrb[0].mxu0
        %2982 = vmatprep.mubr.bf16.mxu0 0
        %2983 = vmatmul.mubr.bf16.gmra.mrb[0].mxu0 %v2921
        %v2984 = vpop.f32.mrb[0].mxu0
        %v2985 = vadd.f32 0.0, %v2984
        %v2986 = vpop.f32.mrb[0].mxu0
        %v2987 = vpop.f32.mrb[0].mxu0
        %v2988 = vadd.f32 0.0, %v2987
        %v2989 = vpop.f32.mrb[0].mxu0
        %2990 = vdwg.mxu0
        %v2991 = vadd.f32 %v2890, %v2961
        %v2992 = vadd.f32 %v2891, %v2964
        %v2993 = vadd.f32 %v2892, %v2969
        %v2994 = vadd.f32 %v2893, %v2972
        %v2995 = vadd.f32 %v2894, %v2977
        %v2996 = vadd.f32 %v2895, %v2980
        %v2997 = vadd.f32 %v2896, %v2985
        %v2998 = vadd.f32 %v2897, %v2988
        %v2999 = vld [vmem:[%s1134] sm:$0xff]
        %v3000 = vld [vmem:[%s1134 + $0x10] sm:$0xff]
        %v3001 = vld [vmem:[%s1134 + $0x20] sm:$0xff]
        %v3002 = vld [vmem:[%s1134 + $0x30] sm:$0xff]
        %v3003 = vld [vmem:[%s1134 + $0x40] sm:$0xff]
        %v3004 = vld [vmem:[%s1134 + $0x50] sm:$0xff]
        %v3005 = vld [vmem:[%s1134 + $0x60] sm:$0xff]
        %v3006 = vld [vmem:[%s1134 + $0x70] sm:$0xff]
        %v3007 = vpack.c.bf16 %v3000, %v2999
        %v3008 = vpack.c.bf16 %v3002, %v3001
        %v3009 = vpack.c.bf16 %v3004, %v3003
        %v3010 = vpack.c.bf16 %v3006, %v3005
        %v3011 = vld [vmem:[%s6 + $0x18] sm:$0xf]
        %v3013 = vsel %vm482, %v3007, 0
        %v3016 = vsel %vm482, %v3008, 0
        %v3019 = vsel %vm482, %v3009, 0
        %v3022 = vsel %vm482, %v3010, 0
        %v3025 = vsel %vm581, %v3011, 0
        %3027 = vmatprep.subr.bf16.mxu0 0
        %3028 = vmatpush1.bf16.msra.mxu0 %v3025
        %3029 = vmatprep.subr.bf16.mxu0 0
        %3030 = vmatpush1.bf16.msra.mxu0 0
        %3031 = vmatprep.subr.bf16.mxu0 0
        %3032 = vmatpush1.bf16.msra.mxu0 0
        %3033 = vmatprep.subr.bf16.mxu0 0
        %3034 = vmatpush1.bf16.msra.mxu0 0
        %3035 = vmatprep.subr.bf16.mxu0 0
        %3036 = vmatpush1.bf16.msra.mxu0 0
        %3037 = vmatprep.subr.bf16.mxu0 0
        %3038 = vmatpush1.bf16.msra.mxu0 0
        %3039 = vmatprep.subr.bf16.mxu0 0
        %3040 = vmatpush1.bf16.msra.mxu0 0
        %3041 = vmatprep.subr.bf16.mxu0 0
        %3042 = vmatpush1.bf16.msra.mxu0 0
        %3043 = vmatprep.subr.bf16.mxu0 0
        %3044 = vmatpush1.bf16.msra.mxu0 0
        %3045 = vmatprep.subr.bf16.mxu0 0
        %3046 = vmatpush1.bf16.msra.mxu0 0
        %3047 = vmatprep.subr.bf16.mxu0 0
        %3048 = vmatpush1.bf16.msra.mxu0 0
        %3049 = vmatprep.subr.bf16.mxu0 0
        %3050 = vmatpush1.bf16.msra.mxu0 0
        %3051 = vmatprep.subr.bf16.mxu0 0
        %3052 = vmatpush1.bf16.msra.mxu0 0
        %3053 = vmatprep.subr.bf16.mxu0 0
        %3054 = vmatpush1.bf16.msra.mxu0 0
        %3055 = vmatprep.subr.bf16.mxu0 0
        %3056 = vmatpush1.bf16.msra.mxu0 0
        %3057 = vmatprep.subr.bf16.mxu0 0
        %3058 = vmatpush1.bf16.msra.mxu0 0
        %3059 = vmatprep.mubr.bf16.mxu0 0
        %3060 = vmatmul.mubr.bf16.gmra.mrb[0].mxu0 %v3013
        %v3061 = vpop.f32.mrb[0].mxu0
        %v3062 = vadd.f32 0.0, %v3061
        %v3063 = vpop.f32.mrb[0].mxu0
        %v3064 = vpop.f32.mrb[0].mxu0
        %v3065 = vadd.f32 0.0, %v3064
        %v3066 = vpop.f32.mrb[0].mxu0
        %3067 = vmatprep.mubr.bf16.mxu0 0
        %3068 = vmatmul.mubr.bf16.gmra.mrb[0].mxu0 %v3016
        %v3069 = vpop.f32.mrb[0].mxu0
        %v3070 = vadd.f32 0.0, %v3069
        %v3071 = vpop.f32.mrb[0].mxu0
        %v3072 = vpop.f32.mrb[0].mxu0
        %v3073 = vadd.f32 0.0, %v3072
        %v3074 = vpop.f32.mrb[0].mxu0
        %3075 = vmatprep.mubr.bf16.mxu0 0
        %3076 = vmatmul.mubr.bf16.gmra.mrb[0].mxu0 %v3019
        %v3077 = vpop.f32.mrb[0].mxu0
        %v3078 = vadd.f32 0.0, %v3077
        %v3079 = vpop.f32.mrb[0].mxu0
        %v3080 = vpop.f32.mrb[0].mxu0
        %v3081 = vadd.f32 0.0, %v3080
        %v3082 = vpop.f32.mrb[0].mxu0
        %3083 = vmatprep.mubr.bf16.mxu0 0
        %3084 = vmatmul.mubr.bf16.gmra.mrb[0].mxu0 %v3022
        %v3085 = vpop.f32.mrb[0].mxu0
        %v3086 = vadd.f32 0.0, %v3085
        %v3087 = vpop.f32.mrb[0].mxu0
        %v3088 = vpop.f32.mrb[0].mxu0
        %v3089 = vadd.f32 0.0, %v3088
        %v3090 = vpop.f32.mrb[0].mxu0
        %3091 = vdwg.mxu0
        %v3092 = vadd.f32 %v2991, %v3062
        %v3093 = vadd.f32 %v2992, %v3065
        %v3094 = vadd.f32 %v2993, %v3070
        %v3095 = vadd.f32 %v2994, %v3073
        %v3096 = vadd.f32 %v2995, %v3078
        %v3097 = vadd.f32 %v2996, %v3081
        %v3098 = vadd.f32 %v2997, %v3086
        %v3099 = vadd.f32 %v2998, %v3089
        %v3100 = vld [vmem:[%s1134 + $0x1] sm:$0xff]
        %v3101 = vld [vmem:[%s1134 + $0x11] sm:$0xff]
        %v3102 = vld [vmem:[%s1134 + $0x21] sm:$0xff]
        %v3103 = vld [vmem:[%s1134 + $0x31] sm:$0xff]
        %v3104 = vld [vmem:[%s1134 + $0x41] sm:$0xff]
        %v3105 = vld [vmem:[%s1134 + $0x51] sm:$0xff]
        %v3106 = vld [vmem:[%s1134 + $0x61] sm:$0xff]
        %v3107 = vld [vmem:[%s1134 + $0x71] sm:$0xff]
        %v3108 = vpack.c.bf16 %v3101, %v3100
        %v3109 = vpack.c.bf16 %v3103, %v3102
        %v3110 = vpack.c.bf16 %v3105, %v3104
        %v3111 = vpack.c.bf16 %v3107, %v3106
        %v3112 = vld [vmem:[%s6 + $0x1c] sm:$0xf]
        %v3114 = vsel %vm482, %v3108, 0
        %v3117 = vsel %vm482, %v3109, 0
        %v3120 = vsel %vm482, %v3110, 0
        %v3123 = vsel %vm482, %v3111, 0
        %v3126 = vsel %vm581, %v3112, 0
        %3128 = vmatprep.subr.bf16.mxu0 0
        %3129 = vmatpush1.bf16.msra.mxu0 %v3126
        %3130 = vmatprep.subr.bf16.mxu0 0
        %3131 = vmatpush1.bf16.msra.mxu0 0
        %3132 = vmatprep.subr.bf16.mxu0 0
        %3133 = vmatpush1.bf16.msra.mxu0 0
        %3134 = vmatprep.subr.bf16.mxu0 0
        %3135 = vmatpush1.bf16.msra.mxu0 0
        %3136 = vmatprep.subr.bf16.mxu0 0
        %3137 = vmatpush1.bf16.msra.mxu0 0
        %3138 = vmatprep.subr.bf16.mxu0 0
        %3139 = vmatpush1.bf16.msra.mxu0 0
        %3140 = vmatprep.subr.bf16.mxu0 0
        %3141 = vmatpush1.bf16.msra.mxu0 0
        %3142 = vmatprep.subr.bf16.mxu0 0
        %3143 = vmatpush1.bf16.msra.mxu0 0
        %3144 = vmatprep.subr.bf16.mxu0 0
        %3145 = vmatpush1.bf16.msra.mxu0 0
        %3146 = vmatprep.subr.bf16.mxu0 0
        %3147 = vmatpush1.bf16.msra.mxu0 0
        %3148 = vmatprep.subr.bf16.mxu0 0
        %3149 = vmatpush1.bf16.msra.mxu0 0
        %3150 = vmatprep.subr.bf16.mxu0 0
        %3151 = vmatpush1.bf16.msra.mxu0 0
        %3152 = vmatprep.subr.bf16.mxu0 0
        %3153 = vmatpush1.bf16.msra.mxu0 0
        %3154 = vmatprep.subr.bf16.mxu0 0
        %3155 = vmatpush1.bf16.msra.mxu0 0
        %3156 = vmatprep.subr.bf16.mxu0 0
        %3157 = vmatpush1.bf16.msra.mxu0 0
        %3158 = vmatprep.subr.bf16.mxu0 0
        %3159 = vmatpush1.bf16.msra.mxu0 0
        %3160 = vmatprep.mubr.bf16.mxu0 0
        %3161 = vmatmul.mubr.bf16.gmra.mrb[0].mxu0 %v3114
        %v3162 = vpop.f32.mrb[0].mxu0
        %v3163 = vadd.f32 0.0, %v3162
        %v3164 = vpop.f32.mrb[0].mxu0
        %v3165 = vpop.f32.mrb[0].mxu0
        %v3166 = vadd.f32 0.0, %v3165
        %v3167 = vpop.f32.mrb[0].mxu0
        %3168 = vmatprep.mubr.bf16.mxu0 0
        %3169 = vmatmul.mubr.bf16.gmra.mrb[0].mxu0 %v3117
        %v3170 = vpop.f32.mrb[0].mxu0
        %v3171 = vadd.f32 0.0, %v3170
        %v3172 = vpop.f32.mrb[0].mxu0
        %v3173 = vpop.f32.mrb[0].mxu0
        %v3174 = vadd.f32 0.0, %v3173
        %v3175 = vpop.f32.mrb[0].mxu0
        %3176 = vmatprep.mubr.bf16.mxu0 0
        %3177 = vmatmul.mubr.bf16.gmra.mrb[0].mxu0 %v3120
        %v3178 = vpop.f32.mrb[0].mxu0
        %v3179 = vadd.f32 0.0, %v3178
        %v3180 = vpop.f32.mrb[0].mxu0
        %v3181 = vpop.f32.mrb[0].mxu0
        %v3182 = vadd.f32 0.0, %v3181
        %v3183 = vpop.f32.mrb[0].mxu0
        %3184 = vmatprep.mubr.bf16.mxu0 0
        %3185 = vmatmul.mubr.bf16.gmra.mrb[0].mxu0 %v3123
        %v3186 = vpop.f32.mrb[0].mxu0
        %v3187 = vadd.f32 0.0, %v3186
        %v3188 = vpop.f32.mrb[0].mxu0
        %v3189 = vpop.f32.mrb[0].mxu0
        %v3190 = vadd.f32 0.0, %v3189
        %v3191 = vpop.f32.mrb[0].mxu0
        %3192 = vdwg.mxu0
        %v3193 = vadd.f32 %v3092, %v3163
        %v3194 = vadd.f32 %v3093, %v3166
        %v3195 = vadd.f32 %v3094, %v3171
        %v3196 = vadd.f32 %v3095, %v3174
        %v3197 = vadd.f32 %v3096, %v3179
        %v3198 = vadd.f32 %v3097, %v3182
        %v3199 = vadd.f32 %v3098, %v3187
        %v3200 = vadd.f32 %v3099, %v3190
        %v3201 = vld [vmem:[%s1134 + $0x2] sm:$0xff]
        %v3202 = vld [vmem:[%s1134 + $0x12] sm:$0xff]
        %v3203 = vld [vmem:[%s1134 + $0x22] sm:$0xff]
        %v3204 = vld [vmem:[%s1134 + $0x32] sm:$0xff]
        %v3205 = vld [vmem:[%s1134 + $0x42] sm:$0xff]
        %v3206 = vld [vmem:[%s1134 + $0x52] sm:$0xff]
        %v3207 = vld [vmem:[%s1134 + $0x62] sm:$0xff]
        %v3208 = vld [vmem:[%s1134 + $0x72] sm:$0xff]
        %v3209 = vpack.c.bf16 %v3202, %v3201
        %v3210 = vpack.c.bf16 %v3204, %v3203
        %v3211 = vpack.c.bf16 %v3206, %v3205
        %v3212 = vpack.c.bf16 %v3208, %v3207
        %v3213 = vld [vmem:[%s6 + $0x20] sm:$0xf]
        %v3215 = vsel %vm482, %v3209, 0
        %v3218 = vsel %vm482, %v3210, 0
        %v3221 = vsel %vm482, %v3211, 0
        %v3224 = vsel %vm482, %v3212, 0
        %v3227 = vsel %vm581, %v3213, 0
        %3229 = vmatprep.subr.bf16.mxu0 0
        %3230 = vmatpush1.bf16.msra.mxu0 %v3227
        %3231 = vmatprep.subr.bf16.mxu0 0
        %3232 = vmatpush1.bf16.msra.mxu0 0
        %3233 = vmatprep.subr.bf16.mxu0 0
        %3234 = vmatpush1.bf16.msra.mxu0 0
        %3235 = vmatprep.subr.bf16.mxu0 0
        %3236 = vmatpush1.bf16.msra.mxu0 0
        %3237 = vmatprep.subr.bf16.mxu0 0
        %3238 = vmatpush1.bf16.msra.mxu0 0
        %3239 = vmatprep.subr.bf16.mxu0 0
        %3240 = vmatpush1.bf16.msra.mxu0 0
        %3241 = vmatprep.subr.bf16.mxu0 0
        %3242 = vmatpush1.bf16.msra.mxu0 0
        %3243 = vmatprep.subr.bf16.mxu0 0
        %3244 = vmatpush1.bf16.msra.mxu0 0
        %3245 = vmatprep.subr.bf16.mxu0 0
        %3246 = vmatpush1.bf16.msra.mxu0 0
        %3247 = vmatprep.subr.bf16.mxu0 0
        %3248 = vmatpush1.bf16.msra.mxu0 0
        %3249 = vmatprep.subr.bf16.mxu0 0
        %3250 = vmatpush1.bf16.msra.mxu0 0
        %3251 = vmatprep.subr.bf16.mxu0 0
        %3252 = vmatpush1.bf16.msra.mxu0 0
        %3253 = vmatprep.subr.bf16.mxu0 0
        %3254 = vmatpush1.bf16.msra.mxu0 0
        %3255 = vmatprep.subr.bf16.mxu0 0
        %3256 = vmatpush1.bf16.msra.mxu0 0
        %3257 = vmatprep.subr.bf16.mxu0 0
        %3258 = vmatpush1.bf16.msra.mxu0 0
        %3259 = vmatprep.subr.bf16.mxu0 0
        %3260 = vmatpush1.bf16.msra.mxu0 0
        %3261 = vmatprep.mubr.bf16.mxu0 0
        %3262 = vmatmul.mubr.bf16.gmra.mrb[0].mxu0 %v3215
        %v3263 = vpop.f32.mrb[0].mxu0
        %v3264 = vadd.f32 0.0, %v3263
        %v3265 = vpop.f32.mrb[0].mxu0
        %v3266 = vpop.f32.mrb[0].mxu0
        %v3267 = vadd.f32 0.0, %v3266
        %v3268 = vpop.f32.mrb[0].mxu0
        %3269 = vmatprep.mubr.bf16.mxu0 0
        %3270 = vmatmul.mubr.bf16.gmra.mrb[0].mxu0 %v3218
        %v3271 = vpop.f32.mrb[0].mxu0
        %v3272 = vadd.f32 0.0, %v3271
        %v3273 = vpop.f32.mrb[0].mxu0
        %v3274 = vpop.f32.mrb[0].mxu0
        %v3275 = vadd.f32 0.0, %v3274
        %v3276 = vpop.f32.mrb[0].mxu0
        %3277 = vmatprep.mubr.bf16.mxu0 0
        %3278 = vmatmul.mubr.bf16.gmra.mrb[0].mxu0 %v3221
        %v3279 = vpop.f32.mrb[0].mxu0
        %v3280 = vadd.f32 0.0, %v3279
        %v3281 = vpop.f32.mrb[0].mxu0
        %v3282 = vpop.f32.mrb[0].mxu0
        %v3283 = vadd.f32 0.0, %v3282
        %v3284 = vpop.f32.mrb[0].mxu0
        %3285 = vmatprep.mubr.bf16.mxu0 0
        %3286 = vmatmul.mubr.bf16.gmra.mrb[0].mxu0 %v3224
        %v3287 = vpop.f32.mrb[0].mxu0
        %v3288 = vadd.f32 0.0, %v3287
        %v3289 = vpop.f32.mrb[0].mxu0
        %v3290 = vpop.f32.mrb[0].mxu0
        %v3291 = vadd.f32 0.0, %v3290
        %v3292 = vpop.f32.mrb[0].mxu0
        %3293 = vdwg.mxu0
        %v3294 = vadd.f32 %v3193, %v3264
        %v3295 = vadd.f32 %v3194, %v3267
        %v3296 = vadd.f32 %v3195, %v3272
        %v3297 = vadd.f32 %v3196, %v3275
        %v3298 = vadd.f32 %v3197, %v3280
        %v3299 = vadd.f32 %v3198, %v3283
        %v3300 = vadd.f32 %v3199, %v3288
        %v3301 = vadd.f32 %v3200, %v3291
        %v3302 = vld [vmem:[%s7] sm:$0x1]
        %v3304 = vlaneseq
        %v3305 = vshrl.u32 %v3304, 7
        %v3306 = vsub.s32 0, %v3305
        %v3307 = vrot.slane %v3302, %v3306
        %v3309 = vadd.f32 %v3294, %v3307
        %v3310 = vadd.f32 %v3295, %v3307
        %v3311 = vadd.f32 %v3296, %v3307
        %v3312 = vadd.f32 %v3297, %v3307
        %v3313 = vadd.f32 %v3298, %v3307
        %v3314 = vadd.f32 %v3299, %v3307
        %v3315 = vadd.f32 %v3300, %v3307
        %v3316 = vadd.f32 %v3301, %v3307
        %v3317 = vmax.f32 %v3309, 0.0
        %v3318 = vmax.f32 %v3310, 0.0
        %v3319 = vmax.f32 %v3311, 0.0
        %v3320 = vmax.f32 %v3312, 0.0
        %v3321 = vmax.f32 %v3313, 0.0
        %v3322 = vmax.f32 %v3314, 0.0
        %v3323 = vmax.f32 %v3315, 0.0
        %v3324 = vmax.f32 %v3316, 0.0
        %3325 = vst.msk [vmem:[%s534 + $0x1] sm:$0xff] %vm482, %v3317
        %3326 = vst.msk [vmem:[%s534 + $0x11] sm:$0xff] %vm482, %v3318
        %3327 = vst.msk [vmem:[%s534 + $0x21] sm:$0xff] %vm482, %v3319
        %3328 = vst.msk [vmem:[%s534 + $0x31] sm:$0xff] %vm482, %v3320
        %3329 = vst.msk [vmem:[%s534 + $0x41] sm:$0xff] %vm482, %v3321
        %3330 = vst.msk [vmem:[%s534 + $0x51] sm:$0xff] %vm482, %v3322
        %3331 = vst.msk [vmem:[%s534 + $0x61] sm:$0xff] %vm482, %v3323
        %3332 = vst.msk [vmem:[%s534 + $0x71] sm:$0xff] %vm482, %v3324
        %v3333 = vld [vmem:[#allocation2] sm:$0xff]
        %v3334 = vld [vmem:[#allocation2 + $0x10] sm:$0xff]
        %v3335 = vld [vmem:[#allocation2 + $0x20] sm:$0xff]
        %v3336 = vld [vmem:[#allocation2 + $0x30] sm:$0xff]
        %v3337 = vld [vmem:[#allocation2 + $0x40] sm:$0xff]
        %v3338 = vld [vmem:[#allocation2 + $0x50] sm:$0xff]
        %v3339 = vld [vmem:[#allocation2 + $0x60] sm:$0xff]
        %v3340 = vld [vmem:[#allocation2 + $0x70] sm:$0xff]
        %v3341 = vpack.c.bf16 %v3334, %v3333
        %v3342 = vpack.c.bf16 %v3336, %v3335
        %v3343 = vpack.c.bf16 %v3338, %v3337
        %v3344 = vpack.c.bf16 %v3340, %v3339
        %v3345 = vld [vmem:[%s8] sm:$0xf]
        %v3346 = vld [vmem:[#allocation2 + $0x1] sm:$0xff]
        %v3347 = vld [vmem:[#allocation2 + $0x11] sm:$0xff]
        %v3348 = vld [vmem:[#allocation2 + $0x21] sm:$0xff]
        %v3349 = vld [vmem:[#allocation2 + $0x31] sm:$0xff]
        %v3350 = vld [vmem:[#allocation2 + $0x41] sm:$0xff]
        %v3351 = vld [vmem:[#allocation2 + $0x51] sm:$0xff]
        %v3352 = vld [vmem:[#allocation2 + $0x61] sm:$0xff]
        %v3353 = vld [vmem:[#allocation2 + $0x71] sm:$0xff]
        %v3354 = vpack.c.bf16 %v3347, %v3346
        %v3355 = vpack.c.bf16 %v3349, %v3348
        %v3356 = vpack.c.bf16 %v3351, %v3350
        %v3357 = vpack.c.bf16 %v3353, %v3352
        %v3358 = vld [vmem:[%s8 + $0x4] sm:$0xf]
        %v3360 = vsel %vm482, %v3354, 0
        %v3363 = vsel %vm482, %v3355, 0
        %v3366 = vsel %vm482, %v3356, 0
        %v3369 = vsel %vm482, %v3357, 0
        %v3372 = vsel %vm581, %v3358, 0
        %3374 = vmatprep.subr.bf16.mxu0 0
        %3375 = vmatpush1.bf16.msra.mxu0 %v3372
        %3376 = vmatprep.subr.bf16.mxu0 0
        %3377 = vmatpush1.bf16.msra.mxu0 0
        %3378 = vmatprep.subr.bf16.mxu0 0
        %3379 = vmatpush1.bf16.msra.mxu0 0
        %3380 = vmatprep.subr.bf16.mxu0 0
        %3381 = vmatpush1.bf16.msra.mxu0 0
        %3382 = vmatprep.subr.bf16.mxu0 0
        %3383 = vmatpush1.bf16.msra.mxu0 0
        %3384 = vmatprep.subr.bf16.mxu0 0
        %3385 = vmatpush1.bf16.msra.mxu0 0
        %3386 = vmatprep.subr.bf16.mxu0 0
        %3387 = vmatpush1.bf16.msra.mxu0 0
        %3388 = vmatprep.subr.bf16.mxu0 0
        %3389 = vmatpush1.bf16.msra.mxu0 0
        %3390 = vmatprep.subr.bf16.mxu0 0
        %3391 = vmatpush1.bf16.msra.mxu0 0
        %3392 = vmatprep.subr.bf16.mxu0 0
        %3393 = vmatpush1.bf16.msra.mxu0 0
        %3394 = vmatprep.subr.bf16.mxu0 0
        %3395 = vmatpush1.bf16.msra.mxu0 0
        %3396 = vmatprep.subr.bf16.mxu0 0
        %3397 = vmatpush1.bf16.msra.mxu0 0
        %3398 = vmatprep.subr.bf16.mxu0 0
        %3399 = vmatpush1.bf16.msra.mxu0 0
        %3400 = vmatprep.subr.bf16.mxu0 0
        %3401 = vmatpush1.bf16.msra.mxu0 0
        %3402 = vmatprep.subr.bf16.mxu0 0
        %3403 = vmatpush1.bf16.msra.mxu0 0
        %3404 = vmatprep.subr.bf16.mxu0 0
        %3405 = vmatpush1.bf16.msra.mxu0 0
        %3406 = vmatprep.mubr.bf16.mxu0 0
        %3407 = vmatmul.mubr.bf16.gmra.mrb[0].mxu0 %v3360
        %v3408 = vpop.f32.mrb[0].mxu0
        %v3409 = vadd.f32 0.0, %v3408
        %v3410 = vpop.f32.mrb[0].mxu0
        %v3411 = vpop.f32.mrb[0].mxu0
        %v3412 = vadd.f32 0.0, %v3411
        %v3413 = vpop.f32.mrb[0].mxu0
        %3414 = vmatprep.mubr.bf16.mxu0 0
        %3415 = vmatmul.mubr.bf16.gmra.mrb[0].mxu0 %v3363
        %v3416 = vpop.f32.mrb[0].mxu0
        %v3417 = vadd.f32 0.0, %v3416
        %v3418 = vpop.f32.mrb[0].mxu0
        %v3419 = vpop.f32.mrb[0].mxu0
        %v3420 = vadd.f32 0.0, %v3419
        %v3421 = vpop.f32.mrb[0].mxu0
        %3422 = vmatprep.mubr.bf16.mxu0 0
        %3423 = vmatmul.mubr.bf16.gmra.mrb[0].mxu0 %v3366
        %v3424 = vpop.f32.mrb[0].mxu0
        %v3425 = vadd.f32 0.0, %v3424
        %v3426 = vpop.f32.mrb[0].mxu0
        %v3427 = vpop.f32.mrb[0].mxu0
        %v3428 = vadd.f32 0.0, %v3427
        %v3429 = vpop.f32.mrb[0].mxu0
        %3430 = vmatprep.mubr.bf16.mxu0 0
        %3431 = vmatmul.mubr.bf16.gmra.mrb[0].mxu0 %v3369
        %v3432 = vpop.f32.mrb[0].mxu0
        %v3433 = vadd.f32 0.0, %v3432
        %v3434 = vpop.f32.mrb[0].mxu0
        %v3435 = vpop.f32.mrb[0].mxu0
        %v3436 = vadd.f32 0.0, %v3435
        %v3437 = vpop.f32.mrb[0].mxu0
        %3438 = vdwg.mxu0
        %v3440 = vsel %vm482, %v3341, 0
        %v3443 = vsel %vm482, %v3342, 0
        %v3446 = vsel %vm482, %v3343, 0
        %v3449 = vsel %vm482, %v3344, 0
        %v3452 = vsel %vm581, %v3345, 0
        %3454 = vmatprep.subr.bf16.mxu0 0
        %3455 = vmatpush1.bf16.msra.mxu0 %v3452
        %3456 = vmatprep.subr.bf16.mxu0 0
        %3457 = vmatpush1.bf16.msra.mxu0 0
        %3458 = vmatprep.subr.bf16.mxu0 0
        %3459 = vmatpush1.bf16.msra.mxu0 0
        %3460 = vmatprep.subr.bf16.mxu0 0
        %3461 = vmatpush1.bf16.msra.mxu0 0
        %3462 = vmatprep.subr.bf16.mxu0 0
        %3463 = vmatpush1.bf16.msra.mxu0 0
        %3464 = vmatprep.subr.bf16.mxu0 0
        %3465 = vmatpush1.bf16.msra.mxu0 0
        %3466 = vmatprep.subr.bf16.mxu0 0
        %3467 = vmatpush1.bf16.msra.mxu0 0
        %3468 = vmatprep.subr.bf16.mxu0 0
        %3469 = vmatpush1.bf16.msra.mxu0 0
        %3470 = vmatprep.subr.bf16.mxu0 0
        %3471 = vmatpush1.bf16.msra.mxu0 0
        %3472 = vmatprep.subr.bf16.mxu0 0
        %3473 = vmatpush1.bf16.msra.mxu0 0
        %3474 = vmatprep.subr.bf16.mxu0 0
        %3475 = vmatpush1.bf16.msra.mxu0 0
        %3476 = vmatprep.subr.bf16.mxu0 0
        %3477 = vmatpush1.bf16.msra.mxu0 0
        %3478 = vmatprep.subr.bf16.mxu0 0
        %3479 = vmatpush1.bf16.msra.mxu0 0
        %3480 = vmatprep.subr.bf16.mxu0 0
        %3481 = vmatpush1.bf16.msra.mxu0 0
        %3482 = vmatprep.subr.bf16.mxu0 0
        %3483 = vmatpush1.bf16.msra.mxu0 0
        %3484 = vmatprep.subr.bf16.mxu0 0
        %3485 = vmatpush1.bf16.msra.mxu0 0
        %3486 = vmatprep.mubr.bf16.mxu0 0
        %3487 = vmatmul.mubr.bf16.gmra.mrb[0].mxu0 %v3440
        %v3488 = vpop.f32.mrb[0].mxu0
        %v3489 = vadd.f32 %v3409, %v3488
        %v3490 = vpop.f32.mrb[0].mxu0
        %v3491 = vpop.f32.mrb[0].mxu0
        %v3492 = vadd.f32 %v3412, %v3491
        %v3493 = vpop.f32.mrb[0].mxu0
        %3494 = vmatprep.mubr.bf16.mxu0 0
        %3495 = vmatmul.mubr.bf16.gmra.mrb[0].mxu0 %v3443
        %v3496 = vpop.f32.mrb[0].mxu0
        %v3497 = vadd.f32 %v3417, %v3496
        %v3498 = vpop.f32.mrb[0].mxu0
        %v3499 = vpop.f32.mrb[0].mxu0
        %v3500 = vadd.f32 %v3420, %v3499
        %v3501 = vpop.f32.mrb[0].mxu0
        %3502 = vmatprep.mubr.bf16.mxu0 0
        %3503 = vmatmul.mubr.bf16.gmra.mrb[0].mxu0 %v3446
        %v3504 = vpop.f32.mrb[0].mxu0
        %v3505 = vadd.f32 %v3425, %v3504
        %v3506 = vpop.f32.mrb[0].mxu0
        %v3507 = vpop.f32.mrb[0].mxu0
        %v3508 = vadd.f32 %v3428, %v3507
        %v3509 = vpop.f32.mrb[0].mxu0
        %3510 = vmatprep.mubr.bf16.mxu0 0
        %3511 = vmatmul.mubr.bf16.gmra.mrb[0].mxu0 %v3449
        %v3512 = vpop.f32.mrb[0].mxu0
        %v3513 = vadd.f32 %v3433, %v3512
        %v3514 = vpop.f32.mrb[0].mxu0
        %v3515 = vpop.f32.mrb[0].mxu0
        %v3516 = vadd.f32 %v3436, %v3515
        %v3517 = vpop.f32.mrb[0].mxu0
        %3518 = vdwg.mxu0
        %v3519 = vld [vmem:[#allocation2 + $0x2] sm:$0xff]
        %v3520 = vld [vmem:[#allocation2 + $0x12] sm:$0xff]
        %v3521 = vld [vmem:[#allocation2 + $0x22] sm:$0xff]
        %v3522 = vld [vmem:[#allocation2 + $0x32] sm:$0xff]
        %v3523 = vld [vmem:[#allocation2 + $0x42] sm:$0xff]
        %v3524 = vld [vmem:[#allocation2 + $0x52] sm:$0xff]
        %v3525 = vld [vmem:[#allocation2 + $0x62] sm:$0xff]
        %v3526 = vld [vmem:[#allocation2 + $0x72] sm:$0xff]
        %v3527 = vpack.c.bf16 %v3520, %v3519
        %v3528 = vpack.c.bf16 %v3522, %v3521
        %v3529 = vpack.c.bf16 %v3524, %v3523
        %v3530 = vpack.c.bf16 %v3526, %v3525
        %v3531 = vld [vmem:[%s8 + $0x8] sm:$0xf]
        %v3533 = vsel %vm482, %v3527, 0
        %v3536 = vsel %vm482, %v3528, 0
        %v3539 = vsel %vm482, %v3529, 0
        %v3542 = vsel %vm482, %v3530, 0
        %v3545 = vsel %vm581, %v3531, 0
        %3547 = vmatprep.subr.bf16.mxu0 0
        %3548 = vmatpush1.bf16.msra.mxu0 %v3545
        %3549 = vmatprep.subr.bf16.mxu0 0
        %3550 = vmatpush1.bf16.msra.mxu0 0
        %3551 = vmatprep.subr.bf16.mxu0 0
        %3552 = vmatpush1.bf16.msra.mxu0 0
        %3553 = vmatprep.subr.bf16.mxu0 0
        %3554 = vmatpush1.bf16.msra.mxu0 0
        %3555 = vmatprep.subr.bf16.mxu0 0
        %3556 = vmatpush1.bf16.msra.mxu0 0
        %3557 = vmatprep.subr.bf16.mxu0 0
        %3558 = vmatpush1.bf16.msra.mxu0 0
        %3559 = vmatprep.subr.bf16.mxu0 0
        %3560 = vmatpush1.bf16.msra.mxu0 0
        %3561 = vmatprep.subr.bf16.mxu0 0
        %3562 = vmatpush1.bf16.msra.mxu0 0
        %3563 = vmatprep.subr.bf16.mxu0 0
        %3564 = vmatpush1.bf16.msra.mxu0 0
        %3565 = vmatprep.subr.bf16.mxu0 0
        %3566 = vmatpush1.bf16.msra.mxu0 0
        %3567 = vmatprep.subr.bf16.mxu0 0
        %3568 = vmatpush1.bf16.msra.mxu0 0
        %3569 = vmatprep.subr.bf16.mxu0 0
        %3570 = vmatpush1.bf16.msra.mxu0 0
        %3571 = vmatprep.subr.bf16.mxu0 0
        %3572 = vmatpush1.bf16.msra.mxu0 0
        %3573 = vmatprep.subr.bf16.mxu0 0
        %3574 = vmatpush1.bf16.msra.mxu0 0
        %3575 = vmatprep.subr.bf16.mxu0 0
        %3576 = vmatpush1.bf16.msra.mxu0 0
        %3577 = vmatprep.subr.bf16.mxu0 0
        %3578 = vmatpush1.bf16.msra.mxu0 0
        %3579 = vmatprep.mubr.bf16.mxu0 0
        %3580 = vmatmul.mubr.bf16.gmra.mrb[0].mxu0 %v3533
        %v3581 = vpop.f32.mrb[0].mxu0
        %v3582 = vadd.f32 0.0, %v3581
        %v3583 = vpop.f32.mrb[0].mxu0
        %v3584 = vpop.f32.mrb[0].mxu0
        %v3585 = vadd.f32 0.0, %v3584
        %v3586 = vpop.f32.mrb[0].mxu0
        %3587 = vmatprep.mubr.bf16.mxu0 0
        %3588 = vmatmul.mubr.bf16.gmra.mrb[0].mxu0 %v3536
        %v3589 = vpop.f32.mrb[0].mxu0
        %v3590 = vadd.f32 0.0, %v3589
        %v3591 = vpop.f32.mrb[0].mxu0
        %v3592 = vpop.f32.mrb[0].mxu0
        %v3593 = vadd.f32 0.0, %v3592
        %v3594 = vpop.f32.mrb[0].mxu0
        %3595 = vmatprep.mubr.bf16.mxu0 0
        %3596 = vmatmul.mubr.bf16.gmra.mrb[0].mxu0 %v3539
        %v3597 = vpop.f32.mrb[0].mxu0
        %v3598 = vadd.f32 0.0, %v3597
        %v3599 = vpop.f32.mrb[0].mxu0
        %v3600 = vpop.f32.mrb[0].mxu0
        %v3601 = vadd.f32 0.0, %v3600
        %v3602 = vpop.f32.mrb[0].mxu0
        %3603 = vmatprep.mubr.bf16.mxu0 0
        %3604 = vmatmul.mubr.bf16.gmra.mrb[0].mxu0 %v3542
        %v3605 = vpop.f32.mrb[0].mxu0
        %v3606 = vadd.f32 0.0, %v3605
        %v3607 = vpop.f32.mrb[0].mxu0
        %v3608 = vpop.f32.mrb[0].mxu0
        %v3609 = vadd.f32 0.0, %v3608
        %v3610 = vpop.f32.mrb[0].mxu0
        %3611 = vdwg.mxu0
        %v3612 = vadd.f32 %v3489, %v3582
        %v3613 = vadd.f32 %v3492, %v3585
        %v3614 = vadd.f32 %v3497, %v3590
        %v3615 = vadd.f32 %v3500, %v3593
        %v3616 = vadd.f32 %v3505, %v3598
        %v3617 = vadd.f32 %v3508, %v3601
        %v3618 = vadd.f32 %v3513, %v3606
        %v3619 = vadd.f32 %v3516, %v3609
        %v3620 = vld [vmem:[%s534] sm:$0xff]
        %v3621 = vld [vmem:[%s534 + $0x10] sm:$0xff]
        %v3622 = vld [vmem:[%s534 + $0x20] sm:$0xff]
        %v3623 = vld [vmem:[%s534 + $0x30] sm:$0xff]
        %v3624 = vld [vmem:[%s534 + $0x40] sm:$0xff]
        %v3625 = vld [vmem:[%s534 + $0x50] sm:$0xff]
        %v3626 = vld [vmem:[%s534 + $0x60] sm:$0xff]
        %v3627 = vld [vmem:[%s534 + $0x70] sm:$0xff]
        %v3628 = vpack.c.bf16 %v3621, %v3620
        %v3629 = vpack.c.bf16 %v3623, %v3622
        %v3630 = vpack.c.bf16 %v3625, %v3624
        %v3631 = vpack.c.bf16 %v3627, %v3626
        %v3632 = vld [vmem:[%s8 + $0xc] sm:$0xf]
        %v3634 = vsel %vm482, %v3628, 0
        %v3637 = vsel %vm482, %v3629, 0
        %v3640 = vsel %vm482, %v3630, 0
        %v3643 = vsel %vm482, %v3631, 0
        %v3646 = vsel %vm581, %v3632, 0
        %3648 = vmatprep.subr.bf16.mxu0 0
        %3649 = vmatpush1.bf16.msra.mxu0 %v3646
        %3650 = vmatprep.subr.bf16.mxu0 0
        %3651 = vmatpush1.bf16.msra.mxu0 0
        %3652 = vmatprep.subr.bf16.mxu0 0
        %3653 = vmatpush1.bf16.msra.mxu0 0
        %3654 = vmatprep.subr.bf16.mxu0 0
        %3655 = vmatpush1.bf16.msra.mxu0 0
        %3656 = vmatprep.subr.bf16.mxu0 0
        %3657 = vmatpush1.bf16.msra.mxu0 0
        %3658 = vmatprep.subr.bf16.mxu0 0
        %3659 = vmatpush1.bf16.msra.mxu0 0
        %3660 = vmatprep.subr.bf16.mxu0 0
        %3661 = vmatpush1.bf16.msra.mxu0 0
        %3662 = vmatprep.subr.bf16.mxu0 0
        %3663 = vmatpush1.bf16.msra.mxu0 0
        %3664 = vmatprep.subr.bf16.mxu0 0
        %3665 = vmatpush1.bf16.msra.mxu0 0
        %3666 = vmatprep.subr.bf16.mxu0 0
        %3667 = vmatpush1.bf16.msra.mxu0 0
        %3668 = vmatprep.subr.bf16.mxu0 0
        %3669 = vmatpush1.bf16.msra.mxu0 0
        %3670 = vmatprep.subr.bf16.mxu0 0
        %3671 = vmatpush1.bf16.msra.mxu0 0
        %3672 = vmatprep.subr.bf16.mxu0 0
        %3673 = vmatpush1.bf16.msra.mxu0 0
        %3674 = vmatprep.subr.bf16.mxu0 0
        %3675 = vmatpush1.bf16.msra.mxu0 0
        %3676 = vmatprep.subr.bf16.mxu0 0
        %3677 = vmatpush1.bf16.msra.mxu0 0
        %3678 = vmatprep.subr.bf16.mxu0 0
        %3679 = vmatpush1.bf16.msra.mxu0 0
        %3680 = vmatprep.mubr.bf16.mxu0 0
        %3681 = vmatmul.mubr.bf16.gmra.mrb[0].mxu0 %v3634
        %v3682 = vpop.f32.mrb[0].mxu0
        %v3683 = vadd.f32 0.0, %v3682
        %v3684 = vpop.f32.mrb[0].mxu0
        %v3685 = vpop.f32.mrb[0].mxu0
        %v3686 = vadd.f32 0.0, %v3685
        %v3687 = vpop.f32.mrb[0].mxu0
        %3688 = vmatprep.mubr.bf16.mxu0 0
        %3689 = vmatmul.mubr.bf16.gmra.mrb[0].mxu0 %v3637
        %v3690 = vpop.f32.mrb[0].mxu0
        %v3691 = vadd.f32 0.0, %v3690
        %v3692 = vpop.f32.mrb[0].mxu0
        %v3693 = vpop.f32.mrb[0].mxu0
        %v3694 = vadd.f32 0.0, %v3693
        %v3695 = vpop.f32.mrb[0].mxu0
        %3696 = vmatprep.mubr.bf16.mxu0 0
        %3697 = vmatmul.mubr.bf16.gmra.mrb[0].mxu0 %v3640
        %v3698 = vpop.f32.mrb[0].mxu0
        %v3699 = vadd.f32 0.0, %v3698
        %v3700 = vpop.f32.mrb[0].mxu0
        %v3701 = vpop.f32.mrb[0].mxu0
        %v3702 = vadd.f32 0.0, %v3701
        %v3703 = vpop.f32.mrb[0].mxu0
        %3704 = vmatprep.mubr.bf16.mxu0 0
        %3705 = vmatmul.mubr.bf16.gmra.mrb[0].mxu0 %v3643
        %v3706 = vpop.f32.mrb[0].mxu0
        %v3707 = vadd.f32 0.0, %v3706
        %v3708 = vpop.f32.mrb[0].mxu0
        %v3709 = vpop.f32.mrb[0].mxu0
        %v3710 = vadd.f32 0.0, %v3709
        %v3711 = vpop.f32.mrb[0].mxu0
        %3712 = vdwg.mxu0
        %v3713 = vadd.f32 %v3612, %v3683
        %v3714 = vadd.f32 %v3613, %v3686
        %v3715 = vadd.f32 %v3614, %v3691
        %v3716 = vadd.f32 %v3615, %v3694
        %v3717 = vadd.f32 %v3616, %v3699
        %v3718 = vadd.f32 %v3617, %v3702
        %v3719 = vadd.f32 %v3618, %v3707
        %v3720 = vadd.f32 %v3619, %v3710
        %v3721 = vld [vmem:[%s534 + $0x1] sm:$0xff]
        %v3722 = vld [vmem:[%s534 + $0x11] sm:$0xff]
        %v3723 = vld [vmem:[%s534 + $0x21] sm:$0xff]
        %v3724 = vld [vmem:[%s534 + $0x31] sm:$0xff]
        %v3725 = vld [vmem:[%s534 + $0x41] sm:$0xff]
        %v3726 = vld [vmem:[%s534 + $0x51] sm:$0xff]
        %v3727 = vld [vmem:[%s534 + $0x61] sm:$0xff]
        %v3728 = vld [vmem:[%s534 + $0x71] sm:$0xff]
        %v3729 = vpack.c.bf16 %v3722, %v3721
        %v3730 = vpack.c.bf16 %v3724, %v3723
        %v3731 = vpack.c.bf16 %v3726, %v3725
        %v3732 = vpack.c.bf16 %v3728, %v3727
        %v3733 = vld [vmem:[%s8 + $0x10] sm:$0xf]
        %v3735 = vsel %vm482, %v3729, 0
        %v3738 = vsel %vm482, %v3730, 0
        %v3741 = vsel %vm482, %v3731, 0
        %v3744 = vsel %vm482, %v3732, 0
        %v3747 = vsel %vm581, %v3733, 0
        %3749 = vmatprep.subr.bf16.mxu0 0
        %3750 = vmatpush1.bf16.msra.mxu0 %v3747
        %3751 = vmatprep.subr.bf16.mxu0 0
        %3752 = vmatpush1.bf16.msra.mxu0 0
        %3753 = vmatprep.subr.bf16.mxu0 0
        %3754 = vmatpush1.bf16.msra.mxu0 0
        %3755 = vmatprep.subr.bf16.mxu0 0
        %3756 = vmatpush1.bf16.msra.mxu0 0
        %3757 = vmatprep.subr.bf16.mxu0 0
        %3758 = vmatpush1.bf16.msra.mxu0 0
        %3759 = vmatprep.subr.bf16.mxu0 0
        %3760 = vmatpush1.bf16.msra.mxu0 0
        %3761 = vmatprep.subr.bf16.mxu0 0
        %3762 = vmatpush1.bf16.msra.mxu0 0
        %3763 = vmatprep.subr.bf16.mxu0 0
        %3764 = vmatpush1.bf16.msra.mxu0 0
        %3765 = vmatprep.subr.bf16.mxu0 0
        %3766 = vmatpush1.bf16.msra.mxu0 0
        %3767 = vmatprep.subr.bf16.mxu0 0
        %3768 = vmatpush1.bf16.msra.mxu0 0
        %3769 = vmatprep.subr.bf16.mxu0 0
        %3770 = vmatpush1.bf16.msra.mxu0 0
        %3771 = vmatprep.subr.bf16.mxu0 0
        %3772 = vmatpush1.bf16.msra.mxu0 0
        %3773 = vmatprep.subr.bf16.mxu0 0
        %3774 = vmatpush1.bf16.msra.mxu0 0
        %3775 = vmatprep.subr.bf16.mxu0 0
        %3776 = vmatpush1.bf16.msra.mxu0 0
        %3777 = vmatprep.subr.bf16.mxu0 0
        %3778 = vmatpush1.bf16.msra.mxu0 0
        %3779 = vmatprep.subr.bf16.mxu0 0
        %3780 = vmatpush1.bf16.msra.mxu0 0
        %3781 = vmatprep.mubr.bf16.mxu0 0
        %3782 = vmatmul.mubr.bf16.gmra.mrb[0].mxu0 %v3735
        %v3783 = vpop.f32.mrb[0].mxu0
        %v3784 = vadd.f32 0.0, %v3783
        %v3785 = vpop.f32.mrb[0].mxu0
        %v3786 = vpop.f32.mrb[0].mxu0
        %v3787 = vadd.f32 0.0, %v3786
        %v3788 = vpop.f32.mrb[0].mxu0
        %3789 = vmatprep.mubr.bf16.mxu0 0
        %3790 = vmatmul.mubr.bf16.gmra.mrb[0].mxu0 %v3738
        %v3791 = vpop.f32.mrb[0].mxu0
        %v3792 = vadd.f32 0.0, %v3791
        %v3793 = vpop.f32.mrb[0].mxu0
        %v3794 = vpop.f32.mrb[0].mxu0
        %v3795 = vadd.f32 0.0, %v3794
        %v3796 = vpop.f32.mrb[0].mxu0
        %3797 = vmatprep.mubr.bf16.mxu0 0
        %3798 = vmatmul.mubr.bf16.gmra.mrb[0].mxu0 %v3741
        %v3799 = vpop.f32.mrb[0].mxu0
        %v3800 = vadd.f32 0.0, %v3799
        %v3801 = vpop.f32.mrb[0].mxu0
        %v3802 = vpop.f32.mrb[0].mxu0
        %v3803 = vadd.f32 0.0, %v3802
        %v3804 = vpop.f32.mrb[0].mxu0
        %3805 = vmatprep.mubr.bf16.mxu0 0
        %3806 = vmatmul.mubr.bf16.gmra.mrb[0].mxu0 %v3744
        %v3807 = vpop.f32.mrb[0].mxu0
        %v3808 = vadd.f32 0.0, %v3807
        %v3809 = vpop.f32.mrb[0].mxu0
        %v3810 = vpop.f32.mrb[0].mxu0
        %v3811 = vadd.f32 0.0, %v3810
        %v3812 = vpop.f32.mrb[0].mxu0
        %3813 = vdwg.mxu0
        %v3814 = vadd.f32 %v3713, %v3784
        %v3815 = vadd.f32 %v3714, %v3787
        %v3816 = vadd.f32 %v3715, %v3792
        %v3817 = vadd.f32 %v3716, %v3795
        %v3818 = vadd.f32 %v3717, %v3800
        %v3819 = vadd.f32 %v3718, %v3803
        %v3820 = vadd.f32 %v3719, %v3808
        %v3821 = vadd.f32 %v3720, %v3811
        %v3822 = vld [vmem:[%s534 + $0x2] sm:$0xff]
        %v3823 = vld [vmem:[%s534 + $0x12] sm:$0xff]
        %v3824 = vld [vmem:[%s534 + $0x22] sm:$0xff]
        %v3825 = vld [vmem:[%s534 + $0x32] sm:$0xff]
        %v3826 = vld [vmem:[%s534 + $0x42] sm:$0xff]
        %v3827 = vld [vmem:[%s534 + $0x52] sm:$0xff]
        %v3828 = vld [vmem:[%s534 + $0x62] sm:$0xff]
        %v3829 = vld [vmem:[%s534 + $0x72] sm:$0xff]
        %v3830 = vpack.c.bf16 %v3823, %v3822
        %v3831 = vpack.c.bf16 %v3825, %v3824
        %v3832 = vpack.c.bf16 %v3827, %v3826
        %v3833 = vpack.c.bf16 %v3829, %v3828
        %v3834 = vld [vmem:[%s8 + $0x14] sm:$0xf]
        %v3836 = vsel %vm482, %v3830, 0
        %v3839 = vsel %vm482, %v3831, 0
        %v3842 = vsel %vm482, %v3832, 0
        %v3845 = vsel %vm482, %v3833, 0
        %v3848 = vsel %vm581, %v3834, 0
        %3850 = vmatprep.subr.bf16.mxu0 0
        %3851 = vmatpush1.bf16.msra.mxu0 %v3848
        %3852 = vmatprep.subr.bf16.mxu0 0
        %3853 = vmatpush1.bf16.msra.mxu0 0
        %3854 = vmatprep.subr.bf16.mxu0 0
        %3855 = vmatpush1.bf16.msra.mxu0 0
        %3856 = vmatprep.subr.bf16.mxu0 0
        %3857 = vmatpush1.bf16.msra.mxu0 0
        %3858 = vmatprep.subr.bf16.mxu0 0
        %3859 = vmatpush1.bf16.msra.mxu0 0
        %3860 = vmatprep.subr.bf16.mxu0 0
        %3861 = vmatpush1.bf16.msra.mxu0 0
        %3862 = vmatprep.subr.bf16.mxu0 0
        %3863 = vmatpush1.bf16.msra.mxu0 0
        %3864 = vmatprep.subr.bf16.mxu0 0
        %3865 = vmatpush1.bf16.msra.mxu0 0
        %3866 = vmatprep.subr.bf16.mxu0 0
        %3867 = vmatpush1.bf16.msra.mxu0 0
        %3868 = vmatprep.subr.bf16.mxu0 0
        %3869 = vmatpush1.bf16.msra.mxu0 0
        %3870 = vmatprep.subr.bf16.mxu0 0
        %3871 = vmatpush1.bf16.msra.mxu0 0
        %3872 = vmatprep.subr.bf16.mxu0 0
        %3873 = vmatpush1.bf16.msra.mxu0 0
        %3874 = vmatprep.subr.bf16.mxu0 0
        %3875 = vmatpush1.bf16.msra.mxu0 0
        %3876 = vmatprep.subr.bf16.mxu0 0
        %3877 = vmatpush1.bf16.msra.mxu0 0
        %3878 = vmatprep.subr.bf16.mxu0 0
        %3879 = vmatpush1.bf16.msra.mxu0 0
        %3880 = vmatprep.subr.bf16.mxu0 0
        %3881 = vmatpush1.bf16.msra.mxu0 0
        %3882 = vmatprep.mubr.bf16.mxu0 0
        %3883 = vmatmul.mubr.bf16.gmra.mrb[0].mxu0 %v3836
        %v3884 = vpop.f32.mrb[0].mxu0
        %v3885 = vadd.f32 0.0, %v3884
        %v3886 = vpop.f32.mrb[0].mxu0
        %v3887 = vpop.f32.mrb[0].mxu0
        %v3888 = vadd.f32 0.0, %v3887
        %v3889 = vpop.f32.mrb[0].mxu0
        %3890 = vmatprep.mubr.bf16.mxu0 0
        %3891 = vmatmul.mubr.bf16.gmra.mrb[0].mxu0 %v3839
        %v3892 = vpop.f32.mrb[0].mxu0
        %v3893 = vadd.f32 0.0, %v3892
        %v3894 = vpop.f32.mrb[0].mxu0
        %v3895 = vpop.f32.mrb[0].mxu0
        %v3896 = vadd.f32 0.0, %v3895
        %v3897 = vpop.f32.mrb[0].mxu0
        %3898 = vmatprep.mubr.bf16.mxu0 0
        %3899 = vmatmul.mubr.bf16.gmra.mrb[0].mxu0 %v3842
        %v3900 = vpop.f32.mrb[0].mxu0
        %v3901 = vadd.f32 0.0, %v3900
        %v3902 = vpop.f32.mrb[0].mxu0
        %v3903 = vpop.f32.mrb[0].mxu0
        %v3904 = vadd.f32 0.0, %v3903
        %v3905 = vpop.f32.mrb[0].mxu0
        %3906 = vmatprep.mubr.bf16.mxu0 0
        %3907 = vmatmul.mubr.bf16.gmra.mrb[0].mxu0 %v3845
        %v3908 = vpop.f32.mrb[0].mxu0
        %v3909 = vadd.f32 0.0, %v3908
        %v3910 = vpop.f32.mrb[0].mxu0
        %v3911 = vpop.f32.mrb[0].mxu0
        %v3912 = vadd.f32 0.0, %v3911
        %v3913 = vpop.f32.mrb[0].mxu0
        %3914 = vdwg.mxu0
        %v3915 = vadd.f32 %v3814, %v3885
        %v3916 = vadd.f32 %v3815, %v3888
        %v3917 = vadd.f32 %v3816, %v3893
        %v3918 = vadd.f32 %v3817, %v3896
        %v3919 = vadd.f32 %v3818, %v3901
        %v3920 = vadd.f32 %v3819, %v3904
        %v3921 = vadd.f32 %v3820, %v3909
        %v3922 = vadd.f32 %v3821, %v3912
        %v3923 = vld [vmem:[%s1134] sm:$0xff]
        %v3924 = vld [vmem:[%s1134 + $0x10] sm:$0xff]
        %v3925 = vld [vmem:[%s1134 + $0x20] sm:$0xff]
        %v3926 = vld [vmem:[%s1134 + $0x30] sm:$0xff]
        %v3927 = vld [vmem:[%s1134 + $0x40] sm:$0xff]
        %v3928 = vld [vmem:[%s1134 + $0x50] sm:$0xff]
        %v3929 = vld [vmem:[%s1134 + $0x60] sm:$0xff]
        %v3930 = vld [vmem:[%s1134 + $0x70] sm:$0xff]
        %v3931 = vpack.c.bf16 %v3924, %v3923
        %v3932 = vpack.c.bf16 %v3926, %v3925
        %v3933 = vpack.c.bf16 %v3928, %v3927
        %v3934 = vpack.c.bf16 %v3930, %v3929
        %v3935 = vld [vmem:[%s8 + $0x18] sm:$0xf]
        %v3937 = vsel %vm482, %v3931, 0
        %v3940 = vsel %vm482, %v3932, 0
        %v3943 = vsel %vm482, %v3933, 0
        %v3946 = vsel %vm482, %v3934, 0
        %v3949 = vsel %vm581, %v3935, 0
        %3951 = vmatprep.subr.bf16.mxu0 0
        %3952 = vmatpush1.bf16.msra.mxu0 %v3949
        %3953 = vmatprep.subr.bf16.mxu0 0
        %3954 = vmatpush1.bf16.msra.mxu0 0
        %3955 = vmatprep.subr.bf16.mxu0 0
        %3956 = vmatpush1.bf16.msra.mxu0 0
        %3957 = vmatprep.subr.bf16.mxu0 0
        %3958 = vmatpush1.bf16.msra.mxu0 0
        %3959 = vmatprep.subr.bf16.mxu0 0
        %3960 = vmatpush1.bf16.msra.mxu0 0
        %3961 = vmatprep.subr.bf16.mxu0 0
        %3962 = vmatpush1.bf16.msra.mxu0 0
        %3963 = vmatprep.subr.bf16.mxu0 0
        %3964 = vmatpush1.bf16.msra.mxu0 0
        %3965 = vmatprep.subr.bf16.mxu0 0
        %3966 = vmatpush1.bf16.msra.mxu0 0
        %3967 = vmatprep.subr.bf16.mxu0 0
        %3968 = vmatpush1.bf16.msra.mxu0 0
        %3969 = vmatprep.subr.bf16.mxu0 0
        %3970 = vmatpush1.bf16.msra.mxu0 0
        %3971 = vmatprep.subr.bf16.mxu0 0
        %3972 = vmatpush1.bf16.msra.mxu0 0
        %3973 = vmatprep.subr.bf16.mxu0 0
        %3974 = vmatpush1.bf16.msra.mxu0 0
        %3975 = vmatprep.subr.bf16.mxu0 0
        %3976 = vmatpush1.bf16.msra.mxu0 0
        %3977 = vmatprep.subr.bf16.mxu0 0
        %3978 = vmatpush1.bf16.msra.mxu0 0
        %3979 = vmatprep.subr.bf16.mxu0 0
        %3980 = vmatpush1.bf16.msra.mxu0 0
        %3981 = vmatprep.subr.bf16.mxu0 0
        %3982 = vmatpush1.bf16.msra.mxu0 0
        %3983 = vmatprep.mubr.bf16.mxu0 0
        %3984 = vmatmul.mubr.bf16.gmra.mrb[0].mxu0 %v3937
        %v3985 = vpop.f32.mrb[0].mxu0
        %v3986 = vadd.f32 0.0, %v3985
        %v3987 = vpop.f32.mrb[0].mxu0
        %v3988 = vpop.f32.mrb[0].mxu0
        %v3989 = vadd.f32 0.0, %v3988
        %v3990 = vpop.f32.mrb[0].mxu0
        %3991 = vmatprep.mubr.bf16.mxu0 0
        %3992 = vmatmul.mubr.bf16.gmra.mrb[0].mxu0 %v3940
        %v3993 = vpop.f32.mrb[0].mxu0
        %v3994 = vadd.f32 0.0, %v3993
        %v3995 = vpop.f32.mrb[0].mxu0
        %v3996 = vpop.f32.mrb[0].mxu0
        %v3997 = vadd.f32 0.0, %v3996
        %v3998 = vpop.f32.mrb[0].mxu0
        %3999 = vmatprep.mubr.bf16.mxu0 0
        %4000 = vmatmul.mubr.bf16.gmra.mrb[0].mxu0 %v3943
        %v4001 = vpop.f32.mrb[0].mxu0
        %v4002 = vadd.f32 0.0, %v4001
        %v4003 = vpop.f32.mrb[0].mxu0
        %v4004 = vpop.f32.mrb[0].mxu0
        %v4005 = vadd.f32 0.0, %v4004
        %v4006 = vpop.f32.mrb[0].mxu0
        %4007 = vmatprep.mubr.bf16.mxu0 0
        %4008 = vmatmul.mubr.bf16.gmra.mrb[0].mxu0 %v3946
        %v4009 = vpop.f32.mrb[0].mxu0
        %v4010 = vadd.f32 0.0, %v4009
        %v4011 = vpop.f32.mrb[0].mxu0
        %v4012 = vpop.f32.mrb[0].mxu0
        %v4013 = vadd.f32 0.0, %v4012
        %v4014 = vpop.f32.mrb[0].mxu0
        %4015 = vdwg.mxu0
        %v4016 = vadd.f32 %v3915, %v3986
        %v4017 = vadd.f32 %v3916, %v3989
        %v4018 = vadd.f32 %v3917, %v3994
        %v4019 = vadd.f32 %v3918, %v3997
        %v4020 = vadd.f32 %v3919, %v4002
        %v4021 = vadd.f32 %v3920, %v4005
        %v4022 = vadd.f32 %v3921, %v4010
        %v4023 = vadd.f32 %v3922, %v4013
        %v4024 = vld [vmem:[%s1134 + $0x1] sm:$0xff]
        %v4025 = vld [vmem:[%s1134 + $0x11] sm:$0xff]
        %v4026 = vld [vmem:[%s1134 + $0x21] sm:$0xff]
        %v4027 = vld [vmem:[%s1134 + $0x31] sm:$0xff]
        %v4028 = vld [vmem:[%s1134 + $0x41] sm:$0xff]
        %v4029 = vld [vmem:[%s1134 + $0x51] sm:$0xff]
        %v4030 = vld [vmem:[%s1134 + $0x61] sm:$0xff]
        %v4031 = vld [vmem:[%s1134 + $0x71] sm:$0xff]
        %v4032 = vpack.c.bf16 %v4025, %v4024
        %v4033 = vpack.c.bf16 %v4027, %v4026
        %v4034 = vpack.c.bf16 %v4029, %v4028
        %v4035 = vpack.c.bf16 %v4031, %v4030
        %v4036 = vld [vmem:[%s8 + $0x1c] sm:$0xf]
        %v4038 = vsel %vm482, %v4032, 0
        %v4041 = vsel %vm482, %v4033, 0
        %v4044 = vsel %vm482, %v4034, 0
        %v4047 = vsel %vm482, %v4035, 0
        %v4050 = vsel %vm581, %v4036, 0
        %4052 = vmatprep.subr.bf16.mxu0 0
        %4053 = vmatpush1.bf16.msra.mxu0 %v4050
        %4054 = vmatprep.subr.bf16.mxu0 0
        %4055 = vmatpush1.bf16.msra.mxu0 0
        %4056 = vmatprep.subr.bf16.mxu0 0
        %4057 = vmatpush1.bf16.msra.mxu0 0
        %4058 = vmatprep.subr.bf16.mxu0 0
        %4059 = vmatpush1.bf16.msra.mxu0 0
        %4060 = vmatprep.subr.bf16.mxu0 0
        %4061 = vmatpush1.bf16.msra.mxu0 0
        %4062 = vmatprep.subr.bf16.mxu0 0
        %4063 = vmatpush1.bf16.msra.mxu0 0
        %4064 = vmatprep.subr.bf16.mxu0 0
        %4065 = vmatpush1.bf16.msra.mxu0 0
        %4066 = vmatprep.subr.bf16.mxu0 0
        %4067 = vmatpush1.bf16.msra.mxu0 0
        %4068 = vmatprep.subr.bf16.mxu0 0
        %4069 = vmatpush1.bf16.msra.mxu0 0
        %4070 = vmatprep.subr.bf16.mxu0 0
        %4071 = vmatpush1.bf16.msra.mxu0 0
        %4072 = vmatprep.subr.bf16.mxu0 0
        %4073 = vmatpush1.bf16.msra.mxu0 0
        %4074 = vmatprep.subr.bf16.mxu0 0
        %4075 = vmatpush1.bf16.msra.mxu0 0
        %4076 = vmatprep.subr.bf16.mxu0 0
        %4077 = vmatpush1.bf16.msra.mxu0 0
        %4078 = vmatprep.subr.bf16.mxu0 0
        %4079 = vmatpush1.bf16.msra.mxu0 0
        %4080 = vmatprep.subr.bf16.mxu0 0
        %4081 = vmatpush1.bf16.msra.mxu0 0
        %4082 = vmatprep.subr.bf16.mxu0 0
        %4083 = vmatpush1.bf16.msra.mxu0 0
        %4084 = vmatprep.mubr.bf16.mxu0 0
        %4085 = vmatmul.mubr.bf16.gmra.mrb[0].mxu0 %v4038
        %v4086 = vpop.f32.mrb[0].mxu0
        %v4087 = vadd.f32 0.0, %v4086
        %v4088 = vpop.f32.mrb[0].mxu0
        %v4089 = vpop.f32.mrb[0].mxu0
        %v4090 = vadd.f32 0.0, %v4089
        %v4091 = vpop.f32.mrb[0].mxu0
        %4092 = vmatprep.mubr.bf16.mxu0 0
        %4093 = vmatmul.mubr.bf16.gmra.mrb[0].mxu0 %v4041
        %v4094 = vpop.f32.mrb[0].mxu0
        %v4095 = vadd.f32 0.0, %v4094
        %v4096 = vpop.f32.mrb[0].mxu0
        %v4097 = vpop.f32.mrb[0].mxu0
        %v4098 = vadd.f32 0.0, %v4097
        %v4099 = vpop.f32.mrb[0].mxu0
        %4100 = vmatprep.mubr.bf16.mxu0 0
        %4101 = vmatmul.mubr.bf16.gmra.mrb[0].mxu0 %v4044
        %v4102 = vpop.f32.mrb[0].mxu0
        %v4103 = vadd.f32 0.0, %v4102
        %v4104 = vpop.f32.mrb[0].mxu0
        %v4105 = vpop.f32.mrb[0].mxu0
        %v4106 = vadd.f32 0.0, %v4105
        %v4107 = vpop.f32.mrb[0].mxu0
        %4108 = vmatprep.mubr.bf16.mxu0 0
        %4109 = vmatmul.mubr.bf16.gmra.mrb[0].mxu0 %v4047
        %v4110 = vpop.f32.mrb[0].mxu0
        %v4111 = vadd.f32 0.0, %v4110
        %v4112 = vpop.f32.mrb[0].mxu0
        %v4113 = vpop.f32.mrb[0].mxu0
        %v4114 = vadd.f32 0.0, %v4113
        %v4115 = vpop.f32.mrb[0].mxu0
        %4116 = vdwg.mxu0
        %v4117 = vadd.f32 %v4016, %v4087
        %v4118 = vadd.f32 %v4017, %v4090
        %v4119 = vadd.f32 %v4018, %v4095
        %v4120 = vadd.f32 %v4019, %v4098
        %v4121 = vadd.f32 %v4020, %v4103
        %v4122 = vadd.f32 %v4021, %v4106
        %v4123 = vadd.f32 %v4022, %v4111
        %v4124 = vadd.f32 %v4023, %v4114
        %v4125 = vld [vmem:[%s1134 + $0x2] sm:$0xff]
        %v4126 = vld [vmem:[%s1134 + $0x12] sm:$0xff]
        %v4127 = vld [vmem:[%s1134 + $0x22] sm:$0xff]
        %v4128 = vld [vmem:[%s1134 + $0x32] sm:$0xff]
        %v4129 = vld [vmem:[%s1134 + $0x42] sm:$0xff]
        %v4130 = vld [vmem:[%s1134 + $0x52] sm:$0xff]
        %v4131 = vld [vmem:[%s1134 + $0x62] sm:$0xff]
        %v4132 = vld [vmem:[%s1134 + $0x72] sm:$0xff]
        %v4133 = vpack.c.bf16 %v4126, %v4125
        %v4134 = vpack.c.bf16 %v4128, %v4127
        %v4135 = vpack.c.bf16 %v4130, %v4129
        %v4136 = vpack.c.bf16 %v4132, %v4131
        %v4137 = vld [vmem:[%s8 + $0x20] sm:$0xf]
        %v4139 = vsel %vm482, %v4133, 0
        %v4142 = vsel %vm482, %v4134, 0
        %v4145 = vsel %vm482, %v4135, 0
        %v4148 = vsel %vm482, %v4136, 0
        %v4151 = vsel %vm581, %v4137, 0
        %4153 = vmatprep.subr.bf16.mxu0 0
        %4154 = vmatpush1.bf16.msra.mxu0 %v4151
        %4155 = vmatprep.subr.bf16.mxu0 0
        %4156 = vmatpush1.bf16.msra.mxu0 0
        %4157 = vmatprep.subr.bf16.mxu0 0
        %4158 = vmatpush1.bf16.msra.mxu0 0
        %4159 = vmatprep.subr.bf16.mxu0 0
        %4160 = vmatpush1.bf16.msra.mxu0 0
        %4161 = vmatprep.subr.bf16.mxu0 0
        %4162 = vmatpush1.bf16.msra.mxu0 0
        %4163 = vmatprep.subr.bf16.mxu0 0
        %4164 = vmatpush1.bf16.msra.mxu0 0
        %4165 = vmatprep.subr.bf16.mxu0 0
        %4166 = vmatpush1.bf16.msra.mxu0 0
        %4167 = vmatprep.subr.bf16.mxu0 0
        %4168 = vmatpush1.bf16.msra.mxu0 0
        %4169 = vmatprep.subr.bf16.mxu0 0
        %4170 = vmatpush1.bf16.msra.mxu0 0
        %4171 = vmatprep.subr.bf16.mxu0 0
        %4172 = vmatpush1.bf16.msra.mxu0 0
        %4173 = vmatprep.subr.bf16.mxu0 0
        %4174 = vmatpush1.bf16.msra.mxu0 0
        %4175 = vmatprep.subr.bf16.mxu0 0
        %4176 = vmatpush1.bf16.msra.mxu0 0
        %4177 = vmatprep.subr.bf16.mxu0 0
        %4178 = vmatpush1.bf16.msra.mxu0 0
        %4179 = vmatprep.subr.bf16.mxu0 0
        %4180 = vmatpush1.bf16.msra.mxu0 0
        %4181 = vmatprep.subr.bf16.mxu0 0
        %4182 = vmatpush1.bf16.msra.mxu0 0
        %4183 = vmatprep.subr.bf16.mxu0 0
        %4184 = vmatpush1.bf16.msra.mxu0 0
        %4185 = vmatprep.mubr.bf16.mxu0 0
        %4186 = vmatmul.mubr.bf16.gmra.mrb[0].mxu0 %v4139
        %v4187 = vpop.f32.mrb[0].mxu0
        %v4188 = vadd.f32 0.0, %v4187
        %v4189 = vpop.f32.mrb[0].mxu0
        %v4190 = vpop.f32.mrb[0].mxu0
        %v4191 = vadd.f32 0.0, %v4190
        %v4192 = vpop.f32.mrb[0].mxu0
        %4193 = vmatprep.mubr.bf16.mxu0 0
        %4194 = vmatmul.mubr.bf16.gmra.mrb[0].mxu0 %v4142
        %v4195 = vpop.f32.mrb[0].mxu0
        %v4196 = vadd.f32 0.0, %v4195
        %v4197 = vpop.f32.mrb[0].mxu0
        %v4198 = vpop.f32.mrb[0].mxu0
        %v4199 = vadd.f32 0.0, %v4198
        %v4200 = vpop.f32.mrb[0].mxu0
        %4201 = vmatprep.mubr.bf16.mxu0 0
        %4202 = vmatmul.mubr.bf16.gmra.mrb[0].mxu0 %v4145
        %v4203 = vpop.f32.mrb[0].mxu0
        %v4204 = vadd.f32 0.0, %v4203
        %v4205 = vpop.f32.mrb[0].mxu0
        %v4206 = vpop.f32.mrb[0].mxu0
        %v4207 = vadd.f32 0.0, %v4206
        %v4208 = vpop.f32.mrb[0].mxu0
        %4209 = vmatprep.mubr.bf16.mxu0 0
        %4210 = vmatmul.mubr.bf16.gmra.mrb[0].mxu0 %v4148
        %v4211 = vpop.f32.mrb[0].mxu0
        %v4212 = vadd.f32 0.0, %v4211
        %v4213 = vpop.f32.mrb[0].mxu0
        %v4214 = vpop.f32.mrb[0].mxu0
        %v4215 = vadd.f32 0.0, %v4214
        %v4216 = vpop.f32.mrb[0].mxu0
        %4217 = vdwg.mxu0
        %v4218 = vadd.f32 %v4117, %v4188
        %v4219 = vadd.f32 %v4118, %v4191
        %v4220 = vadd.f32 %v4119, %v4196
        %v4221 = vadd.f32 %v4120, %v4199
        %v4222 = vadd.f32 %v4121, %v4204
        %v4223 = vadd.f32 %v4122, %v4207
        %v4224 = vadd.f32 %v4123, %v4212
        %v4225 = vadd.f32 %v4124, %v4215
        %v4226 = vld [vmem:[%s9] sm:$0x1]
        %v4228 = vlaneseq
        %v4229 = vshrl.u32 %v4228, 7
        %v4230 = vsub.s32 0, %v4229
        %v4231 = vrot.slane %v4226, %v4230
        %v4233 = vadd.f32 %v4218, %v4231
        %v4234 = vadd.f32 %v4219, %v4231
        %v4235 = vadd.f32 %v4220, %v4231
        %v4236 = vadd.f32 %v4221, %v4231
        %v4237 = vadd.f32 %v4222, %v4231
        %v4238 = vadd.f32 %v4223, %v4231
        %v4239 = vadd.f32 %v4224, %v4231
        %v4240 = vadd.f32 %v4225, %v4231
        %v4241 = vadd.f32 %v4233, %v2385
        %v4242 = vadd.f32 %v4234, %v2386
        %v4243 = vadd.f32 %v4235, %v2387
        %v4244 = vadd.f32 %v4236, %v2388
        %v4245 = vadd.f32 %v4237, %v2389
        %v4246 = vadd.f32 %v4238, %v2390
        %v4247 = vadd.f32 %v4239, %v2391
        %v4248 = vadd.f32 %v4240, %v2392
        %v4249 = vpack.c.bf16 %v4242, %v4241
        %v4250 = vpack.c.bf16 %v4244, %v4243
        %v4251 = vpack.c.bf16 %v4246, %v4245
        %v4252 = vpack.c.bf16 %v4248, %v4247
        %v4253 = vld [vmem:[%s10] sm:$0xf]
        %v4254 = vld [vmem:[%s11] sm:$0x1]
        %v4256 = vlaneseq
        %v4257 = vshrl.u32 %v4256, 7
        %v4258 = vsub.s32 0, %v4257
        %v4259 = vrot.slane %v4254, %v4258
        %v4262 = vsel %vm482, %v4249, 0
        %v4265 = vsel %vm482, %v4250, 0
        %v4268 = vsel %vm482, %v4251, 0
        %v4271 = vsel %vm482, %v4252, 0
        %v4274 = vsel %vm581, %v4253, 0
        %4276 = vmatprep.subr.bf16.mxu0 0
        %4277 = vmatpush1.bf16.msra.mxu0 %v4274
        %4278 = vmatprep.subr.bf16.mxu0 0
        %4279 = vmatpush1.bf16.msra.mxu0 0
        %4280 = vmatprep.subr.bf16.mxu0 0
        %4281 = vmatpush1.bf16.msra.mxu0 0
        %4282 = vmatprep.subr.bf16.mxu0 0
        %4283 = vmatpush1.bf16.msra.mxu0 0
        %4284 = vmatprep.subr.bf16.mxu0 0
        %4285 = vmatpush1.bf16.msra.mxu0 0
        %4286 = vmatprep.subr.bf16.mxu0 0
        %4287 = vmatpush1.bf16.msra.mxu0 0
        %4288 = vmatprep.subr.bf16.mxu0 0
        %4289 = vmatpush1.bf16.msra.mxu0 0
        %4290 = vmatprep.subr.bf16.mxu0 0
        %4291 = vmatpush1.bf16.msra.mxu0 0
        %4292 = vmatprep.subr.bf16.mxu0 0
        %4293 = vmatpush1.bf16.msra.mxu0 0
        %4294 = vmatprep.subr.bf16.mxu0 0
        %4295 = vmatpush1.bf16.msra.mxu0 0
        %4296 = vmatprep.subr.bf16.mxu0 0
        %4297 = vmatpush1.bf16.msra.mxu0 0
        %4298 = vmatprep.subr.bf16.mxu0 0
        %4299 = vmatpush1.bf16.msra.mxu0 0
        %4300 = vmatprep.subr.bf16.mxu0 0
        %4301 = vmatpush1.bf16.msra.mxu0 0
        %4302 = vmatprep.subr.bf16.mxu0 0
        %4303 = vmatpush1.bf16.msra.mxu0 0
        %4304 = vmatprep.subr.bf16.mxu0 0
        %4305 = vmatpush1.bf16.msra.mxu0 0
        %4306 = vmatprep.subr.bf16.mxu0 0
        %4307 = vmatpush1.bf16.msra.mxu0 0
        %4308 = vmatprep.mubr.bf16.mxu0 0
        %4309 = vmatmul.mubr.bf16.gmra.mrb[0].mxu0 %v4262
        %v4310 = vpop.f32.mrb[0].mxu0
        %v4311 = vadd.f32 %v4259, %v4310
        %v4312 = vpop.f32.mrb[0].mxu0
        %v4313 = vpop.f32.mrb[0].mxu0
        %v4314 = vadd.f32 %v4259, %v4313
        %v4315 = vpop.f32.mrb[0].mxu0
        %4316 = vmatprep.mubr.bf16.mxu0 0
        %4317 = vmatmul.mubr.bf16.gmra.mrb[0].mxu0 %v4265
        %v4318 = vpop.f32.mrb[0].mxu0
        %v4319 = vadd.f32 %v4259, %v4318
        %v4320 = vpop.f32.mrb[0].mxu0
        %v4321 = vpop.f32.mrb[0].mxu0
        %v4322 = vadd.f32 %v4259, %v4321
        %v4323 = vpop.f32.mrb[0].mxu0
        %4324 = vmatprep.mubr.bf16.mxu0 0
        %4325 = vmatmul.mubr.bf16.gmra.mrb[0].mxu0 %v4268
        %v4326 = vpop.f32.mrb[0].mxu0
        %v4327 = vadd.f32 %v4259, %v4326
        %v4328 = vpop.f32.mrb[0].mxu0
        %v4329 = vpop.f32.mrb[0].mxu0
        %v4330 = vadd.f32 %v4259, %v4329
        %v4331 = vpop.f32.mrb[0].mxu0
        %4332 = vmatprep.mubr.bf16.mxu0 0
        %4333 = vmatmul.mubr.bf16.gmra.mrb[0].mxu0 %v4271
        %v4334 = vpop.f32.mrb[0].mxu0
        %v4335 = vadd.f32 %v4259, %v4334
        %v4336 = vpop.f32.mrb[0].mxu0
        %v4337 = vpop.f32.mrb[0].mxu0
        %v4338 = vadd.f32 %v4259, %v4337
        %v4339 = vpop.f32.mrb[0].mxu0
        %4340 = vdwg.mxu0
        %v4341 = vld [vmem:[%s12] sm:$0xff]
        %v4342 = vld [vmem:[%s12 + $0x8] sm:$0xff]
        %v4343 = vpack.c.bf16 %v4342, %v4341
        %v4344 = vpack.c.bf16 %v4311, %v4311
        %v4345 = vpack.c.bf16 %v4314, %v4314
        %v4346 = vpack.c.bf16 %v4319, %v4319
        %v4347 = vpack.c.bf16 %v4322, %v4322
        %v4348 = vpack.c.bf16 %v4327, %v4327
        %v4349 = vpack.c.bf16 %v4330, %v4330
        %v4350 = vpack.c.bf16 %v4335, %v4335
        %v4351 = vpack.c.bf16 %v4338, %v4338
        %v4353 = vsel %vm482, %v4343, 0
        %v4356 = vsel %vm581, %v4344, 0
        %4358 = vmatprep.subr.bf16.mxu0 0
        %4359 = vmatpush1.bf16.msra.mxu0 %v4356
        %4360 = vmatprep.subr.bf16.mxu0 0
        %4361 = vmatpush1.bf16.msra.mxu0 0
        %4362 = vmatprep.subr.bf16.mxu0 0
        %4363 = vmatpush1.bf16.msra.mxu0 0
        %4364 = vmatprep.subr.bf16.mxu0 0
        %4365 = vmatpush1.bf16.msra.mxu0 0
        %4366 = vmatprep.subr.bf16.mxu0 0
        %4367 = vmatpush1.bf16.msra.mxu0 0
        %4368 = vmatprep.subr.bf16.mxu0 0
        %4369 = vmatpush1.bf16.msra.mxu0 0
        %4370 = vmatprep.subr.bf16.mxu0 0
        %4371 = vmatpush1.bf16.msra.mxu0 0
        %4372 = vmatprep.subr.bf16.mxu0 0
        %4373 = vmatpush1.bf16.msra.mxu0 0
        %4374 = vmatprep.subr.bf16.mxu0 0
        %4375 = vmatpush1.bf16.msra.mxu0 0
        %4376 = vmatprep.subr.bf16.mxu0 0
        %4377 = vmatpush1.bf16.msra.mxu0 0
        %4378 = vmatprep.subr.bf16.mxu0 0
        %4379 = vmatpush1.bf16.msra.mxu0 0
        %4380 = vmatprep.subr.bf16.mxu0 0
        %4381 = vmatpush1.bf16.msra.mxu0 0
        %4382 = vmatprep.subr.bf16.mxu0 0
        %4383 = vmatpush1.bf16.msra.mxu0 0
        %4384 = vmatprep.subr.bf16.mxu0 0
        %4385 = vmatpush1.bf16.msra.mxu0 0
        %4386 = vmatprep.subr.bf16.mxu0 0
        %4387 = vmatpush1.bf16.msra.mxu0 0
        %4388 = vmatprep.subr.bf16.mxu0 0
        %4389 = vmatpush1.bf16.msra.mxu0 0
        %4390 = vmatprep.mubr.bf16.mxu0 0
        %4391 = vmatmul.mubr.bf16.gmra.mrb[0].mxu0 %v4353
        %v4392 = vpop.f32.mrb[0].mxu0
        %v4393 = vadd.f32 0.0, %v4392
        %v4394 = vpop.f32.mrb[0].mxu0
        %v4395 = vpop.f32.mrb[0].mxu0
        %v4396 = vadd.f32 0.0, %v4395
        %v4397 = vpop.f32.mrb[0].mxu0
        %4398 = vdwg.mxu0
        %v4400 = vsel %vm581, %v4345, 0
        %4402 = vmatprep.subr.bf16.mxu0 0
        %4403 = vmatpush1.bf16.msra.mxu0 %v4400
        %4404 = vmatprep.subr.bf16.mxu0 0
        %4405 = vmatpush1.bf16.msra.mxu0 0
        %4406 = vmatprep.subr.bf16.mxu0 0
        %4407 = vmatpush1.bf16.msra.mxu0 0
        %4408 = vmatprep.subr.bf16.mxu0 0
        %4409 = vmatpush1.bf16.msra.mxu0 0
        %4410 = vmatprep.subr.bf16.mxu0 0
        %4411 = vmatpush1.bf16.msra.mxu0 0
        %4412 = vmatprep.subr.bf16.mxu0 0
        %4413 = vmatpush1.bf16.msra.mxu0 0
        %4414 = vmatprep.subr.bf16.mxu0 0
        %4415 = vmatpush1.bf16.msra.mxu0 0
        %4416 = vmatprep.subr.bf16.mxu0 0
        %4417 = vmatpush1.bf16.msra.mxu0 0
        %4418 = vmatprep.subr.bf16.mxu0 0
        %4419 = vmatpush1.bf16.msra.mxu0 0
        %4420 = vmatprep.subr.bf16.mxu0 0
        %4421 = vmatpush1.bf16.msra.mxu0 0
        %4422 = vmatprep.subr.bf16.mxu0 0
        %4423 = vmatpush1.bf16.msra.mxu0 0
        %4424 = vmatprep.subr.bf16.mxu0 0
        %4425 = vmatpush1.bf16.msra.mxu0 0
        %4426 = vmatprep.subr.bf16.mxu0 0
        %4427 = vmatpush1.bf16.msra.mxu0 0
        %4428 = vmatprep.subr.bf16.mxu0 0
        %4429 = vmatpush1.bf16.msra.mxu0 0
        %4430 = vmatprep.subr.bf16.mxu0 0
        %4431 = vmatpush1.bf16.msra.mxu0 0
        %4432 = vmatprep.subr.bf16.mxu0 0
        %4433 = vmatpush1.bf16.msra.mxu0 0
        %4434 = vmatprep.mubr.bf16.mxu0 0
        %4435 = vmatmul.mubr.bf16.gmra.mrb[0].mxu0 %v4353
        %v4436 = vpop.f32.mrb[0].mxu0
        %v4437 = vadd.f32 0.0, %v4436
        %v4438 = vpop.f32.mrb[0].mxu0
        %v4439 = vpop.f32.mrb[0].mxu0
        %v4440 = vadd.f32 0.0, %v4439
        %v4441 = vpop.f32.mrb[0].mxu0
        %4442 = vdwg.mxu0
        %v4444 = vsel %vm581, %v4346, 0
        %4446 = vmatprep.subr.bf16.mxu0 0
        %4447 = vmatpush1.bf16.msra.mxu0 %v4444
        %4448 = vmatprep.subr.bf16.mxu0 0
        %4449 = vmatpush1.bf16.msra.mxu0 0
        %4450 = vmatprep.subr.bf16.mxu0 0
        %4451 = vmatpush1.bf16.msra.mxu0 0
        %4452 = vmatprep.subr.bf16.mxu0 0
        %4453 = vmatpush1.bf16.msra.mxu0 0
        %4454 = vmatprep.subr.bf16.mxu0 0
        %4455 = vmatpush1.bf16.msra.mxu0 0
        %4456 = vmatprep.subr.bf16.mxu0 0
        %4457 = vmatpush1.bf16.msra.mxu0 0
        %4458 = vmatprep.subr.bf16.mxu0 0
        %4459 = vmatpush1.bf16.msra.mxu0 0
        %4460 = vmatprep.subr.bf16.mxu0 0
        %4461 = vmatpush1.bf16.msra.mxu0 0
        %4462 = vmatprep.subr.bf16.mxu0 0
        %4463 = vmatpush1.bf16.msra.mxu0 0
        %4464 = vmatprep.subr.bf16.mxu0 0
        %4465 = vmatpush1.bf16.msra.mxu0 0
        %4466 = vmatprep.subr.bf16.mxu0 0
        %4467 = vmatpush1.bf16.msra.mxu0 0
        %4468 = vmatprep.subr.bf16.mxu0 0
        %4469 = vmatpush1.bf16.msra.mxu0 0
        %4470 = vmatprep.subr.bf16.mxu0 0
        %4471 = vmatpush1.bf16.msra.mxu0 0
        %4472 = vmatprep.subr.bf16.mxu0 0
        %4473 = vmatpush1.bf16.msra.mxu0 0
        %4474 = vmatprep.subr.bf16.mxu0 0
        %4475 = vmatpush1.bf16.msra.mxu0 0
        %4476 = vmatprep.subr.bf16.mxu0 0
        %4477 = vmatpush1.bf16.msra.mxu0 0
        %4478 = vmatprep.mubr.bf16.mxu0 0
        %4479 = vmatmul.mubr.bf16.gmra.mrb[0].mxu0 %v4353
        %v4480 = vpop.f32.mrb[0].mxu0
        %v4481 = vadd.f32 0.0, %v4480
        %v4482 = vpop.f32.mrb[0].mxu0
        %v4483 = vpop.f32.mrb[0].mxu0
        %v4484 = vadd.f32 0.0, %v4483
        %v4485 = vpop.f32.mrb[0].mxu0
        %4486 = vdwg.mxu0
        %v4488 = vsel %vm581, %v4347, 0
        %4490 = vmatprep.subr.bf16.mxu0 0
        %4491 = vmatpush1.bf16.msra.mxu0 %v4488
        %4492 = vmatprep.subr.bf16.mxu0 0
        %4493 = vmatpush1.bf16.msra.mxu0 0
        %4494 = vmatprep.subr.bf16.mxu0 0
        %4495 = vmatpush1.bf16.msra.mxu0 0
        %4496 = vmatprep.subr.bf16.mxu0 0
        %4497 = vmatpush1.bf16.msra.mxu0 0
        %4498 = vmatprep.subr.bf16.mxu0 0
        %4499 = vmatpush1.bf16.msra.mxu0 0
        %4500 = vmatprep.subr.bf16.mxu0 0
        %4501 = vmatpush1.bf16.msra.mxu0 0
        %4502 = vmatprep.subr.bf16.mxu0 0
        %4503 = vmatpush1.bf16.msra.mxu0 0
        %4504 = vmatprep.subr.bf16.mxu0 0
        %4505 = vmatpush1.bf16.msra.mxu0 0
        %4506 = vmatprep.subr.bf16.mxu0 0
        %4507 = vmatpush1.bf16.msra.mxu0 0
        %4508 = vmatprep.subr.bf16.mxu0 0
        %4509 = vmatpush1.bf16.msra.mxu0 0
        %4510 = vmatprep.subr.bf16.mxu0 0
        %4511 = vmatpush1.bf16.msra.mxu0 0
        %4512 = vmatprep.subr.bf16.mxu0 0
        %4513 = vmatpush1.bf16.msra.mxu0 0
        %4514 = vmatprep.subr.bf16.mxu0 0
        %4515 = vmatpush1.bf16.msra.mxu0 0
        %4516 = vmatprep.subr.bf16.mxu0 0
        %4517 = vmatpush1.bf16.msra.mxu0 0
        %4518 = vmatprep.subr.bf16.mxu0 0
        %4519 = vmatpush1.bf16.msra.mxu0 0
        %4520 = vmatprep.subr.bf16.mxu0 0
        %4521 = vmatpush1.bf16.msra.mxu0 0
        %4522 = vmatprep.mubr.bf16.mxu0 0
        %4523 = vmatmul.mubr.bf16.gmra.mrb[0].mxu0 %v4353
        %v4524 = vpop.f32.mrb[0].mxu0
        %v4525 = vadd.f32 0.0, %v4524
        %v4526 = vpop.f32.mrb[0].mxu0
        %v4527 = vpop.f32.mrb[0].mxu0
        %v4528 = vadd.f32 0.0, %v4527
        %v4529 = vpop.f32.mrb[0].mxu0
        %4530 = vdwg.mxu0
        %v4532 = vsel %vm581, %v4348, 0
        %4534 = vmatprep.subr.bf16.mxu0 0
        %4535 = vmatpush1.bf16.msra.mxu0 %v4532
        %4536 = vmatprep.subr.bf16.mxu0 0
        %4537 = vmatpush1.bf16.msra.mxu0 0
        %4538 = vmatprep.subr.bf16.mxu0 0
        %4539 = vmatpush1.bf16.msra.mxu0 0
        %4540 = vmatprep.subr.bf16.mxu0 0
        %4541 = vmatpush1.bf16.msra.mxu0 0
        %4542 = vmatprep.subr.bf16.mxu0 0
        %4543 = vmatpush1.bf16.msra.mxu0 0
        %4544 = vmatprep.subr.bf16.mxu0 0
        %4545 = vmatpush1.bf16.msra.mxu0 0
        %4546 = vmatprep.subr.bf16.mxu0 0
        %4547 = vmatpush1.bf16.msra.mxu0 0
        %4548 = vmatprep.subr.bf16.mxu0 0
        %4549 = vmatpush1.bf16.msra.mxu0 0
        %4550 = vmatprep.subr.bf16.mxu0 0
        %4551 = vmatpush1.bf16.msra.mxu0 0
        %4552 = vmatprep.subr.bf16.mxu0 0
        %4553 = vmatpush1.bf16.msra.mxu0 0
        %4554 = vmatprep.subr.bf16.mxu0 0
        %4555 = vmatpush1.bf16.msra.mxu0 0
        %4556 = vmatprep.subr.bf16.mxu0 0
        %4557 = vmatpush1.bf16.msra.mxu0 0
        %4558 = vmatprep.subr.bf16.mxu0 0
        %4559 = vmatpush1.bf16.msra.mxu0 0
        %4560 = vmatprep.subr.bf16.mxu0 0
        %4561 = vmatpush1.bf16.msra.mxu0 0
        %4562 = vmatprep.subr.bf16.mxu0 0
        %4563 = vmatpush1.bf16.msra.mxu0 0
        %4564 = vmatprep.subr.bf16.mxu0 0
        %4565 = vmatpush1.bf16.msra.mxu0 0
        %4566 = vmatprep.mubr.bf16.mxu0 0
        %4567 = vmatmul.mubr.bf16.gmra.mrb[0].mxu0 %v4353
        %v4568 = vpop.f32.mrb[0].mxu0
        %v4569 = vadd.f32 0.0, %v4568
        %v4570 = vpop.f32.mrb[0].mxu0
        %v4571 = vpop.f32.mrb[0].mxu0
        %v4572 = vadd.f32 0.0, %v4571
        %v4573 = vpop.f32.mrb[0].mxu0
        %4574 = vdwg.mxu0
        %v4576 = vsel %vm581, %v4349, 0
        %4578 = vmatprep.subr.bf16.mxu0 0
        %4579 = vmatpush1.bf16.msra.mxu0 %v4576
        %4580 = vmatprep.subr.bf16.mxu0 0
        %4581 = vmatpush1.bf16.msra.mxu0 0
        %4582 = vmatprep.subr.bf16.mxu0 0
        %4583 = vmatpush1.bf16.msra.mxu0 0
        %4584 = vmatprep.subr.bf16.mxu0 0
        %4585 = vmatpush1.bf16.msra.mxu0 0
        %4586 = vmatprep.subr.bf16.mxu0 0
        %4587 = vmatpush1.bf16.msra.mxu0 0
        %4588 = vmatprep.subr.bf16.mxu0 0
        %4589 = vmatpush1.bf16.msra.mxu0 0
        %4590 = vmatprep.subr.bf16.mxu0 0
        %4591 = vmatpush1.bf16.msra.mxu0 0
        %4592 = vmatprep.subr.bf16.mxu0 0
        %4593 = vmatpush1.bf16.msra.mxu0 0
        %4594 = vmatprep.subr.bf16.mxu0 0
        %4595 = vmatpush1.bf16.msra.mxu0 0
        %4596 = vmatprep.subr.bf16.mxu0 0
        %4597 = vmatpush1.bf16.msra.mxu0 0
        %4598 = vmatprep.subr.bf16.mxu0 0
        %4599 = vmatpush1.bf16.msra.mxu0 0
        %4600 = vmatprep.subr.bf16.mxu0 0
        %4601 = vmatpush1.bf16.msra.mxu0 0
        %4602 = vmatprep.subr.bf16.mxu0 0
        %4603 = vmatpush1.bf16.msra.mxu0 0
        %4604 = vmatprep.subr.bf16.mxu0 0
        %4605 = vmatpush1.bf16.msra.mxu0 0
        %4606 = vmatprep.subr.bf16.mxu0 0
        %4607 = vmatpush1.bf16.msra.mxu0 0
        %4608 = vmatprep.subr.bf16.mxu0 0
        %4609 = vmatpush1.bf16.msra.mxu0 0
        %4610 = vmatprep.mubr.bf16.mxu0 0
        %4611 = vmatmul.mubr.bf16.gmra.mrb[0].mxu0 %v4353
        %v4612 = vpop.f32.mrb[0].mxu0
        %v4613 = vadd.f32 0.0, %v4612
        %v4614 = vpop.f32.mrb[0].mxu0
        %v4615 = vpop.f32.mrb[0].mxu0
        %v4616 = vadd.f32 0.0, %v4615
        %v4617 = vpop.f32.mrb[0].mxu0
        %4618 = vdwg.mxu0
        %v4620 = vsel %vm581, %v4350, 0
        %4622 = vmatprep.subr.bf16.mxu0 0
        %4623 = vmatpush1.bf16.msra.mxu0 %v4620
        %4624 = vmatprep.subr.bf16.mxu0 0
        %4625 = vmatpush1.bf16.msra.mxu0 0
        %4626 = vmatprep.subr.bf16.mxu0 0
        %4627 = vmatpush1.bf16.msra.mxu0 0
        %4628 = vmatprep.subr.bf16.mxu0 0
        %4629 = vmatpush1.bf16.msra.mxu0 0
        %4630 = vmatprep.subr.bf16.mxu0 0
        %4631 = vmatpush1.bf16.msra.mxu0 0
        %4632 = vmatprep.subr.bf16.mxu0 0
        %4633 = vmatpush1.bf16.msra.mxu0 0
        %4634 = vmatprep.subr.bf16.mxu0 0
        %4635 = vmatpush1.bf16.msra.mxu0 0
        %4636 = vmatprep.subr.bf16.mxu0 0
        %4637 = vmatpush1.bf16.msra.mxu0 0
        %4638 = vmatprep.subr.bf16.mxu0 0
        %4639 = vmatpush1.bf16.msra.mxu0 0
        %4640 = vmatprep.subr.bf16.mxu0 0
        %4641 = vmatpush1.bf16.msra.mxu0 0
        %4642 = vmatprep.subr.bf16.mxu0 0
        %4643 = vmatpush1.bf16.msra.mxu0 0
        %4644 = vmatprep.subr.bf16.mxu0 0
        %4645 = vmatpush1.bf16.msra.mxu0 0
        %4646 = vmatprep.subr.bf16.mxu0 0
        %4647 = vmatpush1.bf16.msra.mxu0 0
        %4648 = vmatprep.subr.bf16.mxu0 0
        %4649 = vmatpush1.bf16.msra.mxu0 0
        %4650 = vmatprep.subr.bf16.mxu0 0
        %4651 = vmatpush1.bf16.msra.mxu0 0
        %4652 = vmatprep.subr.bf16.mxu0 0
        %4653 = vmatpush1.bf16.msra.mxu0 0
        %4654 = vmatprep.mubr.bf16.mxu0 0
        %4655 = vmatmul.mubr.bf16.gmra.mrb[0].mxu0 %v4353
        %v4656 = vpop.f32.mrb[0].mxu0
        %v4657 = vadd.f32 0.0, %v4656
        %v4658 = vpop.f32.mrb[0].mxu0
        %v4659 = vpop.f32.mrb[0].mxu0
        %v4660 = vadd.f32 0.0, %v4659
        %v4661 = vpop.f32.mrb[0].mxu0
        %4662 = vdwg.mxu0
        %v4664 = vsel %vm581, %v4351, 0
        %4666 = vmatprep.subr.bf16.mxu0 0
        %4667 = vmatpush1.bf16.msra.mxu0 %v4664
        %4668 = vmatprep.subr.bf16.mxu0 0
        %4669 = vmatpush1.bf16.msra.mxu0 0
        %4670 = vmatprep.subr.bf16.mxu0 0
        %4671 = vmatpush1.bf16.msra.mxu0 0
        %4672 = vmatprep.subr.bf16.mxu0 0
        %4673 = vmatpush1.bf16.msra.mxu0 0
        %4674 = vmatprep.subr.bf16.mxu0 0
        %4675 = vmatpush1.bf16.msra.mxu0 0
        %4676 = vmatprep.subr.bf16.mxu0 0
        %4677 = vmatpush1.bf16.msra.mxu0 0
        %4678 = vmatprep.subr.bf16.mxu0 0
        %4679 = vmatpush1.bf16.msra.mxu0 0
        %4680 = vmatprep.subr.bf16.mxu0 0
        %4681 = vmatpush1.bf16.msra.mxu0 0
        %4682 = vmatprep.subr.bf16.mxu0 0
        %4683 = vmatpush1.bf16.msra.mxu0 0
        %4684 = vmatprep.subr.bf16.mxu0 0
        %4685 = vmatpush1.bf16.msra.mxu0 0
        %4686 = vmatprep.subr.bf16.mxu0 0
        %4687 = vmatpush1.bf16.msra.mxu0 0
        %4688 = vmatprep.subr.bf16.mxu0 0
        %4689 = vmatpush1.bf16.msra.mxu0 0
        %4690 = vmatprep.subr.bf16.mxu0 0
        %4691 = vmatpush1.bf16.msra.mxu0 0
        %4692 = vmatprep.subr.bf16.mxu0 0
        %4693 = vmatpush1.bf16.msra.mxu0 0
        %4694 = vmatprep.subr.bf16.mxu0 0
        %4695 = vmatpush1.bf16.msra.mxu0 0
        %4696 = vmatprep.subr.bf16.mxu0 0
        %4697 = vmatpush1.bf16.msra.mxu0 0
        %4698 = vmatprep.mubr.bf16.mxu0 0
        %4699 = vmatmul.mubr.bf16.gmra.mrb[0].mxu0 %v4353
        %v4700 = vpop.f32.mrb[0].mxu0
        %v4701 = vadd.f32 0.0, %v4700
        %v4702 = vpop.f32.mrb[0].mxu0
        %v4703 = vpop.f32.mrb[0].mxu0
        %v4704 = vadd.f32 0.0, %v4703
        %v4705 = vpop.f32.mrb[0].mxu0
        %4706 = vdwg.mxu0
        %4707 = vst.msk [vmem:[%s480] sm:$0xff] %vm482, %v4393
        %4708 = vst.msk [vmem:[%s480 + $0x8] sm:$0xff] %vm482, %v4396
        %v4709 = vmul.f32 %v4393, 0.53333336
        %v4710 = vmul.f32 %v4396, 0.53333336
        %v4711 = vmul.f32 %v4437, 0.46666667
        %v4712 = vmul.f32 %v4440, 0.46666667
        %v4713 = vadd.f32 %v4709, %v4711
        %v4714 = vadd.f32 %v4710, %v4712
        %s4715 = scalar_lea.vmem %s480, 16
        %4716 = vst.msk [vmem:[%s4715] sm:$0xff] %vm482, %v4713
        %4717 = vst.msk [vmem:[%s4715 + $0x8] sm:$0xff] %vm482, %v4714
        %v4718 = vmul.f32 %v4393, 0.06666667
        %v4719 = vmul.f32 %v4396, 0.06666667
        %v4720 = vmul.f32 %v4437, 0.93333334
        %v4721 = vmul.f32 %v4440, 0.93333334
        %v4722 = vadd.f32 %v4718, %v4720
        %v4723 = vadd.f32 %v4719, %v4721
        %s4724 = scalar_lea.vmem %s480, 32
        %4725 = vst.msk [vmem:[%s4724] sm:$0xff] %vm482, %v4722
        %4726 = vst.msk [vmem:[%s4724 + $0x8] sm:$0xff] %vm482, %v4723
        %v4727 = vmul.f32 %v4437, 0.6
        %v4728 = vmul.f32 %v4440, 0.6
        %v4729 = vmul.f32 %v4481, 0.4
        %v4730 = vmul.f32 %v4484, 0.4
        %v4731 = vadd.f32 %v4727, %v4729
        %v4732 = vadd.f32 %v4728, %v4730
        %s4733 = scalar_lea.vmem %s480, 48
        %4734 = vst.msk [vmem:[%s4733] sm:$0xff] %vm482, %v4731
        %4735 = vst.msk [vmem:[%s4733 + $0x8] sm:$0xff] %vm482, %v4732
        %v4736 = vmul.f32 %v4437, 0.13333334
        %v4737 = vmul.f32 %v4440, 0.13333334
        %v4738 = vmul.f32 %v4481, 0.8666667
        %v4739 = vmul.f32 %v4484, 0.8666667
        %v4740 = vadd.f32 %v4736, %v4738
        %v4741 = vadd.f32 %v4737, %v4739
        %s4742 = scalar_lea.vmem %s480, 64
        %4743 = vst.msk [vmem:[%s4742] sm:$0xff] %vm482, %v4740
        %4744 = vst.msk [vmem:[%s4742 + $0x8] sm:$0xff] %vm482, %v4741
        %v4745 = vmul.f32 %v4481, 0.6666667
        %v4746 = vmul.f32 %v4484, 0.6666667
        %v4747 = vmul.f32 %v4525, 0.33333334
        %v4748 = vmul.f32 %v4528, 0.33333334
        %v4749 = vadd.f32 %v4745, %v4747
        %v4750 = vadd.f32 %v4746, %v4748
        %s4751 = scalar_lea.vmem %s480, 80
        %4752 = vst.msk [vmem:[%s4751] sm:$0xff] %vm482, %v4749
        %4753 = vst.msk [vmem:[%s4751 + $0x8] sm:$0xff] %vm482, %v4750
        %v4754 = vmul.f32 %v4481, 0.2
        %v4755 = vmul.f32 %v4484, 0.2
        %v4756 = vmul.f32 %v4525, 0.8
        %v4757 = vmul.f32 %v4528, 0.8
        %v4758 = vadd.f32 %v4754, %v4756
        %v4759 = vadd.f32 %v4755, %v4757
        %s4760 = scalar_lea.vmem %s480, 96
        %4761 = vst.msk [vmem:[%s4760] sm:$0xff] %vm482, %v4758
        %4762 = vst.msk [vmem:[%s4760 + $0x8] sm:$0xff] %vm482, %v4759
        %v4763 = vmul.f32 %v4525, 0.73333335
        %v4764 = vmul.f32 %v4528, 0.73333335
        %v4765 = vmul.f32 %v4569, 0.26666668
        %v4766 = vmul.f32 %v4572, 0.26666668
        %v4767 = vadd.f32 %v4763, %v4765
        %v4768 = vadd.f32 %v4764, %v4766
        %s4769 = scalar_lea.vmem %s480, 112
        %4770 = vst.msk [vmem:[%s4769] sm:$0xff] %vm482, %v4767
        %4771 = vst.msk [vmem:[%s4769 + $0x8] sm:$0xff] %vm482, %v4768
        %v4772 = vmul.f32 %v4525, 0.26666668
        %v4773 = vmul.f32 %v4528, 0.26666668
        %v4774 = vmul.f32 %v4569, 0.73333335
        %v4775 = vmul.f32 %v4572, 0.73333335
        %v4776 = vadd.f32 %v4772, %v4774
        %v4777 = vadd.f32 %v4773, %v4775
        %s4778 = scalar_lea.vmem %s480, 128
        %4779 = vst.msk [vmem:[%s4778] sm:$0xff] %vm482, %v4776
        %4780 = vst.msk [vmem:[%s4778 + $0x8] sm:$0xff] %vm482, %v4777
        %v4781 = vmul.f32 %v4569, 0.8
        %v4782 = vmul.f32 %v4572, 0.8
        %v4783 = vmul.f32 %v4613, 0.2
        %v4784 = vmul.f32 %v4616, 0.2
        %v4785 = vadd.f32 %v4781, %v4783
        %v4786 = vadd.f32 %v4782, %v4784
        %s4787 = scalar_lea.vmem %s480, 144
        %4788 = vst.msk [vmem:[%s4787] sm:$0xff] %vm482, %v4785
        %4789 = vst.msk [vmem:[%s4787 + $0x8] sm:$0xff] %vm482, %v4786
        %v4790 = vmul.f32 %v4569, 0.33333334
        %v4791 = vmul.f32 %v4572, 0.33333334
        %v4792 = vmul.f32 %v4613, 0.6666667
        %v4793 = vmul.f32 %v4616, 0.6666667
        %v4794 = vadd.f32 %v4790, %v4792
        %v4795 = vadd.f32 %v4791, %v4793
        %s4796 = scalar_lea.vmem %s480, 160
        %4797 = vst.msk [vmem:[%s4796] sm:$0xff] %vm482, %v4794
        %4798 = vst.msk [vmem:[%s4796 + $0x8] sm:$0xff] %vm482, %v4795
        %v4799 = vmul.f32 %v4613, 0.8666667
        %v4800 = vmul.f32 %v4616, 0.8666667
        %v4801 = vmul.f32 %v4657, 0.13333334
        %v4802 = vmul.f32 %v4660, 0.13333334
        %v4803 = vadd.f32 %v4799, %v4801
        %v4804 = vadd.f32 %v4800, %v4802
        %s4805 = scalar_lea.vmem %s480, 176
        %4806 = vst.msk [vmem:[%s4805] sm:$0xff] %vm482, %v4803
        %4807 = vst.msk [vmem:[%s4805 + $0x8] sm:$0xff] %vm482, %v4804
        %v4808 = vmul.f32 %v4613, 0.4
        %v4809 = vmul.f32 %v4616, 0.4
        %v4810 = vmul.f32 %v4657, 0.6
        %v4811 = vmul.f32 %v4660, 0.6
        %v4812 = vadd.f32 %v4808, %v4810
        %v4813 = vadd.f32 %v4809, %v4811
        %s4814 = scalar_lea.vmem %s480, 192
        %4815 = vst.msk [vmem:[%s4814] sm:$0xff] %vm482, %v4812
        %4816 = vst.msk [vmem:[%s4814 + $0x8] sm:$0xff] %vm482, %v4813
        %v4817 = vmul.f32 %v4657, 0.93333334
        %v4818 = vmul.f32 %v4660, 0.93333334
        %v4819 = vmul.f32 %v4701, 0.06666667
        %v4820 = vmul.f32 %v4704, 0.06666667
        %v4821 = vadd.f32 %v4817, %v4819
        %v4822 = vadd.f32 %v4818, %v4820
        %s4823 = scalar_lea.vmem %s480, 208
        %4824 = vst.msk [vmem:[%s4823] sm:$0xff] %vm482, %v4821
        %4825 = vst.msk [vmem:[%s4823 + $0x8] sm:$0xff] %vm482, %v4822
        %v4826 = vmul.f32 %v4657, 0.46666667
        %v4827 = vmul.f32 %v4660, 0.46666667
        %v4828 = vmul.f32 %v4701, 0.53333336
        %v4829 = vmul.f32 %v4704, 0.53333336
        %v4830 = vadd.f32 %v4826, %v4828
        %v4831 = vadd.f32 %v4827, %v4829
        %s4832 = scalar_lea.vmem %s480, 224
        %4833 = vst.msk [vmem:[%s4832] sm:$0xff] %vm482, %v4830
        %4834 = vst.msk [vmem:[%s4832 + $0x8] sm:$0xff] %vm482, %v4831
        %s4835 = scalar_lea.vmem %s480, 240
        %4836 = vst.msk [vmem:[%s4835] sm:$0xff] %vm482, %v4701
        %4837 = vst.msk [vmem:[%s4835 + $0x8] sm:$0xff] %vm482, %v4704
        %p4838 = scmp.lt.s32.totalorder %s27, 1
        %s4839 = scalar_select %p4838, %s27, 1
        %s4840 = smul.addr %s4839, 32
        %s4841 = smul.addr %s4840, 8
        %s4842 = scalar_lea.vmem %s13, %s4841
        // Predicated region
        $region77: #{tpu_custom_call.1} parent=71 // pred_check
          %p4843 = pneg %p328
        $region78: #{tpu_custom_call.1} parent=71 // pred_check_branch
          %4845 = sbr.rel (%p4843) target = $region80
        $region79: #{tpu_custom_call.1} parent=71 // pred_region
          _
        $region80: #{tpu_custom_call.1} parent=71 // pred_fallthru
          _
      $region72: #{tpu_custom_call.1} parent=5 // pred_fallthru
        _
      %p4846 = scmp.le.s32.totalorder 2, %s22
      // Predicated region
      $region81: #{tpu_custom_call.1} parent=5 // pred_check
        %p4847 = pneg %p4846
      $region82: #{tpu_custom_call.1} parent=5 // pred_check_branch
        %4849 = sbr.rel (%p4847) target = $region84
      $region83: #{tpu_custom_call.1} parent=5 // pred_region
        %s4850 = ssub.s32 %s22, 2
        // Predicated region
        $region85: #{tpu_custom_call.1} parent=83 // pred_check
          %p4851 = pneg %p334
        $region86: #{tpu_custom_call.1} parent=83 // pred_check_branch
          %4853 = sbr.rel (%p4851) target = $region88
        $region87: #{tpu_custom_call.1} parent=83 // pred_region
          %p4854 = scmp.lt.s32.totalorder %s28, 1
          %s4855 = scalar_select %p4854, %s28, 1
          %s4856 = smul.addr %s4855, 32
          %s4857 = smul.addr %s4856, 8
          %s4858 = scalar_lea.vmem %s13, %s4857
        $region88: #{tpu_custom_call.1} parent=83 // pred_fallthru
          _
      $region84: #{tpu_custom_call.1} parent=5 // pred_fallthru
        _
    $region6: #{tpu_custom_call.1} parent=1 // loop_footer
      %s26 = sadd.s32 1, %s22
    $region7: #{tpu_custom_call.1} parent=1 // loop_footer_branch
      %21 = sbr.rel target = $region3
    $region8: #{tpu_custom_call.1} parent=1 // loop_exit
      _
    %4859 = vsyncpa [#allocation4], 1
    %s4860 = scalar_lea.sflag [#allocation4], 1
    %4861 = vsyncpa %s4860, 1

</llo_original>
